<compile_context>
chip_gen: v5e
topology: v5e:2x2
jax: 0.10.0
libtpu: 0.0.40
codegen_flags: <defaults>
</compile_context>

<pallas_src>
import jax
import jax.numpy as jnp
import numpy as np
from jax.experimental import pallas as pl
from jax.experimental.pallas import tpu as pltpu

N = 10       # number of hedging periods
HID = 10     # hidden units in each MyOwnNeuralNetworkFunction (Linear(1,10)->relu->Linear(10,1))
LANES = 128  # batch samples per lane row
TB = 8       # sublane rows per batch tile  ->  TB*LANES = 1024 samples per grid step (sweepable)


def deep_hedging_kernel(info_ref, dprc_ref, payoff_ref,
                        w1_ref, b1_ref, w2_ref, b2_ref, out_ref):
    """Per-tile deep-hedging forward.

    info_ref, dprc_ref : (N, TB, 128) VMEM   (batch on sublanes+lanes, step along axis 0)
    payoff_ref, out_ref: (TB, 128)    VMEM
    w1_ref, b1_ref, w2_ref: (N, HID)  SMEM   b2_ref: (N,) SMEM
    """
    wealth = payoff_ref[...]                                   # (TB, 128)
    # Static unroll over the N hedging steps (telescoped: no strategy/wealth carry).
    for j in range(N):
        x = info_ref[j]                                        # (TB, 128)
        s = jnp.zeros_like(x)
        # dense1 (Linear(1,10)) -> relu -> dense2 (Linear(10,1)), one scalar-broadcast
        # VPU op chain per hidden unit; no lane padding, no cross-lane reduce.
        for h in range(HID):
            hidden = jnp.maximum(x * w1_ref[j, h] + b1_ref[j, h], 0.0)
            s = s + hidden * w2_ref[j, h]
        wealth = wealth + (s + b2_ref[j]) * dprc_ref[j]
    out_ref[...] = wealth


def deep_hedging_forward(prc, info, payoff, w1, b1, w2, b2, *, tb=TB):
    """prc: (K, N+1), info: (K, N), payoff: (K, 1) -> wealth (K, 1)."""
    K = prc.shape[0]
    assert prc.shape[1] == N + 1 and info.shape[1] == N and payoff.shape == (K, 1)

    # Telescoping identity: wealth = sum_j s_j * (prc_{j+1} - prc_j) + payoff.
    dprc = (prc[:, 1:N + 1] - prc[:, :N]).astype(jnp.float32)   # (K, N), precomputed in-wrapper
    info = info.astype(jnp.float32)
    payoff = payoff.astype(jnp.float32)

    block = tb * LANES
    k_pad = ((K + block - 1) // block) * block
    pad = k_pad - K
    if pad:
        dprc = jnp.pad(dprc, ((0, pad), (0, 0)))
        info = jnp.pad(info, ((0, pad), (0, 0)))
        payoff = jnp.pad(payoff, ((0, pad), (0, 0)))
    kr = k_pad // LANES                                         # lane-row count (multiple of tb)

    # Layout plumbing in the wrapper: batch -> (rows, lanes); step along leading axis.
    info3d = info.T.reshape(N, kr, LANES)                       # (N, kr, 128)
    dprc3d = dprc.T.reshape(N, kr, LANES)                       # (N, kr, 128)
    payoff2d = payoff.reshape(kr, LANES)                        # (kr, 128)

    smem_spec = pl.BlockSpec(memory_space=pltpu.MemorySpace.SMEM)

    out = pl.pallas_call(
        deep_hedging_kernel,
        out_shape=jax.ShapeDtypeStruct((kr, LANES), jnp.float32),
        grid=(kr // tb,),
        in_specs=[
            pl.BlockSpec((N, tb, LANES), lambda i: (0, i, 0)),   # info
            pl.BlockSpec((N, tb, LANES), lambda i: (0, i, 0)),   # dprc
            pl.BlockSpec((tb, LANES), lambda i: (i, 0)),         # payoff
            smem_spec,                                           # w1 (N, HID)
            smem_spec,                                           # b1 (N, HID)
            smem_spec,                                           # w2 (N, HID)
            smem_spec,                                           # b2 (N,)
        ],
        out_specs=pl.BlockSpec((tb, LANES), lambda i: (i, 0)),   # lane-dense output
        compiler_params=pltpu.CompilerParams(dimension_semantics=("parallel",)),
    )(info3d, dprc3d, payoff2d, w1, b1, w2, b2)

    return out.reshape(k_pad, 1)[:K]


def init_params(key):
    """Deterministic init of the N strategy MLPs (Linear(1,10) -> relu -> Linear(10,1))."""
    keys = jax.random.split(key, 4 * N)
    w1 = np.zeros((N, HID), np.float32)
    b1 = np.zeros((N, HID), np.float32)
    w2 = np.zeros((N, HID), np.float32)
    b2 = np.zeros((N,), np.float32)
    raw = []
    lim1 = float(np.sqrt(6.0 / 1.0))      # he_uniform-ish for fan_in=1
    lim2 = float(1.0 / np.sqrt(HID))      # torch default-ish for fan_in=10
    for j in range(N):
        k1, k2, k3, k4 = keys[4 * j:4 * j + 4]
        w1_j = np.asarray(jax.random.uniform(k1, (HID,), jnp.float32, -lim1, lim1))
        b1_j = np.asarray(jax.random.uniform(k2, (HID,), jnp.float32, -1.0, 1.0))
        w2_j = np.asarray(jax.random.uniform(k3, (HID,), jnp.float32, -lim2, lim2))
        b2_j = np.asarray(jax.random.uniform(k4, (1,), jnp.float32, -lim2, lim2))
        w1[j], b1[j], w2[j], b2[j] = w1_j, b1_j, w2_j, b2_j[0]
        raw.append((jnp.asarray(w1_j), jnp.asarray(b1_j), jnp.asarray(w2_j), jnp.asarray(b2_j)))
    return (jnp.asarray(w1), jnp.asarray(b1), jnp.asarray(w2), jnp.asarray(b2)), raw


def torch_style_reference(inputs_list, raw_params):
    """Pure-JAX mirror of the PyTorch deep-hedging forward (explicit strategy/wealth carry).

    inputs_list = [prc_0, info_0, ..., prc_{N-1}, info_{N-1}, prc_N, payoff]   (each (K, 1)).
    """
    prc = inputs_list[0]
    info = inputs_list[1]
    strategy = None
    wealth = None
    for j in range(N):
        w1_j, b1_j, w2_j, b2_j = raw_params[j]
        # MyOwnNeuralNetworkFunction.forward: relu(dense1(x)) -> dense2
        hidden = jnp.maximum(info * w1_j[None, :] + b1_j[None, :], 0.0)          # (K, 10)
        s = jnp.sum(hidden * w2_j[None, :], axis=1, keepdims=True) + b2_j        # (K, 1)
        delta = s if j == 0 else s - strategy
        mult = delta * prc
        wealth = -mult if j == 0 else wealth - mult
        strategy = s
        prc = inputs_list[2 * (j + 1)]
        if j < N - 1:
            info = inputs_list[2 * (j + 1) + 1]
    wealth = wealth + strategy * prc          # liquidate at the final price
    wealth = wealth + inputs_list[-1]         # add the (distinct) option payoff
    return wealth


if __name__ == "__main__":
    K = 4096  # small stand-in for Ktrain=10**4; 4 grid steps at TB=8 (>=2 keeps v7x's 2 TCs busy)
    key = jax.random.PRNGKey(0)
    pkey, dkey = jax.random.split(key)

    (w1, b1, w2, b2), raw_params = init_params(pkey)

    # PyTorch-style input list: [prc_0, info_0, ..., prc_{N-1}, info_{N-1}, prc_N, payoff].
    dkeys = jax.random.split(dkey, 2 * N + 2)
    inputs_list = []
    for t in range(N):
        inputs_list.append(jax.random.uniform(dkeys[2 * t], (K, 1), jnp.float32, 0.4, 0.6))       # prc_t
        inputs_list.append(jax.random.uniform(dkeys[2 * t + 1], (K, 1), jnp.float32, 0.05, 0.15))  # info_t
    prc_N_final = jax.random.uniform(dkeys[2 * N], (K, 1), jnp.float32, 0.4, 0.6)
    payoff = jax.random.uniform(dkeys[2 * N + 1], (K, 1), jnp.float32, 0.0, 0.2)
    inputs_list.append(prc_N_final)
    inputs_list.append(payoff)

    # Pack into the kernel layout.
    prc = jnp.concatenate([inputs_list[2 * t] for t in range(N + 1)], axis=1)        # (K, N+1)
    info = jnp.concatenate([inputs_list[2 * t + 1] for t in range(N)], axis=1)       # (K, N)

    out = deep_hedging_forward(prc, info, payoff, w1, b1, w2, b2)
    out = jax.block_until_ready(out)

    ref = jax.block_until_ready(torch_style_reference(inputs_list, raw_params))

    if not np.allclose(np.asarray(out), np.asarray(ref), rtol=1e-5, atol=2e-5):
        raise AssertionError("Pallas kernel output does not match reference")

    print("KERNEL_OK")
</pallas_src>

<mosaic_0001>
module attributes {stable_mosaic.version = 11 : i64} {
  func.func @deep_hedging_kernel(%arg0: i32, %arg1: memref<10x8x128xf32, #tpu.memory_space<vmem>>, %arg2: memref<10x8x128xf32, #tpu.memory_space<vmem>>, %arg3: memref<8x128xf32, #tpu.memory_space<vmem>>, %arg4: memref<10x10xf32, #tpu.memory_space<smem>>, %arg5: memref<10x10xf32, #tpu.memory_space<smem>>, %arg6: memref<10x10xf32, #tpu.memory_space<smem>>, %arg7: memref<10xf32, #tpu.memory_space<smem>>, %arg8: memref<8x128xf32, #tpu.memory_space<vmem>>) attributes {dimension_semantics = [#tpu.dimension_semantics<parallel>], iteration_bounds = array<i64: 4>, scalar_prefetch = 0 : i64, scratch_operands = 0 : i64, tpu.core_type = #tpu.core_type<tc>, window_params = [{transform_indices = @transform_0, window_bounds = array<i64: 10, 8, 128>}, {transform_indices = @transform_1, window_bounds = array<i64: 10, 8, 128>}, {transform_indices = @transform_2, window_bounds = array<i64: 8, 128>}, {transform_indices = @transform_3, window_bounds = array<i64: 10, 10>}, {transform_indices = @transform_4, window_bounds = array<i64: 10, 10>}, {transform_indices = @transform_5, window_bounds = array<i64: 10, 10>}, {transform_indices = @transform_6, window_bounds = array<i64: 10>}, {transform_indices = @transform_7, window_bounds = array<i64: 8, 128>}]} {
    %c0 = arith.constant 0 : index
    %c0_0 = arith.constant 0 : index
    %0 = vector.load %arg3[%c0, %c0_0] : memref<8x128xf32, #tpu.memory_space<vmem>>, vector<8x128xf32>
    %c0_1 = arith.constant 0 : index
    %c0_2 = arith.constant 0 : index
    %c0_3 = arith.constant 0 : index
    %1 = vector.load %arg1[%c0_1, %c0_2, %c0_3] : memref<10x8x128xf32, #tpu.memory_space<vmem>>, vector<1x8x128xf32>
    %2 = vector.shape_cast %1 : vector<1x8x128xf32> to vector<8x128xf32>
    %cst = arith.constant 0.000000e+00 : f32
    %3 = vector.broadcast %cst : f32 to vector<8x128xf32>
    %c0_4 = arith.constant 0 : index
    %c0_5 = arith.constant 0 : index
    %4 = memref.load %arg4[%c0_4, %c0_5] : memref<10x10xf32, #tpu.memory_space<smem>>
    %5 = vector.broadcast %4 : f32 to vector<8x128xf32>
    %6 = arith.mulf %2, %5 : vector<8x128xf32>
    %c0_6 = arith.constant 0 : index
    %c0_7 = arith.constant 0 : index
    %7 = memref.load %arg5[%c0_6, %c0_7] : memref<10x10xf32, #tpu.memory_space<smem>>
    %8 = vector.broadcast %7 : f32 to vector<8x128xf32>
    %9 = arith.addf %6, %8 : vector<8x128xf32>
    %cst_8 = arith.constant 0.000000e+00 : f32
    %10 = vector.broadcast %cst_8 : f32 to vector<8x128xf32>
    %11 = arith.maximumf %9, %10 : vector<8x128xf32>
    %c0_9 = arith.constant 0 : index
    %c0_10 = arith.constant 0 : index
    %12 = memref.load %arg6[%c0_9, %c0_10] : memref<10x10xf32, #tpu.memory_space<smem>>
    %13 = vector.broadcast %12 : f32 to vector<8x128xf32>
    %14 = arith.mulf %11, %13 : vector<8x128xf32>
    %15 = arith.addf %3, %14 : vector<8x128xf32>
    %c0_11 = arith.constant 0 : index
    %c1 = arith.constant 1 : index
    %16 = memref.load %arg4[%c0_11, %c1] : memref<10x10xf32, #tpu.memory_space<smem>>
    %17 = vector.broadcast %16 : f32 to vector<8x128xf32>
    %18 = arith.mulf %2, %17 : vector<8x128xf32>
    %c0_12 = arith.constant 0 : index
    %c1_13 = arith.constant 1 : index
    %19 = memref.load %arg5[%c0_12, %c1_13] : memref<10x10xf32, #tpu.memory_space<smem>>
    %20 = vector.broadcast %19 : f32 to vector<8x128xf32>
    %21 = arith.addf %18, %20 : vector<8x128xf32>
    %cst_14 = arith.constant 0.000000e+00 : f32
    %22 = vector.broadcast %cst_14 : f32 to vector<8x128xf32>
    %23 = arith.maximumf %21, %22 : vector<8x128xf32>
    %c0_15 = arith.constant 0 : index
    %c1_16 = arith.constant 1 : index
    %24 = memref.load %arg6[%c0_15, %c1_16] : memref<10x10xf32, #tpu.memory_space<smem>>
    %25 = vector.broadcast %24 : f32 to vector<8x128xf32>
    %26 = arith.mulf %23, %25 : vector<8x128xf32>
    %27 = arith.addf %15, %26 : vector<8x128xf32>
    %c0_17 = arith.constant 0 : index
    %c2 = arith.constant 2 : index
    %28 = memref.load %arg4[%c0_17, %c2] : memref<10x10xf32, #tpu.memory_space<smem>>
    %29 = vector.broadcast %28 : f32 to vector<8x128xf32>
    %30 = arith.mulf %2, %29 : vector<8x128xf32>
    %c0_18 = arith.constant 0 : index
    %c2_19 = arith.constant 2 : index
    %31 = memref.load %arg5[%c0_18, %c2_19] : memref<10x10xf32, #tpu.memory_space<smem>>
    %32 = vector.broadcast %31 : f32 to vector<8x128xf32>
    %33 = arith.addf %30, %32 : vector<8x128xf32>
    %cst_20 = arith.constant 0.000000e+00 : f32
    %34 = vector.broadcast %cst_20 : f32 to vector<8x128xf32>
    %35 = arith.maximumf %33, %34 : vector<8x128xf32>
    %c0_21 = arith.constant 0 : index
    %c2_22 = arith.constant 2 : index
    %36 = memref.load %arg6[%c0_21, %c2_22] : memref<10x10xf32, #tpu.memory_space<smem>>
    %37 = vector.broadcast %36 : f32 to vector<8x128xf32>
    %38 = arith.mulf %35, %37 : vector<8x128xf32>
    %39 = arith.addf %27, %38 : vector<8x128xf32>
    %c0_23 = arith.constant 0 : index
    %c3 = arith.constant 3 : index
    %40 = memref.load %arg4[%c0_23, %c3] : memref<10x10xf32, #tpu.memory_space<smem>>
    %41 = vector.broadcast %40 : f32 to vector<8x128xf32>
    %42 = arith.mulf %2, %41 : vector<8x128xf32>
    %c0_24 = arith.constant 0 : index
    %c3_25 = arith.constant 3 : index
    %43 = memref.load %arg5[%c0_24, %c3_25] : memref<10x10xf32, #tpu.memory_space<smem>>
    %44 = vector.broadcast %43 : f32 to vector<8x128xf32>
    %45 = arith.addf %42, %44 : vector<8x128xf32>
    %cst_26 = arith.constant 0.000000e+00 : f32
    %46 = vector.broadcast %cst_26 : f32 to vector<8x128xf32>
    %47 = arith.maximumf %45, %46 : vector<8x128xf32>
    %c0_27 = arith.constant 0 : index
    %c3_28 = arith.constant 3 : index
    %48 = memref.load %arg6[%c0_27, %c3_28] : memref<10x10xf32, #tpu.memory_space<smem>>
    %49 = vector.broadcast %48 : f32 to vector<8x128xf32>
    %50 = arith.mulf %47, %49 : vector<8x128xf32>
    %51 = arith.addf %39, %50 : vector<8x128xf32>
    %c0_29 = arith.constant 0 : index
    %c4 = arith.constant 4 : index
    %52 = memref.load %arg4[%c0_29, %c4] : memref<10x10xf32, #tpu.memory_space<smem>>
    %53 = vector.broadcast %52 : f32 to vector<8x128xf32>
    %54 = arith.mulf %2, %53 : vector<8x128xf32>
    %c0_30 = arith.constant 0 : index
    %c4_31 = arith.constant 4 : index
    %55 = memref.load %arg5[%c0_30, %c4_31] : memref<10x10xf32, #tpu.memory_space<smem>>
    %56 = vector.broadcast %55 : f32 to vector<8x128xf32>
    %57 = arith.addf %54, %56 : vector<8x128xf32>
    %cst_32 = arith.constant 0.000000e+00 : f32
    %58 = vector.broadcast %cst_32 : f32 to vector<8x128xf32>
    %59 = arith.maximumf %57, %58 : vector<8x128xf32>
    %c0_33 = arith.constant 0 : index
    %c4_34 = arith.constant 4 : index
    %60 = memref.load %arg6[%c0_33, %c4_34] : memref<10x10xf32, #tpu.memory_space<smem>>
    %61 = vector.broadcast %60 : f32 to vector<8x128xf32>
    %62 = arith.mulf %59, %61 : vector<8x128xf32>
    %63 = arith.addf %51, %62 : vector<8x128xf32>
    %c0_35 = arith.constant 0 : index
    %c5 = arith.constant 5 : index
    %64 = memref.load %arg4[%c0_35, %c5] : memref<10x10xf32, #tpu.memory_space<smem>>
    %65 = vector.broadcast %64 : f32 to vector<8x128xf32>
    %66 = arith.mulf %2, %65 : vector<8x128xf32>
    %c0_36 = arith.constant 0 : index
    %c5_37 = arith.constant 5 : index
    %67 = memref.load %arg5[%c0_36, %c5_37] : memref<10x10xf32, #tpu.memory_space<smem>>
    %68 = vector.broadcast %67 : f32 to vector<8x128xf32>
    %69 = arith.addf %66, %68 : vector<8x128xf32>
    %cst_38 = arith.constant 0.000000e+00 : f32
    %70 = vector.broadcast %cst_38 : f32 to vector<8x128xf32>
    %71 = arith.maximumf %69, %70 : vector<8x128xf32>
    %c0_39 = arith.constant 0 : index
    %c5_40 = arith.constant 5 : index
    %72 = memref.load %arg6[%c0_39, %c5_40] : memref<10x10xf32, #tpu.memory_space<smem>>
    %73 = vector.broadcast %72 : f32 to vector<8x128xf32>
    %74 = arith.mulf %71, %73 : vector<8x128xf32>
    %75 = arith.addf %63, %74 : vector<8x128xf32>
    %c0_41 = arith.constant 0 : index
    %c6 = arith.constant 6 : index
    %76 = memref.load %arg4[%c0_41, %c6] : memref<10x10xf32, #tpu.memory_space<smem>>
    %77 = vector.broadcast %76 : f32 to vector<8x128xf32>
    %78 = arith.mulf %2, %77 : vector<8x128xf32>
    %c0_42 = arith.constant 0 : index
    %c6_43 = arith.constant 6 : index
    %79 = memref.load %arg5[%c0_42, %c6_43] : memref<10x10xf32, #tpu.memory_space<smem>>
    %80 = vector.broadcast %79 : f32 to vector<8x128xf32>
    %81 = arith.addf %78, %80 : vector<8x128xf32>
    %cst_44 = arith.constant 0.000000e+00 : f32
    %82 = vector.broadcast %cst_44 : f32 to vector<8x128xf32>
    %83 = arith.maximumf %81, %82 : vector<8x128xf32>
    %c0_45 = arith.constant 0 : index
    %c6_46 = arith.constant 6 : index
    %84 = memref.load %arg6[%c0_45, %c6_46] : memref<10x10xf32, #tpu.memory_space<smem>>
    %85 = vector.broadcast %84 : f32 to vector<8x128xf32>
    %86 = arith.mulf %83, %85 : vector<8x128xf32>
    %87 = arith.addf %75, %86 : vector<8x128xf32>
    %c0_47 = arith.constant 0 : index
    %c7 = arith.constant 7 : index
    %88 = memref.load %arg4[%c0_47, %c7] : memref<10x10xf32, #tpu.memory_space<smem>>
    %89 = vector.broadcast %88 : f32 to vector<8x128xf32>
    %90 = arith.mulf %2, %89 : vector<8x128xf32>
    %c0_48 = arith.constant 0 : index
    %c7_49 = arith.constant 7 : index
    %91 = memref.load %arg5[%c0_48, %c7_49] : memref<10x10xf32, #tpu.memory_space<smem>>
    %92 = vector.broadcast %91 : f32 to vector<8x128xf32>
    %93 = arith.addf %90, %92 : vector<8x128xf32>
    %cst_50 = arith.constant 0.000000e+00 : f32
    %94 = vector.broadcast %cst_50 : f32 to vector<8x128xf32>
    %95 = arith.maximumf %93, %94 : vector<8x128xf32>
    %c0_51 = arith.constant 0 : index
    %c7_52 = arith.constant 7 : index
    %96 = memref.load %arg6[%c0_51, %c7_52] : memref<10x10xf32, #tpu.memory_space<smem>>
    %97 = vector.broadcast %96 : f32 to vector<8x128xf32>
    %98 = arith.mulf %95, %97 : vector<8x128xf32>
    %99 = arith.addf %87, %98 : vector<8x128xf32>
    %c0_53 = arith.constant 0 : index
    %c8 = arith.constant 8 : index
    %100 = memref.load %arg4[%c0_53, %c8] : memref<10x10xf32, #tpu.memory_space<smem>>
    %101 = vector.broadcast %100 : f32 to vector<8x128xf32>
    %102 = arith.mulf %2, %101 : vector<8x128xf32>
    %c0_54 = arith.constant 0 : index
    %c8_55 = arith.constant 8 : index
    %103 = memref.load %arg5[%c0_54, %c8_55] : memref<10x10xf32, #tpu.memory_space<smem>>
    %104 = vector.broadcast %103 : f32 to vector<8x128xf32>
    %105 = arith.addf %102, %104 : vector<8x128xf32>
    %cst_56 = arith.constant 0.000000e+00 : f32
    %106 = vector.broadcast %cst_56 : f32 to vector<8x128xf32>
    %107 = arith.maximumf %105, %106 : vector<8x128xf32>
    %c0_57 = arith.constant 0 : index
    %c8_58 = arith.constant 8 : index
    %108 = memref.load %arg6[%c0_57, %c8_58] : memref<10x10xf32, #tpu.memory_space<smem>>
    %109 = vector.broadcast %108 : f32 to vector<8x128xf32>
    %110 = arith.mulf %107, %109 : vector<8x128xf32>
    %111 = arith.addf %99, %110 : vector<8x128xf32>
    %c0_59 = arith.constant 0 : index
    %c9 = arith.constant 9 : index
    %112 = memref.load %arg4[%c0_59, %c9] : memref<10x10xf32, #tpu.memory_space<smem>>
    %113 = vector.broadcast %112 : f32 to vector<8x128xf32>
    %114 = arith.mulf %2, %113 : vector<8x128xf32>
    %c0_60 = arith.constant 0 : index
    %c9_61 = arith.constant 9 : index
    %115 = memref.load %arg5[%c0_60, %c9_61] : memref<10x10xf32, #tpu.memory_space<smem>>
    %116 = vector.broadcast %115 : f32 to vector<8x128xf32>
    %117 = arith.addf %114, %116 : vector<8x128xf32>
    %cst_62 = arith.constant 0.000000e+00 : f32
    %118 = vector.broadcast %cst_62 : f32 to vector<8x128xf32>
    %119 = arith.maximumf %117, %118 : vector<8x128xf32>
    %c0_63 = arith.constant 0 : index
    %c9_64 = arith.constant 9 : index
    %120 = memref.load %arg6[%c0_63, %c9_64] : memref<10x10xf32, #tpu.memory_space<smem>>
    %121 = vector.broadcast %120 : f32 to vector<8x128xf32>
    %122 = arith.mulf %119, %121 : vector<8x128xf32>
    %123 = arith.addf %111, %122 : vector<8x128xf32>
    %c0_65 = arith.constant 0 : index
    %124 = memref.load %arg7[%c0_65] : memref<10xf32, #tpu.memory_space<smem>>
    %125 = vector.broadcast %124 : f32 to vector<8x128xf32>
    %126 = arith.addf %123, %125 : vector<8x128xf32>
    %c0_66 = arith.constant 0 : index
    %c0_67 = arith.constant 0 : index
    %c0_68 = arith.constant 0 : index
    %127 = vector.load %arg2[%c0_66, %c0_67, %c0_68] : memref<10x8x128xf32, #tpu.memory_space<vmem>>, vector<1x8x128xf32>
    %128 = vector.shape_cast %127 : vector<1x8x128xf32> to vector<8x128xf32>
    %129 = arith.mulf %126, %128 : vector<8x128xf32>
    %130 = arith.addf %0, %129 : vector<8x128xf32>
    %c1_69 = arith.constant 1 : index
    %c0_70 = arith.constant 0 : index
    %c0_71 = arith.constant 0 : index
    %131 = vector.load %arg1[%c1_69, %c0_70, %c0_71] : memref<10x8x128xf32, #tpu.memory_space<vmem>>, vector<1x8x128xf32>
    %132 = vector.shape_cast %131 : vector<1x8x128xf32> to vector<8x128xf32>
    %cst_72 = arith.constant 0.000000e+00 : f32
    %133 = vector.broadcast %cst_72 : f32 to vector<8x128xf32>
    %c1_73 = arith.constant 1 : index
    %c0_74 = arith.constant 0 : index
    %134 = memref.load %arg4[%c1_73, %c0_74] : memref<10x10xf32, #tpu.memory_space<smem>>
    %135 = vector.broadcast %134 : f32 to vector<8x128xf32>
    %136 = arith.mulf %132, %135 : vector<8x128xf32>
    %c1_75 = arith.constant 1 : index
    %c0_76 = arith.constant 0 : index
    %137 = memref.load %arg5[%c1_75, %c0_76] : memref<10x10xf32, #tpu.memory_space<smem>>
    %138 = vector.broadcast %137 : f32 to vector<8x128xf32>
    %139 = arith.addf %136, %138 : vector<8x128xf32>
    %cst_77 = arith.constant 0.000000e+00 : f32
    %140 = vector.broadcast %cst_77 : f32 to vector<8x128xf32>
    %141 = arith.maximumf %139, %140 : vector<8x128xf32>
    %c1_78 = arith.constant 1 : index
    %c0_79 = arith.constant 0 : index
    %142 = memref.load %arg6[%c1_78, %c0_79] : memref<10x10xf32, #tpu.memory_space<smem>>
    %143 = vector.broadcast %142 : f32 to vector<8x128xf32>
    %144 = arith.mulf %141, %143 : vector<8x128xf32>
    %145 = arith.addf %133, %144 : vector<8x128xf32>
    %c1_80 = arith.constant 1 : index
    %c1_81 = arith.constant 1 : index
    %146 = memref.load %arg4[%c1_80, %c1_81] : memref<10x10xf32, #tpu.memory_space<smem>>
    %147 = vector.broadcast %146 : f32 to vector<8x128xf32>
    %148 = arith.mulf %132, %147 : vector<8x128xf32>
    %c1_82 = arith.constant 1 : index
    %c1_83 = arith.constant 1 : index
    %149 = memref.load %arg5[%c1_82, %c1_83] : memref<10x10xf32, #tpu.memory_space<smem>>
    %150 = vector.broadcast %149 : f32 to vector<8x128xf32>
    %151 = arith.addf %148, %150 : vector<8x128xf32>
    %cst_84 = arith.constant 0.000000e+00 : f32
    %152 = vector.broadcast %cst_84 : f32 to vector<8x128xf32>
    %153 = arith.maximumf %151, %152 : vector<8x128xf32>
    %c1_85 = arith.constant 1 : index
    %c1_86 = arith.constant 1 : index
    %154 = memref.load %arg6[%c1_85, %c1_86] : memref<10x10xf32, #tpu.memory_space<smem>>
    %155 = vector.broadcast %154 : f32 to vector<8x128xf32>
    %156 = arith.mulf %153, %155 : vector<8x128xf32>
    %157 = arith.addf %145, %156 : vector<8x128xf32>
    %c1_87 = arith.constant 1 : index
    %c2_88 = arith.constant 2 : index
    %158 = memref.load %arg4[%c1_87, %c2_88] : memref<10x10xf32, #tpu.memory_space<smem>>
    %159 = vector.broadcast %158 : f32 to vector<8x128xf32>
    %160 = arith.mulf %132, %159 : vector<8x128xf32>
    %c1_89 = arith.constant 1 : index
    %c2_90 = arith.constant 2 : index
    %161 = memref.load %arg5[%c1_89, %c2_90] : memref<10x10xf32, #tpu.memory_space<smem>>
    %162 = vector.broadcast %161 : f32 to vector<8x128xf32>
    %163 = arith.addf %160, %162 : vector<8x128xf32>
    %cst_91 = arith.constant 0.000000e+00 : f32
    %164 = vector.broadcast %cst_91 : f32 to vector<8x128xf32>
    %165 = arith.maximumf %163, %164 : vector<8x128xf32>
    %c1_92 = arith.constant 1 : index
    %c2_93 = arith.constant 2 : index
    %166 = memref.load %arg6[%c1_92, %c2_93] : memref<10x10xf32, #tpu.memory_space<smem>>
    %167 = vector.broadcast %166 : f32 to vector<8x128xf32>
    %168 = arith.mulf %165, %167 : vector<8x128xf32>
    %169 = arith.addf %157, %168 : vector<8x128xf32>
    %c1_94 = arith.constant 1 : index
    %c3_95 = arith.constant 3 : index
    %170 = memref.load %arg4[%c1_94, %c3_95] : memref<10x10xf32, #tpu.memory_space<smem>>
    %171 = vector.broadcast %170 : f32 to vector<8x128xf32>
    %172 = arith.mulf %132, %171 : vector<8x128xf32>
    %c1_96 = arith.constant 1 : index
    %c3_97 = arith.constant 3 : index
    %173 = memref.load %arg5[%c1_96, %c3_97] : memref<10x10xf32, #tpu.memory_space<smem>>
    %174 = vector.broadcast %173 : f32 to vector<8x128xf32>
    %175 = arith.addf %172, %174 : vector<8x128xf32>
    %cst_98 = arith.constant 0.000000e+00 : f32
    %176 = vector.broadcast %cst_98 : f32 to vector<8x128xf32>
    %177 = arith.maximumf %175, %176 : vector<8x128xf32>
    %c1_99 = arith.constant 1 : index
    %c3_100 = arith.constant 3 : index
    %178 = memref.load %arg6[%c1_99, %c3_100] : memref<10x10xf32, #tpu.memory_space<smem>>
    %179 = vector.broadcast %178 : f32 to vector<8x128xf32>
    %180 = arith.mulf %177, %179 : vector<8x128xf32>
    %181 = arith.addf %169, %180 : vector<8x128xf32>
    %c1_101 = arith.constant 1 : index
    %c4_102 = arith.constant 4 : index
    %182 = memref.load %arg4[%c1_101, %c4_102] : memref<10x10xf32, #tpu.memory_space<smem>>
    %183 = vector.broadcast %182 : f32 to vector<8x128xf32>
    %184 = arith.mulf %132, %183 : vector<8x128xf32>
    %c1_103 = arith.constant 1 : index
    %c4_104 = arith.constant 4 : index
    %185 = memref.load %arg5[%c1_103, %c4_104] : memref<10x10xf32, #tpu.memory_space<smem>>
    %186 = vector.broadcast %185 : f32 to vector<8x128xf32>
    %187 = arith.addf %184, %186 : vector<8x128xf32>
    %cst_105 = arith.constant 0.000000e+00 : f32
    %188 = vector.broadcast %cst_105 : f32 to vector<8x128xf32>
    %189 = arith.maximumf %187, %188 : vector<8x128xf32>
    %c1_106 = arith.constant 1 : index
    %c4_107 = arith.constant 4 : index
    %190 = memref.load %arg6[%c1_106, %c4_107] : memref<10x10xf32, #tpu.memory_space<smem>>
    %191 = vector.broadcast %190 : f32 to vector<8x128xf32>
    %192 = arith.mulf %189, %191 : vector<8x128xf32>
    %193 = arith.addf %181, %192 : vector<8x128xf32>
    %c1_108 = arith.constant 1 : index
    %c5_109 = arith.constant 5 : index
    %194 = memref.load %arg4[%c1_108, %c5_109] : memref<10x10xf32, #tpu.memory_space<smem>>
    %195 = vector.broadcast %194 : f32 to vector<8x128xf32>
    %196 = arith.mulf %132, %195 : vector<8x128xf32>
    %c1_110 = arith.constant 1 : index
    %c5_111 = arith.constant 5 : index
    %197 = memref.load %arg5[%c1_110, %c5_111] : memref<10x10xf32, #tpu.memory_space<smem>>
    %198 = vector.broadcast %197 : f32 to vector<8x128xf32>
    %199 = arith.addf %196, %198 : vector<8x128xf32>
    %cst_112 = arith.constant 0.000000e+00 : f32
    %200 = vector.broadcast %cst_112 : f32 to vector<8x128xf32>
    %201 = arith.maximumf %199, %200 : vector<8x128xf32>
    %c1_113 = arith.constant 1 : index
    %c5_114 = arith.constant 5 : index
    %202 = memref.load %arg6[%c1_113, %c5_114] : memref<10x10xf32, #tpu.memory_space<smem>>
    %203 = vector.broadcast %202 : f32 to vector<8x128xf32>
    %204 = arith.mulf %201, %203 : vector<8x128xf32>
    %205 = arith.addf %193, %204 : vector<8x128xf32>
    %c1_115 = arith.constant 1 : index
    %c6_116 = arith.constant 6 : index
    %206 = memref.load %arg4[%c1_115, %c6_116] : memref<10x10xf32, #tpu.memory_space<smem>>
    %207 = vector.broadcast %206 : f32 to vector<8x128xf32>
    %208 = arith.mulf %132, %207 : vector<8x128xf32>
    %c1_117 = arith.constant 1 : index
    %c6_118 = arith.constant 6 : index
    %209 = memref.load %arg5[%c1_117, %c6_118] : memref<10x10xf32, #tpu.memory_space<smem>>
    %210 = vector.broadcast %209 : f32 to vector<8x128xf32>
    %211 = arith.addf %208, %210 : vector<8x128xf32>
    %cst_119 = arith.constant 0.000000e+00 : f32
    %212 = vector.broadcast %cst_119 : f32 to vector<8x128xf32>
    %213 = arith.maximumf %211, %212 : vector<8x128xf32>
    %c1_120 = arith.constant 1 : index
    %c6_121 = arith.constant 6 : index
    %214 = memref.load %arg6[%c1_120, %c6_121] : memref<10x10xf32, #tpu.memory_space<smem>>
    %215 = vector.broadcast %214 : f32 to vector<8x128xf32>
    %216 = arith.mulf %213, %215 : vector<8x128xf32>
    %217 = arith.addf %205, %216 : vector<8x128xf32>
    %c1_122 = arith.constant 1 : index
    %c7_123 = arith.constant 7 : index
    %218 = memref.load %arg4[%c1_122, %c7_123] : memref<10x10xf32, #tpu.memory_space<smem>>
    %219 = vector.broadcast %218 : f32 to vector<8x128xf32>
    %220 = arith.mulf %132, %219 : vector<8x128xf32>
    %c1_124 = arith.constant 1 : index
    %c7_125 = arith.constant 7 : index
    %221 = memref.load %arg5[%c1_124, %c7_125] : memref<10x10xf32, #tpu.memory_space<smem>>
    %222 = vector.broadcast %221 : f32 to vector<8x128xf32>
    %223 = arith.addf %220, %222 : vector<8x128xf32>
    %cst_126 = arith.constant 0.000000e+00 : f32
    %224 = vector.broadcast %cst_126 : f32 to vector<8x128xf32>
    %225 = arith.maximumf %223, %224 : vector<8x128xf32>
    %c1_127 = arith.constant 1 : index
    %c7_128 = arith.constant 7 : index
    %226 = memref.load %arg6[%c1_127, %c7_128] : memref<10x10xf32, #tpu.memory_space<smem>>
    %227 = vector.broadcast %226 : f32 to vector<8x128xf32>
    %228 = arith.mulf %225, %227 : vector<8x128xf32>
    %229 = arith.addf %217, %228 : vector<8x128xf32>
    %c1_129 = arith.constant 1 : index
    %c8_130 = arith.constant 8 : index
    %230 = memref.load %arg4[%c1_129, %c8_130] : memref<10x10xf32, #tpu.memory_space<smem>>
    %231 = vector.broadcast %230 : f32 to vector<8x128xf32>
    %232 = arith.mulf %132, %231 : vector<8x128xf32>
    %c1_131 = arith.constant 1 : index
    %c8_132 = arith.constant 8 : index
    %233 = memref.load %arg5[%c1_131, %c8_132] : memref<10x10xf32, #tpu.memory_space<smem>>
    %234 = vector.broadcast %233 : f32 to vector<8x128xf32>
    %235 = arith.addf %232, %234 : vector<8x128xf32>
    %cst_133 = arith.constant 0.000000e+00 : f32
    %236 = vector.broadcast %cst_133 : f32 to vector<8x128xf32>
    %237 = arith.maximumf %235, %236 : vector<8x128xf32>
    %c1_134 = arith.constant 1 : index
    %c8_135 = arith.constant 8 : index
    %238 = memref.load %arg6[%c1_134, %c8_135] : memref<10x10xf32, #tpu.memory_space<smem>>
    %239 = vector.broadcast %238 : f32 to vector<8x128xf32>
    %240 = arith.mulf %237, %239 : vector<8x128xf32>
    %241 = arith.addf %229, %240 : vector<8x128xf32>
    %c1_136 = arith.constant 1 : index
    %c9_137 = arith.constant 9 : index
    %242 = memref.load %arg4[%c1_136, %c9_137] : memref<10x10xf32, #tpu.memory_space<smem>>
    %243 = vector.broadcast %242 : f32 to vector<8x128xf32>
    %244 = arith.mulf %132, %243 : vector<8x128xf32>
    %c1_138 = arith.constant 1 : index
    %c9_139 = arith.constant 9 : index
    %245 = memref.load %arg5[%c1_138, %c9_139] : memref<10x10xf32, #tpu.memory_space<smem>>
    %246 = vector.broadcast %245 : f32 to vector<8x128xf32>
    %247 = arith.addf %244, %246 : vector<8x128xf32>
    %cst_140 = arith.constant 0.000000e+00 : f32
    %248 = vector.broadcast %cst_140 : f32 to vector<8x128xf32>
    %249 = arith.maximumf %247, %248 : vector<8x128xf32>
    %c1_141 = arith.constant 1 : index
    %c9_142 = arith.constant 9 : index
    %250 = memref.load %arg6[%c1_141, %c9_142] : memref<10x10xf32, #tpu.memory_space<smem>>
    %251 = vector.broadcast %250 : f32 to vector<8x128xf32>
    %252 = arith.mulf %249, %251 : vector<8x128xf32>
    %253 = arith.addf %241, %252 : vector<8x128xf32>
    %c1_143 = arith.constant 1 : index
    %254 = memref.load %arg7[%c1_143] : memref<10xf32, #tpu.memory_space<smem>>
    %255 = vector.broadcast %254 : f32 to vector<8x128xf32>
    %256 = arith.addf %253, %255 : vector<8x128xf32>
    %c1_144 = arith.constant 1 : index
    %c0_145 = arith.constant 0 : index
    %c0_146 = arith.constant 0 : index
    %257 = vector.load %arg2[%c1_144, %c0_145, %c0_146] : memref<10x8x128xf32, #tpu.memory_space<vmem>>, vector<1x8x128xf32>
    %258 = vector.shape_cast %257 : vector<1x8x128xf32> to vector<8x128xf32>
    %259 = arith.mulf %256, %258 : vector<8x128xf32>
    %260 = arith.addf %130, %259 : vector<8x128xf32>
    %c2_147 = arith.constant 2 : index
    %c0_148 = arith.constant 0 : index
    %c0_149 = arith.constant 0 : index
    %261 = vector.load %arg1[%c2_147, %c0_148, %c0_149] : memref<10x8x128xf32, #tpu.memory_space<vmem>>, vector<1x8x128xf32>
    %262 = vector.shape_cast %261 : vector<1x8x128xf32> to vector<8x128xf32>
    %cst_150 = arith.constant 0.000000e+00 : f32
    %263 = vector.broadcast %cst_150 : f32 to vector<8x128xf32>
    %c2_151 = arith.constant 2 : index
    %c0_152 = arith.constant 0 : index
    %264 = memref.load %arg4[%c2_151, %c0_152] : memref<10x10xf32, #tpu.memory_space<smem>>
    %265 = vector.broadcast %264 : f32 to vector<8x128xf32>
    %266 = arith.mulf %262, %265 : vector<8x128xf32>
    %c2_153 = arith.constant 2 : index
    %c0_154 = arith.constant 0 : index
    %267 = memref.load %arg5[%c2_153, %c0_154] : memref<10x10xf32, #tpu.memory_space<smem>>
    %268 = vector.broadcast %267 : f32 to vector<8x128xf32>
    %269 = arith.addf %266, %268 : vector<8x128xf32>
    %cst_155 = arith.constant 0.000000e+00 : f32
    %270 = vector.broadcast %cst_155 : f32 to vector<8x128xf32>
    %271 = arith.maximumf %269, %270 : vector<8x128xf32>
    %c2_156 = arith.constant 2 : index
    %c0_157 = arith.constant 0 : index
    %272 = memref.load %arg6[%c2_156, %c0_157] : memref<10x10xf32, #tpu.memory_space<smem>>
    %273 = vector.broadcast %272 : f32 to vector<8x128xf32>
    %274 = arith.mulf %271, %273 : vector<8x128xf32>
    %275 = arith.addf %263, %274 : vector<8x128xf32>
    %c2_158 = arith.constant 2 : index
    %c1_159 = arith.constant 1 : index
    %276 = memref.load %arg4[%c2_158, %c1_159] : memref<10x10xf32, #tpu.memory_space<smem>>
    %277 = vector.broadcast %276 : f32 to vector<8x128xf32>
    %278 = arith.mulf %262, %277 : vector<8x128xf32>
    %c2_160 = arith.constant 2 : index
    %c1_161 = arith.constant 1 : index
    %279 = memref.load %arg5[%c2_160, %c1_161] : memref<10x10xf32, #tpu.memory_space<smem>>
    %280 = vector.broadcast %279 : f32 to vector<8x128xf32>
    %281 = arith.addf %278, %280 : vector<8x128xf32>
    %cst_162 = arith.constant 0.000000e+00 : f32
    %282 = vector.broadcast %cst_162 : f32 to vector<8x128xf32>
    %283 = arith.maximumf %281, %282 : vector<8x128xf32>
    %c2_163 = arith.constant 2 : index
    %c1_164 = arith.constant 1 : index
    %284 = memref.load %arg6[%c2_163, %c1_164] : memref<10x10xf32, #tpu.memory_space<smem>>
    %285 = vector.broadcast %284 : f32 to vector<8x128xf32>
    %286 = arith.mulf %283, %285 : vector<8x128xf32>
    %287 = arith.addf %275, %286 : vector<8x128xf32>
    %c2_165 = arith.constant 2 : index
    %c2_166 = arith.constant 2 : index
    %288 = memref.load %arg4[%c2_165, %c2_166] : memref<10x10xf32, #tpu.memory_space<smem>>
    %289 = vector.broadcast %288 : f32 to vector<8x128xf32>
    %290 = arith.mulf %262, %289 : vector<8x128xf32>
    %c2_167 = arith.constant 2 : index
    %c2_168 = arith.constant 2 : index
    %291 = memref.load %arg5[%c2_167, %c2_168] : memref<10x10xf32, #tpu.memory_space<smem>>
    %292 = vector.broadcast %291 : f32 to vector<8x128xf32>
    %293 = arith.addf %290, %292 : vector<8x128xf32>
    %cst_169 = arith.constant 0.000000e+00 : f32
    %294 = vector.broadcast %cst_169 : f32 to vector<8x128xf32>
    %295 = arith.maximumf %293, %294 : vector<8x128xf32>
    %c2_170 = arith.constant 2 : index
    %c2_171 = arith.constant 2 : index
    %296 = memref.load %arg6[%c2_170, %c2_171] : memref<10x10xf32, #tpu.memory_space<smem>>
    %297 = vector.broadcast %296 : f32 to vector<8x128xf32>
    %298 = arith.mulf %295, %297 : vector<8x128xf32>
    %299 = arith.addf %287, %298 : vector<8x128xf32>
    %c2_172 = arith.constant 2 : index
    %c3_173 = arith.constant 3 : index
    %300 = memref.load %arg4[%c2_172, %c3_173] : memref<10x10xf32, #tpu.memory_space<smem>>
    %301 = vector.broadcast %300 : f32 to vector<8x128xf32>
    %302 = arith.mulf %262, %301 : vector<8x128xf32>
    %c2_174 = arith.constant 2 : index
    %c3_175 = arith.constant 3 : index
    %303 = memref.load %arg5[%c2_174, %c3_175] : memref<10x10xf32, #tpu.memory_space<smem>>
    %304 = vector.broadcast %303 : f32 to vector<8x128xf32>
    %305 = arith.addf %302, %304 : vector<8x128xf32>
    %cst_176 = arith.constant 0.000000e+00 : f32
    %306 = vector.broadcast %cst_176 : f32 to vector<8x128xf32>
    %307 = arith.maximumf %305, %306 : vector<8x128xf32>
    %c2_177 = arith.constant 2 : index
    %c3_178 = arith.constant 3 : index
    %308 = memref.load %arg6[%c2_177, %c3_178] : memref<10x10xf32, #tpu.memory_space<smem>>
    %309 = vector.broadcast %308 : f32 to vector<8x128xf32>
    %310 = arith.mulf %307, %309 : vector<8x128xf32>
    %311 = arith.addf %299, %310 : vector<8x128xf32>
    %c2_179 = arith.constant 2 : index
    %c4_180 = arith.constant 4 : index
    %312 = memref.load %arg4[%c2_179, %c4_180] : memref<10x10xf32, #tpu.memory_space<smem>>
    %313 = vector.broadcast %312 : f32 to vector<8x128xf32>
    %314 = arith.mulf %262, %313 : vector<8x128xf32>
    %c2_181 = arith.constant 2 : index
    %c4_182 = arith.constant 4 : index
    %315 = memref.load %arg5[%c2_181, %c4_182] : memref<10x10xf32, #tpu.memory_space<smem>>
    %316 = vector.broadcast %315 : f32 to vector<8x128xf32>
    %317 = arith.addf %314, %316 : vector<8x128xf32>
    %cst_183 = arith.constant 0.000000e+00 : f32
    %318 = vector.broadcast %cst_183 : f32 to vector<8x128xf32>
    %319 = arith.maximumf %317, %318 : vector<8x128xf32>
    %c2_184 = arith.constant 2 : index
    %c4_185 = arith.constant 4 : index
    %320 = memref.load %arg6[%c2_184, %c4_185] : memref<10x10xf32, #tpu.memory_space<smem>>
    %321 = vector.broadcast %320 : f32 to vector<8x128xf32>
    %322 = arith.mulf %319, %321 : vector<8x128xf32>
    %323 = arith.addf %311, %322 : vector<8x128xf32>
    %c2_186 = arith.constant 2 : index
    %c5_187 = arith.constant 5 : index
    %324 = memref.load %arg4[%c2_186, %c5_187] : memref<10x10xf32, #tpu.memory_space<smem>>
    %325 = vector.broadcast %324 : f32 to vector<8x128xf32>
    %326 = arith.mulf %262, %325 : vector<8x128xf32>
    %c2_188 = arith.constant 2 : index
    %c5_189 = arith.constant 5 : index
    %327 = memref.load %arg5[%c2_188, %c5_189] : memref<10x10xf32, #tpu.memory_space<smem>>
    %328 = vector.broadcast %327 : f32 to vector<8x128xf32>
    %329 = arith.addf %326, %328 : vector<8x128xf32>
    %cst_190 = arith.constant 0.000000e+00 : f32
    %330 = vector.broadcast %cst_190 : f32 to vector<8x128xf32>
    %331 = arith.maximumf %329, %330 : vector<8x128xf32>
    %c2_191 = arith.constant 2 : index
    %c5_192 = arith.constant 5 : index
    %332 = memref.load %arg6[%c2_191, %c5_192] : memref<10x10xf32, #tpu.memory_space<smem>>
    %333 = vector.broadcast %332 : f32 to vector<8x128xf32>
    %334 = arith.mulf %331, %333 : vector<8x128xf32>
    %335 = arith.addf %323, %334 : vector<8x128xf32>
    %c2_193 = arith.constant 2 : index
    %c6_194 = arith.constant 6 : index
    %336 = memref.load %arg4[%c2_193, %c6_194] : memref<10x10xf32, #tpu.memory_space<smem>>
    %337 = vector.broadcast %336 : f32 to vector<8x128xf32>
    %338 = arith.mulf %262, %337 : vector<8x128xf32>
    %c2_195 = arith.constant 2 : index
    %c6_196 = arith.constant 6 : index
    %339 = memref.load %arg5[%c2_195, %c6_196] : memref<10x10xf32, #tpu.memory_space<smem>>
    %340 = vector.broadcast %339 : f32 to vector<8x128xf32>
    %341 = arith.addf %338, %340 : vector<8x128xf32>
    %cst_197 = arith.constant 0.000000e+00 : f32
    %342 = vector.broadcast %cst_197 : f32 to vector<8x128xf32>
    %343 = arith.maximumf %341, %342 : vector<8x128xf32>
    %c2_198 = arith.constant 2 : index
    %c6_199 = arith.constant 6 : index
    %344 = memref.load %arg6[%c2_198, %c6_199] : memref<10x10xf32, #tpu.memory_space<smem>>
    %345 = vector.broadcast %344 : f32 to vector<8x128xf32>
    %346 = arith.mulf %343, %345 : vector<8x128xf32>
    %347 = arith.addf %335, %346 : vector<8x128xf32>
    %c2_200 = arith.constant 2 : index
    %c7_201 = arith.constant 7 : index
    %348 = memref.load %arg4[%c2_200, %c7_201] : memref<10x10xf32, #tpu.memory_space<smem>>
    %349 = vector.broadcast %348 : f32 to vector<8x128xf32>
    %350 = arith.mulf %262, %349 : vector<8x128xf32>
    %c2_202 = arith.constant 2 : index
    %c7_203 = arith.constant 7 : index
    %351 = memref.load %arg5[%c2_202, %c7_203] : memref<10x10xf32, #tpu.memory_space<smem>>
    %352 = vector.broadcast %351 : f32 to vector<8x128xf32>
    %353 = arith.addf %350, %352 : vector<8x128xf32>
    %cst_204 = arith.constant 0.000000e+00 : f32
    %354 = vector.broadcast %cst_204 : f32 to vector<8x128xf32>
    %355 = arith.maximumf %353, %354 : vector<8x128xf32>
    %c2_205 = arith.constant 2 : index
    %c7_206 = arith.constant 7 : index
    %356 = memref.load %arg6[%c2_205, %c7_206] : memref<10x10xf32, #tpu.memory_space<smem>>
    %357 = vector.broadcast %356 : f32 to vector<8x128xf32>
    %358 = arith.mulf %355, %357 : vector<8x128xf32>
    %359 = arith.addf %347, %358 : vector<8x128xf32>
    %c2_207 = arith.constant 2 : index
    %c8_208 = arith.constant 8 : index
    %360 = memref.load %arg4[%c2_207, %c8_208] : memref<10x10xf32, #tpu.memory_space<smem>>
    %361 = vector.broadcast %360 : f32 to vector<8x128xf32>
    %362 = arith.mulf %262, %361 : vector<8x128xf32>
    %c2_209 = arith.constant 2 : index
    %c8_210 = arith.constant 8 : index
    %363 = memref.load %arg5[%c2_209, %c8_210] : memref<10x10xf32, #tpu.memory_space<smem>>
    %364 = vector.broadcast %363 : f32 to vector<8x128xf32>
    %365 = arith.addf %362, %364 : vector<8x128xf32>
    %cst_211 = arith.constant 0.000000e+00 : f32
    %366 = vector.broadcast %cst_211 : f32 to vector<8x128xf32>
    %367 = arith.maximumf %365, %366 : vector<8x128xf32>
    %c2_212 = arith.constant 2 : index
    %c8_213 = arith.constant 8 : index
    %368 = memref.load %arg6[%c2_212, %c8_213] : memref<10x10xf32, #tpu.memory_space<smem>>
    %369 = vector.broadcast %368 : f32 to vector<8x128xf32>
    %370 = arith.mulf %367, %369 : vector<8x128xf32>
    %371 = arith.addf %359, %370 : vector<8x128xf32>
    %c2_214 = arith.constant 2 : index
    %c9_215 = arith.constant 9 : index
    %372 = memref.load %arg4[%c2_214, %c9_215] : memref<10x10xf32, #tpu.memory_space<smem>>
    %373 = vector.broadcast %372 : f32 to vector<8x128xf32>
    %374 = arith.mulf %262, %373 : vector<8x128xf32>
    %c2_216 = arith.constant 2 : index
    %c9_217 = arith.constant 9 : index
    %375 = memref.load %arg5[%c2_216, %c9_217] : memref<10x10xf32, #tpu.memory_space<smem>>
    %376 = vector.broadcast %375 : f32 to vector<8x128xf32>
    %377 = arith.addf %374, %376 : vector<8x128xf32>
    %cst_218 = arith.constant 0.000000e+00 : f32
    %378 = vector.broadcast %cst_218 : f32 to vector<8x128xf32>
    %379 = arith.maximumf %377, %378 : vector<8x128xf32>
    %c2_219 = arith.constant 2 : index
    %c9_220 = arith.constant 9 : index
    %380 = memref.load %arg6[%c2_219, %c9_220] : memref<10x10xf32, #tpu.memory_space<smem>>
    %381 = vector.broadcast %380 : f32 to vector<8x128xf32>
    %382 = arith.mulf %379, %381 : vector<8x128xf32>
    %383 = arith.addf %371, %382 : vector<8x128xf32>
    %c2_221 = arith.constant 2 : index
    %384 = memref.load %arg7[%c2_221] : memref<10xf32, #tpu.memory_space<smem>>
    %385 = vector.broadcast %384 : f32 to vector<8x128xf32>
    %386 = arith.addf %383, %385 : vector<8x128xf32>
    %c2_222 = arith.constant 2 : index
    %c0_223 = arith.constant 0 : index
    %c0_224 = arith.constant 0 : index
    %387 = vector.load %arg2[%c2_222, %c0_223, %c0_224] : memref<10x8x128xf32, #tpu.memory_space<vmem>>, vector<1x8x128xf32>
    %388 = vector.shape_cast %387 : vector<1x8x128xf32> to vector<8x128xf32>
    %389 = arith.mulf %386, %388 : vector<8x128xf32>
    %390 = arith.addf %260, %389 : vector<8x128xf32>
    %c3_225 = arith.constant 3 : index
    %c0_226 = arith.constant 0 : index
    %c0_227 = arith.constant 0 : index
    %391 = vector.load %arg1[%c3_225, %c0_226, %c0_227] : memref<10x8x128xf32, #tpu.memory_space<vmem>>, vector<1x8x128xf32>
    %392 = vector.shape_cast %391 : vector<1x8x128xf32> to vector<8x128xf32>
    %cst_228 = arith.constant 0.000000e+00 : f32
    %393 = vector.broadcast %cst_228 : f32 to vector<8x128xf32>
    %c3_229 = arith.constant 3 : index
    %c0_230 = arith.constant 0 : index
    %394 = memref.load %arg4[%c3_229, %c0_230] : memref<10x10xf32, #tpu.memory_space<smem>>
    %395 = vector.broadcast %394 : f32 to vector<8x128xf32>
    %396 = arith.mulf %392, %395 : vector<8x128xf32>
    %c3_231 = arith.constant 3 : index
    %c0_232 = arith.constant 0 : index
    %397 = memref.load %arg5[%c3_231, %c0_232] : memref<10x10xf32, #tpu.memory_space<smem>>
    %398 = vector.broadcast %397 : f32 to vector<8x128xf32>
    %399 = arith.addf %396, %398 : vector<8x128xf32>
    %cst_233 = arith.constant 0.000000e+00 : f32
    %400 = vector.broadcast %cst_233 : f32 to vector<8x128xf32>
    %401 = arith.maximumf %399, %400 : vector<8x128xf32>
    %c3_234 = arith.constant 3 : index
    %c0_235 = arith.constant 0 : index
    %402 = memref.load %arg6[%c3_234, %c0_235] : memref<10x10xf32, #tpu.memory_space<smem>>
    %403 = vector.broadcast %402 : f32 to vector<8x128xf32>
    %404 = arith.mulf %401, %403 : vector<8x128xf32>
    %405 = arith.addf %393, %404 : vector<8x128xf32>
    %c3_236 = arith.constant 3 : index
    %c1_237 = arith.constant 1 : index
    %406 = memref.load %arg4[%c3_236, %c1_237] : memref<10x10xf32, #tpu.memory_space<smem>>
    %407 = vector.broadcast %406 : f32 to vector<8x128xf32>
    %408 = arith.mulf %392, %407 : vector<8x128xf32>
    %c3_238 = arith.constant 3 : index
    %c1_239 = arith.constant 1 : index
    %409 = memref.load %arg5[%c3_238, %c1_239] : memref<10x10xf32, #tpu.memory_space<smem>>
    %410 = vector.broadcast %409 : f32 to vector<8x128xf32>
    %411 = arith.addf %408, %410 : vector<8x128xf32>
    %cst_240 = arith.constant 0.000000e+00 : f32
    %412 = vector.broadcast %cst_240 : f32 to vector<8x128xf32>
    %413 = arith.maximumf %411, %412 : vector<8x128xf32>
    %c3_241 = arith.constant 3 : index
    %c1_242 = arith.constant 1 : index
    %414 = memref.load %arg6[%c3_241, %c1_242] : memref<10x10xf32, #tpu.memory_space<smem>>
    %415 = vector.broadcast %414 : f32 to vector<8x128xf32>
    %416 = arith.mulf %413, %415 : vector<8x128xf32>
    %417 = arith.addf %405, %416 : vector<8x128xf32>
    %c3_243 = arith.constant 3 : index
    %c2_244 = arith.constant 2 : index
    %418 = memref.load %arg4[%c3_243, %c2_244] : memref<10x10xf32, #tpu.memory_space<smem>>
    %419 = vector.broadcast %418 : f32 to vector<8x128xf32>
    %420 = arith.mulf %392, %419 : vector<8x128xf32>
    %c3_245 = arith.constant 3 : index
    %c2_246 = arith.constant 2 : index
    %421 = memref.load %arg5[%c3_245, %c2_246] : memref<10x10xf32, #tpu.memory_space<smem>>
    %422 = vector.broadcast %421 : f32 to vector<8x128xf32>
    %423 = arith.addf %420, %422 : vector<8x128xf32>
    %cst_247 = arith.constant 0.000000e+00 : f32
    %424 = vector.broadcast %cst_247 : f32 to vector<8x128xf32>
    %425 = arith.maximumf %423, %424 : vector<8x128xf32>
    %c3_248 = arith.constant 3 : index
    %c2_249 = arith.constant 2 : index
    %426 = memref.load %arg6[%c3_248, %c2_249] : memref<10x10xf32, #tpu.memory_space<smem>>
    %427 = vector.broadcast %426 : f32 to vector<8x128xf32>
    %428 = arith.mulf %425, %427 : vector<8x128xf32>
    %429 = arith.addf %417, %428 : vector<8x128xf32>
    %c3_250 = arith.constant 3 : index
    %c3_251 = arith.constant 3 : index
    %430 = memref.load %arg4[%c3_250, %c3_251] : memref<10x10xf32, #tpu.memory_space<smem>>
    %431 = vector.broadcast %430 : f32 to vector<8x128xf32>
    %432 = arith.mulf %392, %431 : vector<8x128xf32>
    %c3_252 = arith.constant 3 : index
    %c3_253 = arith.constant 3 : index
    %433 = memref.load %arg5[%c3_252, %c3_253] : memref<10x10xf32, #tpu.memory_space<smem>>
    %434 = vector.broadcast %433 : f32 to vector<8x128xf32>
    %435 = arith.addf %432, %434 : vector<8x128xf32>
    %cst_254 = arith.constant 0.000000e+00 : f32
    %436 = vector.broadcast %cst_254 : f32 to vector<8x128xf32>
    %437 = arith.maximumf %435, %436 : vector<8x128xf32>
    %c3_255 = arith.constant 3 : index
    %c3_256 = arith.constant 3 : index
    %438 = memref.load %arg6[%c3_255, %c3_256] : memref<10x10xf32, #tpu.memory_space<smem>>
    %439 = vector.broadcast %438 : f32 to vector<8x128xf32>
    %440 = arith.mulf %437, %439 : vector<8x128xf32>
    %441 = arith.addf %429, %440 : vector<8x128xf32>
    %c3_257 = arith.constant 3 : index
    %c4_258 = arith.constant 4 : index
    %442 = memref.load %arg4[%c3_257, %c4_258] : memref<10x10xf32, #tpu.memory_space<smem>>
    %443 = vector.broadcast %442 : f32 to vector<8x128xf32>
    %444 = arith.mulf %392, %443 : vector<8x128xf32>
    %c3_259 = arith.constant 3 : index
    %c4_260 = arith.constant 4 : index
    %445 = memref.load %arg5[%c3_259, %c4_260] : memref<10x10xf32, #tpu.memory_space<smem>>
    %446 = vector.broadcast %445 : f32 to vector<8x128xf32>
    %447 = arith.addf %444, %446 : vector<8x128xf32>
    %cst_261 = arith.constant 0.000000e+00 : f32
    %448 = vector.broadcast %cst_261 : f32 to vector<8x128xf32>
    %449 = arith.maximumf %447, %448 : vector<8x128xf32>
    %c3_262 = arith.constant 3 : index
    %c4_263 = arith.constant 4 : index
    %450 = memref.load %arg6[%c3_262, %c4_263] : memref<10x10xf32, #tpu.memory_space<smem>>
    %451 = vector.broadcast %450 : f32 to vector<8x128xf32>
    %452 = arith.mulf %449, %451 : vector<8x128xf32>
    %453 = arith.addf %441, %452 : vector<8x128xf32>
    %c3_264 = arith.constant 3 : index
    %c5_265 = arith.constant 5 : index
    %454 = memref.load %arg4[%c3_264, %c5_265] : memref<10x10xf32, #tpu.memory_space<smem>>
    %455 = vector.broadcast %454 : f32 to vector<8x128xf32>
    %456 = arith.mulf %392, %455 : vector<8x128xf32>
    %c3_266 = arith.constant 3 : index
    %c5_267 = arith.constant 5 : index
    %457 = memref.load %arg5[%c3_266, %c5_267] : memref<10x10xf32, #tpu.memory_space<smem>>
    %458 = vector.broadcast %457 : f32 to vector<8x128xf32>
    %459 = arith.addf %456, %458 : vector<8x128xf32>
    %cst_268 = arith.constant 0.000000e+00 : f32
    %460 = vector.broadcast %cst_268 : f32 to vector<8x128xf32>
    %461 = arith.maximumf %459, %460 : vector<8x128xf32>
    %c3_269 = arith.constant 3 : index
    %c5_270 = arith.constant 5 : index
    %462 = memref.load %arg6[%c3_269, %c5_270] : memref<10x10xf32, #tpu.memory_space<smem>>
    %463 = vector.broadcast %462 : f32 to vector<8x128xf32>
    %464 = arith.mulf %461, %463 : vector<8x128xf32>
    %465 = arith.addf %453, %464 : vector<8x128xf32>
    %c3_271 = arith.constant 3 : index
    %c6_272 = arith.constant 6 : index
    %466 = memref.load %arg4[%c3_271, %c6_272] : memref<10x10xf32, #tpu.memory_space<smem>>
    %467 = vector.broadcast %466 : f32 to vector<8x128xf32>
    %468 = arith.mulf %392, %467 : vector<8x128xf32>
    %c3_273 = arith.constant 3 : index
    %c6_274 = arith.constant 6 : index
    %469 = memref.load %arg5[%c3_273, %c6_274] : memref<10x10xf32, #tpu.memory_space<smem>>
    %470 = vector.broadcast %469 : f32 to vector<8x128xf32>
    %471 = arith.addf %468, %470 : vector<8x128xf32>
    %cst_275 = arith.constant 0.000000e+00 : f32
    %472 = vector.broadcast %cst_275 : f32 to vector<8x128xf32>
    %473 = arith.maximumf %471, %472 : vector<8x128xf32>
    %c3_276 = arith.constant 3 : index
    %c6_277 = arith.constant 6 : index
    %474 = memref.load %arg6[%c3_276, %c6_277] : memref<10x10xf32, #tpu.memory_space<smem>>
    %475 = vector.broadcast %474 : f32 to vector<8x128xf32>
    %476 = arith.mulf %473, %475 : vector<8x128xf32>
    %477 = arith.addf %465, %476 : vector<8x128xf32>
    %c3_278 = arith.constant 3 : index
    %c7_279 = arith.constant 7 : index
    %478 = memref.load %arg4[%c3_278, %c7_279] : memref<10x10xf32, #tpu.memory_space<smem>>
    %479 = vector.broadcast %478 : f32 to vector<8x128xf32>
    %480 = arith.mulf %392, %479 : vector<8x128xf32>
    %c3_280 = arith.constant 3 : index
    %c7_281 = arith.constant 7 : index
    %481 = memref.load %arg5[%c3_280, %c7_281] : memref<10x10xf32, #tpu.memory_space<smem>>
    %482 = vector.broadcast %481 : f32 to vector<8x128xf32>
    %483 = arith.addf %480, %482 : vector<8x128xf32>
    %cst_282 = arith.constant 0.000000e+00 : f32
    %484 = vector.broadcast %cst_282 : f32 to vector<8x128xf32>
    %485 = arith.maximumf %483, %484 : vector<8x128xf32>
    %c3_283 = arith.constant 3 : index
    %c7_284 = arith.constant 7 : index
    %486 = memref.load %arg6[%c3_283, %c7_284] : memref<10x10xf32, #tpu.memory_space<smem>>
    %487 = vector.broadcast %486 : f32 to vector<8x128xf32>
    %488 = arith.mulf %485, %487 : vector<8x128xf32>
    %489 = arith.addf %477, %488 : vector<8x128xf32>
    %c3_285 = arith.constant 3 : index
    %c8_286 = arith.constant 8 : index
    %490 = memref.load %arg4[%c3_285, %c8_286] : memref<10x10xf32, #tpu.memory_space<smem>>
    %491 = vector.broadcast %490 : f32 to vector<8x128xf32>
    %492 = arith.mulf %392, %491 : vector<8x128xf32>
    %c3_287 = arith.constant 3 : index
    %c8_288 = arith.constant 8 : index
    %493 = memref.load %arg5[%c3_287, %c8_288] : memref<10x10xf32, #tpu.memory_space<smem>>
    %494 = vector.broadcast %493 : f32 to vector<8x128xf32>
    %495 = arith.addf %492, %494 : vector<8x128xf32>
    %cst_289 = arith.constant 0.000000e+00 : f32
    %496 = vector.broadcast %cst_289 : f32 to vector<8x128xf32>
    %497 = arith.maximumf %495, %496 : vector<8x128xf32>
    %c3_290 = arith.constant 3 : index
    %c8_291 = arith.constant 8 : index
    %498 = memref.load %arg6[%c3_290, %c8_291] : memref<10x10xf32, #tpu.memory_space<smem>>
    %499 = vector.broadcast %498 : f32 to vector<8x128xf32>
    %500 = arith.mulf %497, %499 : vector<8x128xf32>
    %501 = arith.addf %489, %500 : vector<8x128xf32>
    %c3_292 = arith.constant 3 : index
    %c9_293 = arith.constant 9 : index
    %502 = memref.load %arg4[%c3_292, %c9_293] : memref<10x10xf32, #tpu.memory_space<smem>>
    %503 = vector.broadcast %502 : f32 to vector<8x128xf32>
    %504 = arith.mulf %392, %503 : vector<8x128xf32>
    %c3_294 = arith.constant 3 : index
    %c9_295 = arith.constant 9 : index
    %505 = memref.load %arg5[%c3_294, %c9_295] : memref<10x10xf32, #tpu.memory_space<smem>>
    %506 = vector.broadcast %505 : f32 to vector<8x128xf32>
    %507 = arith.addf %504, %506 : vector<8x128xf32>
    %cst_296 = arith.constant 0.000000e+00 : f32
    %508 = vector.broadcast %cst_296 : f32 to vector<8x128xf32>
    %509 = arith.maximumf %507, %508 : vector<8x128xf32>
    %c3_297 = arith.constant 3 : index
    %c9_298 = arith.constant 9 : index
    %510 = memref.load %arg6[%c3_297, %c9_298] : memref<10x10xf32, #tpu.memory_space<smem>>
    %511 = vector.broadcast %510 : f32 to vector<8x128xf32>
    %512 = arith.mulf %509, %511 : vector<8x128xf32>
    %513 = arith.addf %501, %512 : vector<8x128xf32>
    %c3_299 = arith.constant 3 : index
    %514 = memref.load %arg7[%c3_299] : memref<10xf32, #tpu.memory_space<smem>>
    %515 = vector.broadcast %514 : f32 to vector<8x128xf32>
    %516 = arith.addf %513, %515 : vector<8x128xf32>
    %c3_300 = arith.constant 3 : index
    %c0_301 = arith.constant 0 : index
    %c0_302 = arith.constant 0 : index
    %517 = vector.load %arg2[%c3_300, %c0_301, %c0_302] : memref<10x8x128xf32, #tpu.memory_space<vmem>>, vector<1x8x128xf32>
    %518 = vector.shape_cast %517 : vector<1x8x128xf32> to vector<8x128xf32>
    %519 = arith.mulf %516, %518 : vector<8x128xf32>
    %520 = arith.addf %390, %519 : vector<8x128xf32>
    %c4_303 = arith.constant 4 : index
    %c0_304 = arith.constant 0 : index
    %c0_305 = arith.constant 0 : index
    %521 = vector.load %arg1[%c4_303, %c0_304, %c0_305] : memref<10x8x128xf32, #tpu.memory_space<vmem>>, vector<1x8x128xf32>
    %522 = vector.shape_cast %521 : vector<1x8x128xf32> to vector<8x128xf32>
    %cst_306 = arith.constant 0.000000e+00 : f32
    %523 = vector.broadcast %cst_306 : f32 to vector<8x128xf32>
    %c4_307 = arith.constant 4 : index
    %c0_308 = arith.constant 0 : index
    %524 = memref.load %arg4[%c4_307, %c0_308] : memref<10x10xf32, #tpu.memory_space<smem>>
    %525 = vector.broadcast %524 : f32 to vector<8x128xf32>
    %526 = arith.mulf %522, %525 : vector<8x128xf32>
    %c4_309 = arith.constant 4 : index
    %c0_310 = arith.constant 0 : index
    %527 = memref.load %arg5[%c4_309, %c0_310] : memref<10x10xf32, #tpu.memory_space<smem>>
    %528 = vector.broadcast %527 : f32 to vector<8x128xf32>
    %529 = arith.addf %526, %528 : vector<8x128xf32>
    %cst_311 = arith.constant 0.000000e+00 : f32
    %530 = vector.broadcast %cst_311 : f32 to vector<8x128xf32>
    %531 = arith.maximumf %529, %530 : vector<8x128xf32>
    %c4_312 = arith.constant 4 : index
    %c0_313 = arith.constant 0 : index
    %532 = memref.load %arg6[%c4_312, %c0_313] : memref<10x10xf32, #tpu.memory_space<smem>>
    %533 = vector.broadcast %532 : f32 to vector<8x128xf32>
    %534 = arith.mulf %531, %533 : vector<8x128xf32>
    %535 = arith.addf %523, %534 : vector<8x128xf32>
    %c4_314 = arith.constant 4 : index
    %c1_315 = arith.constant 1 : index
    %536 = memref.load %arg4[%c4_314, %c1_315] : memref<10x10xf32, #tpu.memory_space<smem>>
    %537 = vector.broadcast %536 : f32 to vector<8x128xf32>
    %538 = arith.mulf %522, %537 : vector<8x128xf32>
    %c4_316 = arith.constant 4 : index
    %c1_317 = arith.constant 1 : index
    %539 = memref.load %arg5[%c4_316, %c1_317] : memref<10x10xf32, #tpu.memory_space<smem>>
    %540 = vector.broadcast %539 : f32 to vector<8x128xf32>
    %541 = arith.addf %538, %540 : vector<8x128xf32>
    %cst_318 = arith.constant 0.000000e+00 : f32
    %542 = vector.broadcast %cst_318 : f32 to vector<8x128xf32>
    %543 = arith.maximumf %541, %542 : vector<8x128xf32>
    %c4_319 = arith.constant 4 : index
    %c1_320 = arith.constant 1 : index
    %544 = memref.load %arg6[%c4_319, %c1_320] : memref<10x10xf32, #tpu.memory_space<smem>>
    %545 = vector.broadcast %544 : f32 to vector<8x128xf32>
    %546 = arith.mulf %543, %545 : vector<8x128xf32>
    %547 = arith.addf %535, %546 : vector<8x128xf32>
    %c4_321 = arith.constant 4 : index
    %c2_322 = arith.constant 2 : index
    %548 = memref.load %arg4[%c4_321, %c2_322] : memref<10x10xf32, #tpu.memory_space<smem>>
    %549 = vector.broadcast %548 : f32 to vector<8x128xf32>
    %550 = arith.mulf %522, %549 : vector<8x128xf32>
    %c4_323 = arith.constant 4 : index
    %c2_324 = arith.constant 2 : index
    %551 = memref.load %arg5[%c4_323, %c2_324] : memref<10x10xf32, #tpu.memory_space<smem>>
    %552 = vector.broadcast %551 : f32 to vector<8x128xf32>
    %553 = arith.addf %550, %552 : vector<8x128xf32>
    %cst_325 = arith.constant 0.000000e+00 : f32
    %554 = vector.broadcast %cst_325 : f32 to vector<8x128xf32>
    %555 = arith.maximumf %553, %554 : vector<8x128xf32>
    %c4_326 = arith.constant 4 : index
    %c2_327 = arith.constant 2 : index
    %556 = memref.load %arg6[%c4_326, %c2_327] : memref<10x10xf32, #tpu.memory_space<smem>>
    %557 = vector.broadcast %556 : f32 to vector<8x128xf32>
    %558 = arith.mulf %555, %557 : vector<8x128xf32>
    %559 = arith.addf %547, %558 : vector<8x128xf32>
    %c4_328 = arith.constant 4 : index
    %c3_329 = arith.constant 3 : index
    %560 = memref.load %arg4[%c4_328, %c3_329] : memref<10x10xf32, #tpu.memory_space<smem>>
    %561 = vector.broadcast %560 : f32 to vector<8x128xf32>
    %562 = arith.mulf %522, %561 : vector<8x128xf32>
    %c4_330 = arith.constant 4 : index
    %c3_331 = arith.constant 3 : index
    %563 = memref.load %arg5[%c4_330, %c3_331] : memref<10x10xf32, #tpu.memory_space<smem>>
    %564 = vector.broadcast %563 : f32 to vector<8x128xf32>
    %565 = arith.addf %562, %564 : vector<8x128xf32>
    %cst_332 = arith.constant 0.000000e+00 : f32
    %566 = vector.broadcast %cst_332 : f32 to vector<8x128xf32>
    %567 = arith.maximumf %565, %566 : vector<8x128xf32>
    %c4_333 = arith.constant 4 : index
    %c3_334 = arith.constant 3 : index
    %568 = memref.load %arg6[%c4_333, %c3_334] : memref<10x10xf32, #tpu.memory_space<smem>>
    %569 = vector.broadcast %568 : f32 to vector<8x128xf32>
    %570 = arith.mulf %567, %569 : vector<8x128xf32>
    %571 = arith.addf %559, %570 : vector<8x128xf32>
    %c4_335 = arith.constant 4 : index
    %c4_336 = arith.constant 4 : index
    %572 = memref.load %arg4[%c4_335, %c4_336] : memref<10x10xf32, #tpu.memory_space<smem>>
    %573 = vector.broadcast %572 : f32 to vector<8x128xf32>
    %574 = arith.mulf %522, %573 : vector<8x128xf32>
    %c4_337 = arith.constant 4 : index
    %c4_338 = arith.constant 4 : index
    %575 = memref.load %arg5[%c4_337, %c4_338] : memref<10x10xf32, #tpu.memory_space<smem>>
    %576 = vector.broadcast %575 : f32 to vector<8x128xf32>
    %577 = arith.addf %574, %576 : vector<8x128xf32>
    %cst_339 = arith.constant 0.000000e+00 : f32
    %578 = vector.broadcast %cst_339 : f32 to vector<8x128xf32>
    %579 = arith.maximumf %577, %578 : vector<8x128xf32>
    %c4_340 = arith.constant 4 : index
    %c4_341 = arith.constant 4 : index
    %580 = memref.load %arg6[%c4_340, %c4_341] : memref<10x10xf32, #tpu.memory_space<smem>>
    %581 = vector.broadcast %580 : f32 to vector<8x128xf32>
    %582 = arith.mulf %579, %581 : vector<8x128xf32>
    %583 = arith.addf %571, %582 : vector<8x128xf32>
    %c4_342 = arith.constant 4 : index
    %c5_343 = arith.constant 5 : index
    %584 = memref.load %arg4[%c4_342, %c5_343] : memref<10x10xf32, #tpu.memory_space<smem>>
    %585 = vector.broadcast %584 : f32 to vector<8x128xf32>
    %586 = arith.mulf %522, %585 : vector<8x128xf32>
    %c4_344 = arith.constant 4 : index
    %c5_345 = arith.constant 5 : index
    %587 = memref.load %arg5[%c4_344, %c5_345] : memref<10x10xf32, #tpu.memory_space<smem>>
    %588 = vector.broadcast %587 : f32 to vector<8x128xf32>
    %589 = arith.addf %586, %588 : vector<8x128xf32>
    %cst_346 = arith.constant 0.000000e+00 : f32
    %590 = vector.broadcast %cst_346 : f32 to vector<8x128xf32>
    %591 = arith.maximumf %589, %590 : vector<8x128xf32>
    %c4_347 = arith.constant 4 : index
    %c5_348 = arith.constant 5 : index
    %592 = memref.load %arg6[%c4_347, %c5_348] : memref<10x10xf32, #tpu.memory_space<smem>>
    %593 = vector.broadcast %592 : f32 to vector<8x128xf32>
    %594 = arith.mulf %591, %593 : vector<8x128xf32>
    %595 = arith.addf %583, %594 : vector<8x128xf32>
    %c4_349 = arith.constant 4 : index
    %c6_350 = arith.constant 6 : index
    %596 = memref.load %arg4[%c4_349, %c6_350] : memref<10x10xf32, #tpu.memory_space<smem>>
    %597 = vector.broadcast %596 : f32 to vector<8x128xf32>
    %598 = arith.mulf %522, %597 : vector<8x128xf32>
    %c4_351 = arith.constant 4 : index
    %c6_352 = arith.constant 6 : index
    %599 = memref.load %arg5[%c4_351, %c6_352] : memref<10x10xf32, #tpu.memory_space<smem>>
    %600 = vector.broadcast %599 : f32 to vector<8x128xf32>
    %601 = arith.addf %598, %600 : vector<8x128xf32>
    %cst_353 = arith.constant 0.000000e+00 : f32
    %602 = vector.broadcast %cst_353 : f32 to vector<8x128xf32>
    %603 = arith.maximumf %601, %602 : vector<8x128xf32>
    %c4_354 = arith.constant 4 : index
    %c6_355 = arith.constant 6 : index
    %604 = memref.load %arg6[%c4_354, %c6_355] : memref<10x10xf32, #tpu.memory_space<smem>>
    %605 = vector.broadcast %604 : f32 to vector<8x128xf32>
    %606 = arith.mulf %603, %605 : vector<8x128xf32>
    %607 = arith.addf %595, %606 : vector<8x128xf32>
    %c4_356 = arith.constant 4 : index
    %c7_357 = arith.constant 7 : index
    %608 = memref.load %arg4[%c4_356, %c7_357] : memref<10x10xf32, #tpu.memory_space<smem>>
    %609 = vector.broadcast %608 : f32 to vector<8x128xf32>
    %610 = arith.mulf %522, %609 : vector<8x128xf32>
    %c4_358 = arith.constant 4 : index
    %c7_359 = arith.constant 7 : index
    %611 = memref.load %arg5[%c4_358, %c7_359] : memref<10x10xf32, #tpu.memory_space<smem>>
    %612 = vector.broadcast %611 : f32 to vector<8x128xf32>
    %613 = arith.addf %610, %612 : vector<8x128xf32>
    %cst_360 = arith.constant 0.000000e+00 : f32
    %614 = vector.broadcast %cst_360 : f32 to vector<8x128xf32>
    %615 = arith.maximumf %613, %614 : vector<8x128xf32>
    %c4_361 = arith.constant 4 : index
    %c7_362 = arith.constant 7 : index
    %616 = memref.load %arg6[%c4_361, %c7_362] : memref<10x10xf32, #tpu.memory_space<smem>>
    %617 = vector.broadcast %616 : f32 to vector<8x128xf32>
    %618 = arith.mulf %615, %617 : vector<8x128xf32>
    %619 = arith.addf %607, %618 : vector<8x128xf32>
    %c4_363 = arith.constant 4 : index
    %c8_364 = arith.constant 8 : index
    %620 = memref.load %arg4[%c4_363, %c8_364] : memref<10x10xf32, #tpu.memory_space<smem>>
    %621 = vector.broadcast %620 : f32 to vector<8x128xf32>
    %622 = arith.mulf %522, %621 : vector<8x128xf32>
    %c4_365 = arith.constant 4 : index
    %c8_366 = arith.constant 8 : index
    %623 = memref.load %arg5[%c4_365, %c8_366] : memref<10x10xf32, #tpu.memory_space<smem>>
    %624 = vector.broadcast %623 : f32 to vector<8x128xf32>
    %625 = arith.addf %622, %624 : vector<8x128xf32>
    %cst_367 = arith.constant 0.000000e+00 : f32
    %626 = vector.broadcast %cst_367 : f32 to vector<8x128xf32>
    %627 = arith.maximumf %625, %626 : vector<8x128xf32>
    %c4_368 = arith.constant 4 : index
    %c8_369 = arith.constant 8 : index
    %628 = memref.load %arg6[%c4_368, %c8_369] : memref<10x10xf32, #tpu.memory_space<smem>>
    %629 = vector.broadcast %628 : f32 to vector<8x128xf32>
    %630 = arith.mulf %627, %629 : vector<8x128xf32>
    %631 = arith.addf %619, %630 : vector<8x128xf32>
    %c4_370 = arith.constant 4 : index
    %c9_371 = arith.constant 9 : index
    %632 = memref.load %arg4[%c4_370, %c9_371] : memref<10x10xf32, #tpu.memory_space<smem>>
    %633 = vector.broadcast %632 : f32 to vector<8x128xf32>
    %634 = arith.mulf %522, %633 : vector<8x128xf32>
    %c4_372 = arith.constant 4 : index
    %c9_373 = arith.constant 9 : index
    %635 = memref.load %arg5[%c4_372, %c9_373] : memref<10x10xf32, #tpu.memory_space<smem>>
    %636 = vector.broadcast %635 : f32 to vector<8x128xf32>
    %637 = arith.addf %634, %636 : vector<8x128xf32>
    %cst_374 = arith.constant 0.000000e+00 : f32
    %638 = vector.broadcast %cst_374 : f32 to vector<8x128xf32>
    %639 = arith.maximumf %637, %638 : vector<8x128xf32>
    %c4_375 = arith.constant 4 : index
    %c9_376 = arith.constant 9 : index
    %640 = memref.load %arg6[%c4_375, %c9_376] : memref<10x10xf32, #tpu.memory_space<smem>>
    %641 = vector.broadcast %640 : f32 to vector<8x128xf32>
    %642 = arith.mulf %639, %641 : vector<8x128xf32>
    %643 = arith.addf %631, %642 : vector<8x128xf32>
    %c4_377 = arith.constant 4 : index
    %644 = memref.load %arg7[%c4_377] : memref<10xf32, #tpu.memory_space<smem>>
    %645 = vector.broadcast %644 : f32 to vector<8x128xf32>
    %646 = arith.addf %643, %645 : vector<8x128xf32>
    %c4_378 = arith.constant 4 : index
    %c0_379 = arith.constant 0 : index
    %c0_380 = arith.constant 0 : index
    %647 = vector.load %arg2[%c4_378, %c0_379, %c0_380] : memref<10x8x128xf32, #tpu.memory_space<vmem>>, vector<1x8x128xf32>
    %648 = vector.shape_cast %647 : vector<1x8x128xf32> to vector<8x128xf32>
    %649 = arith.mulf %646, %648 : vector<8x128xf32>
    %650 = arith.addf %520, %649 : vector<8x128xf32>
    %c5_381 = arith.constant 5 : index
    %c0_382 = arith.constant 0 : index
    %c0_383 = arith.constant 0 : index
    %651 = vector.load %arg1[%c5_381, %c0_382, %c0_383] : memref<10x8x128xf32, #tpu.memory_space<vmem>>, vector<1x8x128xf32>
    %652 = vector.shape_cast %651 : vector<1x8x128xf32> to vector<8x128xf32>
    %cst_384 = arith.constant 0.000000e+00 : f32
    %653 = vector.broadcast %cst_384 : f32 to vector<8x128xf32>
    %c5_385 = arith.constant 5 : index
    %c0_386 = arith.constant 0 : index
    %654 = memref.load %arg4[%c5_385, %c0_386] : memref<10x10xf32, #tpu.memory_space<smem>>
    %655 = vector.broadcast %654 : f32 to vector<8x128xf32>
    %656 = arith.mulf %652, %655 : vector<8x128xf32>
    %c5_387 = arith.constant 5 : index
    %c0_388 = arith.constant 0 : index
    %657 = memref.load %arg5[%c5_387, %c0_388] : memref<10x10xf32, #tpu.memory_space<smem>>
    %658 = vector.broadcast %657 : f32 to vector<8x128xf32>
    %659 = arith.addf %656, %658 : vector<8x128xf32>
    %cst_389 = arith.constant 0.000000e+00 : f32
    %660 = vector.broadcast %cst_389 : f32 to vector<8x128xf32>
    %661 = arith.maximumf %659, %660 : vector<8x128xf32>
    %c5_390 = arith.constant 5 : index
    %c0_391 = arith.constant 0 : index
    %662 = memref.load %arg6[%c5_390, %c0_391] : memref<10x10xf32, #tpu.memory_space<smem>>
    %663 = vector.broadcast %662 : f32 to vector<8x128xf32>
    %664 = arith.mulf %661, %663 : vector<8x128xf32>
    %665 = arith.addf %653, %664 : vector<8x128xf32>
    %c5_392 = arith.constant 5 : index
    %c1_393 = arith.constant 1 : index
    %666 = memref.load %arg4[%c5_392, %c1_393] : memref<10x10xf32, #tpu.memory_space<smem>>
    %667 = vector.broadcast %666 : f32 to vector<8x128xf32>
    %668 = arith.mulf %652, %667 : vector<8x128xf32>
    %c5_394 = arith.constant 5 : index
    %c1_395 = arith.constant 1 : index
    %669 = memref.load %arg5[%c5_394, %c1_395] : memref<10x10xf32, #tpu.memory_space<smem>>
    %670 = vector.broadcast %669 : f32 to vector<8x128xf32>
    %671 = arith.addf %668, %670 : vector<8x128xf32>
    %cst_396 = arith.constant 0.000000e+00 : f32
    %672 = vector.broadcast %cst_396 : f32 to vector<8x128xf32>
    %673 = arith.maximumf %671, %672 : vector<8x128xf32>
    %c5_397 = arith.constant 5 : index
    %c1_398 = arith.constant 1 : index
    %674 = memref.load %arg6[%c5_397, %c1_398] : memref<10x10xf32, #tpu.memory_space<smem>>
    %675 = vector.broadcast %674 : f32 to vector<8x128xf32>
    %676 = arith.mulf %673, %675 : vector<8x128xf32>
    %677 = arith.addf %665, %676 : vector<8x128xf32>
    %c5_399 = arith.constant 5 : index
    %c2_400 = arith.constant 2 : index
    %678 = memref.load %arg4[%c5_399, %c2_400] : memref<10x10xf32, #tpu.memory_space<smem>>
    %679 = vector.broadcast %678 : f32 to vector<8x128xf32>
    %680 = arith.mulf %652, %679 : vector<8x128xf32>
    %c5_401 = arith.constant 5 : index
    %c2_402 = arith.constant 2 : index
    %681 = memref.load %arg5[%c5_401, %c2_402] : memref<10x10xf32, #tpu.memory_space<smem>>
    %682 = vector.broadcast %681 : f32 to vector<8x128xf32>
    %683 = arith.addf %680, %682 : vector<8x128xf32>
    %cst_403 = arith.constant 0.000000e+00 : f32
    %684 = vector.broadcast %cst_403 : f32 to vector<8x128xf32>
    %685 = arith.maximumf %683, %684 : vector<8x128xf32>
    %c5_404 = arith.constant 5 : index
    %c2_405 = arith.constant 2 : index
    %686 = memref.load %arg6[%c5_404, %c2_405] : memref<10x10xf32, #tpu.memory_space<smem>>
    %687 = vector.broadcast %686 : f32 to vector<8x128xf32>
    %688 = arith.mulf %685, %687 : vector<8x128xf32>
    %689 = arith.addf %677, %688 : vector<8x128xf32>
    %c5_406 = arith.constant 5 : index
    %c3_407 = arith.constant 3 : index
    %690 = memref.load %arg4[%c5_406, %c3_407] : memref<10x10xf32, #tpu.memory_space<smem>>
    %691 = vector.broadcast %690 : f32 to vector<8x128xf32>
    %692 = arith.mulf %652, %691 : vector<8x128xf32>
    %c5_408 = arith.constant 5 : index
    %c3_409 = arith.constant 3 : index
    %693 = memref.load %arg5[%c5_408, %c3_409] : memref<10x10xf32, #tpu.memory_space<smem>>
    %694 = vector.broadcast %693 : f32 to vector<8x128xf32>
    %695 = arith.addf %692, %694 : vector<8x128xf32>
    %cst_410 = arith.constant 0.000000e+00 : f32
    %696 = vector.broadcast %cst_410 : f32 to vector<8x128xf32>
    %697 = arith.maximumf %695, %696 : vector<8x128xf32>
    %c5_411 = arith.constant 5 : index
    %c3_412 = arith.constant 3 : index
    %698 = memref.load %arg6[%c5_411, %c3_412] : memref<10x10xf32, #tpu.memory_space<smem>>
    %699 = vector.broadcast %698 : f32 to vector<8x128xf32>
    %700 = arith.mulf %697, %699 : vector<8x128xf32>
    %701 = arith.addf %689, %700 : vector<8x128xf32>
    %c5_413 = arith.constant 5 : index
    %c4_414 = arith.constant 4 : index
    %702 = memref.load %arg4[%c5_413, %c4_414] : memref<10x10xf32, #tpu.memory_space<smem>>
    %703 = vector.broadcast %702 : f32 to vector<8x128xf32>
    %704 = arith.mulf %652, %703 : vector<8x128xf32>
    %c5_415 = arith.constant 5 : index
    %c4_416 = arith.constant 4 : index
    %705 = memref.load %arg5[%c5_415, %c4_416] : memref<10x10xf32, #tpu.memory_space<smem>>
    %706 = vector.broadcast %705 : f32 to vector<8x128xf32>
    %707 = arith.addf %704, %706 : vector<8x128xf32>
    %cst_417 = arith.constant 0.000000e+00 : f32
    %708 = vector.broadcast %cst_417 : f32 to vector<8x128xf32>
    %709 = arith.maximumf %707, %708 : vector<8x128xf32>
    %c5_418 = arith.constant 5 : index
    %c4_419 = arith.constant 4 : index
    %710 = memref.load %arg6[%c5_418, %c4_419] : memref<10x10xf32, #tpu.memory_space<smem>>
    %711 = vector.broadcast %710 : f32 to vector<8x128xf32>
    %712 = arith.mulf %709, %711 : vector<8x128xf32>
    %713 = arith.addf %701, %712 : vector<8x128xf32>
    %c5_420 = arith.constant 5 : index
    %c5_421 = arith.constant 5 : index
    %714 = memref.load %arg4[%c5_420, %c5_421] : memref<10x10xf32, #tpu.memory_space<smem>>
    %715 = vector.broadcast %714 : f32 to vector<8x128xf32>
    %716 = arith.mulf %652, %715 : vector<8x128xf32>
    %c5_422 = arith.constant 5 : index
    %c5_423 = arith.constant 5 : index
    %717 = memref.load %arg5[%c5_422, %c5_423] : memref<10x10xf32, #tpu.memory_space<smem>>
    %718 = vector.broadcast %717 : f32 to vector<8x128xf32>
    %719 = arith.addf %716, %718 : vector<8x128xf32>
    %cst_424 = arith.constant 0.000000e+00 : f32
    %720 = vector.broadcast %cst_424 : f32 to vector<8x128xf32>
    %721 = arith.maximumf %719, %720 : vector<8x128xf32>
    %c5_425 = arith.constant 5 : index
    %c5_426 = arith.constant 5 : index
    %722 = memref.load %arg6[%c5_425, %c5_426] : memref<10x10xf32, #tpu.memory_space<smem>>
    %723 = vector.broadcast %722 : f32 to vector<8x128xf32>
    %724 = arith.mulf %721, %723 : vector<8x128xf32>
    %725 = arith.addf %713, %724 : vector<8x128xf32>
    %c5_427 = arith.constant 5 : index
    %c6_428 = arith.constant 6 : index
    %726 = memref.load %arg4[%c5_427, %c6_428] : memref<10x10xf32, #tpu.memory_space<smem>>
    %727 = vector.broadcast %726 : f32 to vector<8x128xf32>
    %728 = arith.mulf %652, %727 : vector<8x128xf32>
    %c5_429 = arith.constant 5 : index
    %c6_430 = arith.constant 6 : index
    %729 = memref.load %arg5[%c5_429, %c6_430] : memref<10x10xf32, #tpu.memory_space<smem>>
    %730 = vector.broadcast %729 : f32 to vector<8x128xf32>
    %731 = arith.addf %728, %730 : vector<8x128xf32>
    %cst_431 = arith.constant 0.000000e+00 : f32
    %732 = vector.broadcast %cst_431 : f32 to vector<8x128xf32>
    %733 = arith.maximumf %731, %732 : vector<8x128xf32>
    %c5_432 = arith.constant 5 : index
    %c6_433 = arith.constant 6 : index
    %734 = memref.load %arg6[%c5_432, %c6_433] : memref<10x10xf32, #tpu.memory_space<smem>>
    %735 = vector.broadcast %734 : f32 to vector<8x128xf32>
    %736 = arith.mulf %733, %735 : vector<8x128xf32>
    %737 = arith.addf %725, %736 : vector<8x128xf32>
    %c5_434 = arith.constant 5 : index
    %c7_435 = arith.constant 7 : index
    %738 = memref.load %arg4[%c5_434, %c7_435] : memref<10x10xf32, #tpu.memory_space<smem>>
    %739 = vector.broadcast %738 : f32 to vector<8x128xf32>
    %740 = arith.mulf %652, %739 : vector<8x128xf32>
    %c5_436 = arith.constant 5 : index
    %c7_437 = arith.constant 7 : index
    %741 = memref.load %arg5[%c5_436, %c7_437] : memref<10x10xf32, #tpu.memory_space<smem>>
    %742 = vector.broadcast %741 : f32 to vector<8x128xf32>
    %743 = arith.addf %740, %742 : vector<8x128xf32>
    %cst_438 = arith.constant 0.000000e+00 : f32
    %744 = vector.broadcast %cst_438 : f32 to vector<8x128xf32>
    %745 = arith.maximumf %743, %744 : vector<8x128xf32>
    %c5_439 = arith.constant 5 : index
    %c7_440 = arith.constant 7 : index
    %746 = memref.load %arg6[%c5_439, %c7_440] : memref<10x10xf32, #tpu.memory_space<smem>>
    %747 = vector.broadcast %746 : f32 to vector<8x128xf32>
    %748 = arith.mulf %745, %747 : vector<8x128xf32>
    %749 = arith.addf %737, %748 : vector<8x128xf32>
    %c5_441 = arith.constant 5 : index
    %c8_442 = arith.constant 8 : index
    %750 = memref.load %arg4[%c5_441, %c8_442] : memref<10x10xf32, #tpu.memory_space<smem>>
    %751 = vector.broadcast %750 : f32 to vector<8x128xf32>
    %752 = arith.mulf %652, %751 : vector<8x128xf32>
    %c5_443 = arith.constant 5 : index
    %c8_444 = arith.constant 8 : index
    %753 = memref.load %arg5[%c5_443, %c8_444] : memref<10x10xf32, #tpu.memory_space<smem>>
    %754 = vector.broadcast %753 : f32 to vector<8x128xf32>
    %755 = arith.addf %752, %754 : vector<8x128xf32>
    %cst_445 = arith.constant 0.000000e+00 : f32
    %756 = vector.broadcast %cst_445 : f32 to vector<8x128xf32>
    %757 = arith.maximumf %755, %756 : vector<8x128xf32>
    %c5_446 = arith.constant 5 : index
    %c8_447 = arith.constant 8 : index
    %758 = memref.load %arg6[%c5_446, %c8_447] : memref<10x10xf32, #tpu.memory_space<smem>>
    %759 = vector.broadcast %758 : f32 to vector<8x128xf32>
    %760 = arith.mulf %757, %759 : vector<8x128xf32>
    %761 = arith.addf %749, %760 : vector<8x128xf32>
    %c5_448 = arith.constant 5 : index
    %c9_449 = arith.constant 9 : index
    %762 = memref.load %arg4[%c5_448, %c9_449] : memref<10x10xf32, #tpu.memory_space<smem>>
    %763 = vector.broadcast %762 : f32 to vector<8x128xf32>
    %764 = arith.mulf %652, %763 : vector<8x128xf32>
    %c5_450 = arith.constant 5 : index
    %c9_451 = arith.constant 9 : index
    %765 = memref.load %arg5[%c5_450, %c9_451] : memref<10x10xf32, #tpu.memory_space<smem>>
    %766 = vector.broadcast %765 : f32 to vector<8x128xf32>
    %767 = arith.addf %764, %766 : vector<8x128xf32>
    %cst_452 = arith.constant 0.000000e+00 : f32
    %768 = vector.broadcast %cst_452 : f32 to vector<8x128xf32>
    %769 = arith.maximumf %767, %768 : vector<8x128xf32>
    %c5_453 = arith.constant 5 : index
    %c9_454 = arith.constant 9 : index
    %770 = memref.load %arg6[%c5_453, %c9_454] : memref<10x10xf32, #tpu.memory_space<smem>>
    %771 = vector.broadcast %770 : f32 to vector<8x128xf32>
    %772 = arith.mulf %769, %771 : vector<8x128xf32>
    %773 = arith.addf %761, %772 : vector<8x128xf32>
    %c5_455 = arith.constant 5 : index
    %774 = memref.load %arg7[%c5_455] : memref<10xf32, #tpu.memory_space<smem>>
    %775 = vector.broadcast %774 : f32 to vector<8x128xf32>
    %776 = arith.addf %773, %775 : vector<8x128xf32>
    %c5_456 = arith.constant 5 : index
    %c0_457 = arith.constant 0 : index
    %c0_458 = arith.constant 0 : index
    %777 = vector.load %arg2[%c5_456, %c0_457, %c0_458] : memref<10x8x128xf32, #tpu.memory_space<vmem>>, vector<1x8x128xf32>
    %778 = vector.shape_cast %777 : vector<1x8x128xf32> to vector<8x128xf32>
    %779 = arith.mulf %776, %778 : vector<8x128xf32>
    %780 = arith.addf %650, %779 : vector<8x128xf32>
    %c6_459 = arith.constant 6 : index
    %c0_460 = arith.constant 0 : index
    %c0_461 = arith.constant 0 : index
    %781 = vector.load %arg1[%c6_459, %c0_460, %c0_461] : memref<10x8x128xf32, #tpu.memory_space<vmem>>, vector<1x8x128xf32>
    %782 = vector.shape_cast %781 : vector<1x8x128xf32> to vector<8x128xf32>
    %cst_462 = arith.constant 0.000000e+00 : f32
    %783 = vector.broadcast %cst_462 : f32 to vector<8x128xf32>
    %c6_463 = arith.constant 6 : index
    %c0_464 = arith.constant 0 : index
    %784 = memref.load %arg4[%c6_463, %c0_464] : memref<10x10xf32, #tpu.memory_space<smem>>
    %785 = vector.broadcast %784 : f32 to vector<8x128xf32>
    %786 = arith.mulf %782, %785 : vector<8x128xf32>
    %c6_465 = arith.constant 6 : index
    %c0_466 = arith.constant 0 : index
    %787 = memref.load %arg5[%c6_465, %c0_466] : memref<10x10xf32, #tpu.memory_space<smem>>
    %788 = vector.broadcast %787 : f32 to vector<8x128xf32>
    %789 = arith.addf %786, %788 : vector<8x128xf32>
    %cst_467 = arith.constant 0.000000e+00 : f32
    %790 = vector.broadcast %cst_467 : f32 to vector<8x128xf32>
    %791 = arith.maximumf %789, %790 : vector<8x128xf32>
    %c6_468 = arith.constant 6 : index
    %c0_469 = arith.constant 0 : index
    %792 = memref.load %arg6[%c6_468, %c0_469] : memref<10x10xf32, #tpu.memory_space<smem>>
    %793 = vector.broadcast %792 : f32 to vector<8x128xf32>
    %794 = arith.mulf %791, %793 : vector<8x128xf32>
    %795 = arith.addf %783, %794 : vector<8x128xf32>
    %c6_470 = arith.constant 6 : index
    %c1_471 = arith.constant 1 : index
    %796 = memref.load %arg4[%c6_470, %c1_471] : memref<10x10xf32, #tpu.memory_space<smem>>
    %797 = vector.broadcast %796 : f32 to vector<8x128xf32>
    %798 = arith.mulf %782, %797 : vector<8x128xf32>
    %c6_472 = arith.constant 6 : index
    %c1_473 = arith.constant 1 : index
    %799 = memref.load %arg5[%c6_472, %c1_473] : memref<10x10xf32, #tpu.memory_space<smem>>
    %800 = vector.broadcast %799 : f32 to vector<8x128xf32>
    %801 = arith.addf %798, %800 : vector<8x128xf32>
    %cst_474 = arith.constant 0.000000e+00 : f32
    %802 = vector.broadcast %cst_474 : f32 to vector<8x128xf32>
    %803 = arith.maximumf %801, %802 : vector<8x128xf32>
    %c6_475 = arith.constant 6 : index
    %c1_476 = arith.constant 1 : index
    %804 = memref.load %arg6[%c6_475, %c1_476] : memref<10x10xf32, #tpu.memory_space<smem>>
    %805 = vector.broadcast %804 : f32 to vector<8x128xf32>
    %806 = arith.mulf %803, %805 : vector<8x128xf32>
    %807 = arith.addf %795, %806 : vector<8x128xf32>
    %c6_477 = arith.constant 6 : index
    %c2_478 = arith.constant 2 : index
    %808 = memref.load %arg4[%c6_477, %c2_478] : memref<10x10xf32, #tpu.memory_space<smem>>
    %809 = vector.broadcast %808 : f32 to vector<8x128xf32>
    %810 = arith.mulf %782, %809 : vector<8x128xf32>
    %c6_479 = arith.constant 6 : index
    %c2_480 = arith.constant 2 : index
    %811 = memref.load %arg5[%c6_479, %c2_480] : memref<10x10xf32, #tpu.memory_space<smem>>
    %812 = vector.broadcast %811 : f32 to vector<8x128xf32>
    %813 = arith.addf %810, %812 : vector<8x128xf32>
    %cst_481 = arith.constant 0.000000e+00 : f32
    %814 = vector.broadcast %cst_481 : f32 to vector<8x128xf32>
    %815 = arith.maximumf %813, %814 : vector<8x128xf32>
    %c6_482 = arith.constant 6 : index
    %c2_483 = arith.constant 2 : index
    %816 = memref.load %arg6[%c6_482, %c2_483] : memref<10x10xf32, #tpu.memory_space<smem>>
    %817 = vector.broadcast %816 : f32 to vector<8x128xf32>
    %818 = arith.mulf %815, %817 : vector<8x128xf32>
    %819 = arith.addf %807, %818 : vector<8x128xf32>
    %c6_484 = arith.constant 6 : index
    %c3_485 = arith.constant 3 : index
    %820 = memref.load %arg4[%c6_484, %c3_485] : memref<10x10xf32, #tpu.memory_space<smem>>
    %821 = vector.broadcast %820 : f32 to vector<8x128xf32>
    %822 = arith.mulf %782, %821 : vector<8x128xf32>
    %c6_486 = arith.constant 6 : index
    %c3_487 = arith.constant 3 : index
    %823 = memref.load %arg5[%c6_486, %c3_487] : memref<10x10xf32, #tpu.memory_space<smem>>
    %824 = vector.broadcast %823 : f32 to vector<8x128xf32>
    %825 = arith.addf %822, %824 : vector<8x128xf32>
    %cst_488 = arith.constant 0.000000e+00 : f32
    %826 = vector.broadcast %cst_488 : f32 to vector<8x128xf32>
    %827 = arith.maximumf %825, %826 : vector<8x128xf32>
    %c6_489 = arith.constant 6 : index
    %c3_490 = arith.constant 3 : index
    %828 = memref.load %arg6[%c6_489, %c3_490] : memref<10x10xf32, #tpu.memory_space<smem>>
    %829 = vector.broadcast %828 : f32 to vector<8x128xf32>
    %830 = arith.mulf %827, %829 : vector<8x128xf32>
    %831 = arith.addf %819, %830 : vector<8x128xf32>
    %c6_491 = arith.constant 6 : index
    %c4_492 = arith.constant 4 : index
    %832 = memref.load %arg4[%c6_491, %c4_492] : memref<10x10xf32, #tpu.memory_space<smem>>
    %833 = vector.broadcast %832 : f32 to vector<8x128xf32>
    %834 = arith.mulf %782, %833 : vector<8x128xf32>
    %c6_493 = arith.constant 6 : index
    %c4_494 = arith.constant 4 : index
    %835 = memref.load %arg5[%c6_493, %c4_494] : memref<10x10xf32, #tpu.memory_space<smem>>
    %836 = vector.broadcast %835 : f32 to vector<8x128xf32>
    %837 = arith.addf %834, %836 : vector<8x128xf32>
    %cst_495 = arith.constant 0.000000e+00 : f32
    %838 = vector.broadcast %cst_495 : f32 to vector<8x128xf32>
    %839 = arith.maximumf %837, %838 : vector<8x128xf32>
    %c6_496 = arith.constant 6 : index
    %c4_497 = arith.constant 4 : index
    %840 = memref.load %arg6[%c6_496, %c4_497] : memref<10x10xf32, #tpu.memory_space<smem>>
    %841 = vector.broadcast %840 : f32 to vector<8x128xf32>
    %842 = arith.mulf %839, %841 : vector<8x128xf32>
    %843 = arith.addf %831, %842 : vector<8x128xf32>
    %c6_498 = arith.constant 6 : index
    %c5_499 = arith.constant 5 : index
    %844 = memref.load %arg4[%c6_498, %c5_499] : memref<10x10xf32, #tpu.memory_space<smem>>
    %845 = vector.broadcast %844 : f32 to vector<8x128xf32>
    %846 = arith.mulf %782, %845 : vector<8x128xf32>
    %c6_500 = arith.constant 6 : index
    %c5_501 = arith.constant 5 : index
    %847 = memref.load %arg5[%c6_500, %c5_501] : memref<10x10xf32, #tpu.memory_space<smem>>
    %848 = vector.broadcast %847 : f32 to vector<8x128xf32>
    %849 = arith.addf %846, %848 : vector<8x128xf32>
    %cst_502 = arith.constant 0.000000e+00 : f32
    %850 = vector.broadcast %cst_502 : f32 to vector<8x128xf32>
    %851 = arith.maximumf %849, %850 : vector<8x128xf32>
    %c6_503 = arith.constant 6 : index
    %c5_504 = arith.constant 5 : index
    %852 = memref.load %arg6[%c6_503, %c5_504] : memref<10x10xf32, #tpu.memory_space<smem>>
    %853 = vector.broadcast %852 : f32 to vector<8x128xf32>
    %854 = arith.mulf %851, %853 : vector<8x128xf32>
    %855 = arith.addf %843, %854 : vector<8x128xf32>
    %c6_505 = arith.constant 6 : index
    %c6_506 = arith.constant 6 : index
    %856 = memref.load %arg4[%c6_505, %c6_506] : memref<10x10xf32, #tpu.memory_space<smem>>
    %857 = vector.broadcast %856 : f32 to vector<8x128xf32>
    %858 = arith.mulf %782, %857 : vector<8x128xf32>
    %c6_507 = arith.constant 6 : index
    %c6_508 = arith.constant 6 : index
    %859 = memref.load %arg5[%c6_507, %c6_508] : memref<10x10xf32, #tpu.memory_space<smem>>
    %860 = vector.broadcast %859 : f32 to vector<8x128xf32>
    %861 = arith.addf %858, %860 : vector<8x128xf32>
    %cst_509 = arith.constant 0.000000e+00 : f32
    %862 = vector.broadcast %cst_509 : f32 to vector<8x128xf32>
    %863 = arith.maximumf %861, %862 : vector<8x128xf32>
    %c6_510 = arith.constant 6 : index
    %c6_511 = arith.constant 6 : index
    %864 = memref.load %arg6[%c6_510, %c6_511] : memref<10x10xf32, #tpu.memory_space<smem>>
    %865 = vector.broadcast %864 : f32 to vector<8x128xf32>
    %866 = arith.mulf %863, %865 : vector<8x128xf32>
    %867 = arith.addf %855, %866 : vector<8x128xf32>
    %c6_512 = arith.constant 6 : index
    %c7_513 = arith.constant 7 : index
    %868 = memref.load %arg4[%c6_512, %c7_513] : memref<10x10xf32, #tpu.memory_space<smem>>
    %869 = vector.broadcast %868 : f32 to vector<8x128xf32>
    %870 = arith.mulf %782, %869 : vector<8x128xf32>
    %c6_514 = arith.constant 6 : index
    %c7_515 = arith.constant 7 : index
    %871 = memref.load %arg5[%c6_514, %c7_515] : memref<10x10xf32, #tpu.memory_space<smem>>
    %872 = vector.broadcast %871 : f32 to vector<8x128xf32>
    %873 = arith.addf %870, %872 : vector<8x128xf32>
    %cst_516 = arith.constant 0.000000e+00 : f32
    %874 = vector.broadcast %cst_516 : f32 to vector<8x128xf32>
    %875 = arith.maximumf %873, %874 : vector<8x128xf32>
    %c6_517 = arith.constant 6 : index
    %c7_518 = arith.constant 7 : index
    %876 = memref.load %arg6[%c6_517, %c7_518] : memref<10x10xf32, #tpu.memory_space<smem>>
    %877 = vector.broadcast %876 : f32 to vector<8x128xf32>
    %878 = arith.mulf %875, %877 : vector<8x128xf32>
    %879 = arith.addf %867, %878 : vector<8x128xf32>
    %c6_519 = arith.constant 6 : index
    %c8_520 = arith.constant 8 : index
    %880 = memref.load %arg4[%c6_519, %c8_520] : memref<10x10xf32, #tpu.memory_space<smem>>
    %881 = vector.broadcast %880 : f32 to vector<8x128xf32>
    %882 = arith.mulf %782, %881 : vector<8x128xf32>
    %c6_521 = arith.constant 6 : index
    %c8_522 = arith.constant 8 : index
    %883 = memref.load %arg5[%c6_521, %c8_522] : memref<10x10xf32, #tpu.memory_space<smem>>
    %884 = vector.broadcast %883 : f32 to vector<8x128xf32>
    %885 = arith.addf %882, %884 : vector<8x128xf32>
    %cst_523 = arith.constant 0.000000e+00 : f32
    %886 = vector.broadcast %cst_523 : f32 to vector<8x128xf32>
    %887 = arith.maximumf %885, %886 : vector<8x128xf32>
    %c6_524 = arith.constant 6 : index
    %c8_525 = arith.constant 8 : index
    %888 = memref.load %arg6[%c6_524, %c8_525] : memref<10x10xf32, #tpu.memory_space<smem>>
    %889 = vector.broadcast %888 : f32 to vector<8x128xf32>
    %890 = arith.mulf %887, %889 : vector<8x128xf32>
    %891 = arith.addf %879, %890 : vector<8x128xf32>
    %c6_526 = arith.constant 6 : index
    %c9_527 = arith.constant 9 : index
    %892 = memref.load %arg4[%c6_526, %c9_527] : memref<10x10xf32, #tpu.memory_space<smem>>
    %893 = vector.broadcast %892 : f32 to vector<8x128xf32>
    %894 = arith.mulf %782, %893 : vector<8x128xf32>
    %c6_528 = arith.constant 6 : index
    %c9_529 = arith.constant 9 : index
    %895 = memref.load %arg5[%c6_528, %c9_529] : memref<10x10xf32, #tpu.memory_space<smem>>
    %896 = vector.broadcast %895 : f32 to vector<8x128xf32>
    %897 = arith.addf %894, %896 : vector<8x128xf32>
    %cst_530 = arith.constant 0.000000e+00 : f32
    %898 = vector.broadcast %cst_530 : f32 to vector<8x128xf32>
    %899 = arith.maximumf %897, %898 : vector<8x128xf32>
    %c6_531 = arith.constant 6 : index
    %c9_532 = arith.constant 9 : index
    %900 = memref.load %arg6[%c6_531, %c9_532] : memref<10x10xf32, #tpu.memory_space<smem>>
    %901 = vector.broadcast %900 : f32 to vector<8x128xf32>
    %902 = arith.mulf %899, %901 : vector<8x128xf32>
    %903 = arith.addf %891, %902 : vector<8x128xf32>
    %c6_533 = arith.constant 6 : index
    %904 = memref.load %arg7[%c6_533] : memref<10xf32, #tpu.memory_space<smem>>
    %905 = vector.broadcast %904 : f32 to vector<8x128xf32>
    %906 = arith.addf %903, %905 : vector<8x128xf32>
    %c6_534 = arith.constant 6 : index
    %c0_535 = arith.constant 0 : index
    %c0_536 = arith.constant 0 : index
    %907 = vector.load %arg2[%c6_534, %c0_535, %c0_536] : memref<10x8x128xf32, #tpu.memory_space<vmem>>, vector<1x8x128xf32>
    %908 = vector.shape_cast %907 : vector<1x8x128xf32> to vector<8x128xf32>
    %909 = arith.mulf %906, %908 : vector<8x128xf32>
    %910 = arith.addf %780, %909 : vector<8x128xf32>
    %c7_537 = arith.constant 7 : index
    %c0_538 = arith.constant 0 : index
    %c0_539 = arith.constant 0 : index
    %911 = vector.load %arg1[%c7_537, %c0_538, %c0_539] : memref<10x8x128xf32, #tpu.memory_space<vmem>>, vector<1x8x128xf32>
    %912 = vector.shape_cast %911 : vector<1x8x128xf32> to vector<8x128xf32>
    %cst_540 = arith.constant 0.000000e+00 : f32
    %913 = vector.broadcast %cst_540 : f32 to vector<8x128xf32>
    %c7_541 = arith.constant 7 : index
    %c0_542 = arith.constant 0 : index
    %914 = memref.load %arg4[%c7_541, %c0_542] : memref<10x10xf32, #tpu.memory_space<smem>>
    %915 = vector.broadcast %914 : f32 to vector<8x128xf32>
    %916 = arith.mulf %912, %915 : vector<8x128xf32>
    %c7_543 = arith.constant 7 : index
    %c0_544 = arith.constant 0 : index
    %917 = memref.load %arg5[%c7_543, %c0_544] : memref<10x10xf32, #tpu.memory_space<smem>>
    %918 = vector.broadcast %917 : f32 to vector<8x128xf32>
    %919 = arith.addf %916, %918 : vector<8x128xf32>
    %cst_545 = arith.constant 0.000000e+00 : f32
    %920 = vector.broadcast %cst_545 : f32 to vector<8x128xf32>
    %921 = arith.maximumf %919, %920 : vector<8x128xf32>
    %c7_546 = arith.constant 7 : index
    %c0_547 = arith.constant 0 : index
    %922 = memref.load %arg6[%c7_546, %c0_547] : memref<10x10xf32, #tpu.memory_space<smem>>
    %923 = vector.broadcast %922 : f32 to vector<8x128xf32>
    %924 = arith.mulf %921, %923 : vector<8x128xf32>
    %925 = arith.addf %913, %924 : vector<8x128xf32>
    %c7_548 = arith.constant 7 : index
    %c1_549 = arith.constant 1 : index
    %926 = memref.load %arg4[%c7_548, %c1_549] : memref<10x10xf32, #tpu.memory_space<smem>>
    %927 = vector.broadcast %926 : f32 to vector<8x128xf32>
    %928 = arith.mulf %912, %927 : vector<8x128xf32>
    %c7_550 = arith.constant 7 : index
    %c1_551 = arith.constant 1 : index
    %929 = memref.load %arg5[%c7_550, %c1_551] : memref<10x10xf32, #tpu.memory_space<smem>>
    %930 = vector.broadcast %929 : f32 to vector<8x128xf32>
    %931 = arith.addf %928, %930 : vector<8x128xf32>
    %cst_552 = arith.constant 0.000000e+00 : f32
    %932 = vector.broadcast %cst_552 : f32 to vector<8x128xf32>
    %933 = arith.maximumf %931, %932 : vector<8x128xf32>
    %c7_553 = arith.constant 7 : index
    %c1_554 = arith.constant 1 : index
    %934 = memref.load %arg6[%c7_553, %c1_554] : memref<10x10xf32, #tpu.memory_space<smem>>
    %935 = vector.broadcast %934 : f32 to vector<8x128xf32>
    %936 = arith.mulf %933, %935 : vector<8x128xf32>
    %937 = arith.addf %925, %936 : vector<8x128xf32>
    %c7_555 = arith.constant 7 : index
    %c2_556 = arith.constant 2 : index
    %938 = memref.load %arg4[%c7_555, %c2_556] : memref<10x10xf32, #tpu.memory_space<smem>>
    %939 = vector.broadcast %938 : f32 to vector<8x128xf32>
    %940 = arith.mulf %912, %939 : vector<8x128xf32>
    %c7_557 = arith.constant 7 : index
    %c2_558 = arith.constant 2 : index
    %941 = memref.load %arg5[%c7_557, %c2_558] : memref<10x10xf32, #tpu.memory_space<smem>>
    %942 = vector.broadcast %941 : f32 to vector<8x128xf32>
    %943 = arith.addf %940, %942 : vector<8x128xf32>
    %cst_559 = arith.constant 0.000000e+00 : f32
    %944 = vector.broadcast %cst_559 : f32 to vector<8x128xf32>
    %945 = arith.maximumf %943, %944 : vector<8x128xf32>
    %c7_560 = arith.constant 7 : index
    %c2_561 = arith.constant 2 : index
    %946 = memref.load %arg6[%c7_560, %c2_561] : memref<10x10xf32, #tpu.memory_space<smem>>
    %947 = vector.broadcast %946 : f32 to vector<8x128xf32>
    %948 = arith.mulf %945, %947 : vector<8x128xf32>
    %949 = arith.addf %937, %948 : vector<8x128xf32>
    %c7_562 = arith.constant 7 : index
    %c3_563 = arith.constant 3 : index
    %950 = memref.load %arg4[%c7_562, %c3_563] : memref<10x10xf32, #tpu.memory_space<smem>>
    %951 = vector.broadcast %950 : f32 to vector<8x128xf32>
    %952 = arith.mulf %912, %951 : vector<8x128xf32>
    %c7_564 = arith.constant 7 : index
    %c3_565 = arith.constant 3 : index
    %953 = memref.load %arg5[%c7_564, %c3_565] : memref<10x10xf32, #tpu.memory_space<smem>>
    %954 = vector.broadcast %953 : f32 to vector<8x128xf32>
    %955 = arith.addf %952, %954 : vector<8x128xf32>
    %cst_566 = arith.constant 0.000000e+00 : f32
    %956 = vector.broadcast %cst_566 : f32 to vector<8x128xf32>
    %957 = arith.maximumf %955, %956 : vector<8x128xf32>
    %c7_567 = arith.constant 7 : index
    %c3_568 = arith.constant 3 : index
    %958 = memref.load %arg6[%c7_567, %c3_568] : memref<10x10xf32, #tpu.memory_space<smem>>
    %959 = vector.broadcast %958 : f32 to vector<8x128xf32>
    %960 = arith.mulf %957, %959 : vector<8x128xf32>
    %961 = arith.addf %949, %960 : vector<8x128xf32>
    %c7_569 = arith.constant 7 : index
    %c4_570 = arith.constant 4 : index
    %962 = memref.load %arg4[%c7_569, %c4_570] : memref<10x10xf32, #tpu.memory_space<smem>>
    %963 = vector.broadcast %962 : f32 to vector<8x128xf32>
    %964 = arith.mulf %912, %963 : vector<8x128xf32>
    %c7_571 = arith.constant 7 : index
    %c4_572 = arith.constant 4 : index
    %965 = memref.load %arg5[%c7_571, %c4_572] : memref<10x10xf32, #tpu.memory_space<smem>>
    %966 = vector.broadcast %965 : f32 to vector<8x128xf32>
    %967 = arith.addf %964, %966 : vector<8x128xf32>
    %cst_573 = arith.constant 0.000000e+00 : f32
    %968 = vector.broadcast %cst_573 : f32 to vector<8x128xf32>
    %969 = arith.maximumf %967, %968 : vector<8x128xf32>
    %c7_574 = arith.constant 7 : index
    %c4_575 = arith.constant 4 : index
    %970 = memref.load %arg6[%c7_574, %c4_575] : memref<10x10xf32, #tpu.memory_space<smem>>
    %971 = vector.broadcast %970 : f32 to vector<8x128xf32>
    %972 = arith.mulf %969, %971 : vector<8x128xf32>
    %973 = arith.addf %961, %972 : vector<8x128xf32>
    %c7_576 = arith.constant 7 : index
    %c5_577 = arith.constant 5 : index
    %974 = memref.load %arg4[%c7_576, %c5_577] : memref<10x10xf32, #tpu.memory_space<smem>>
    %975 = vector.broadcast %974 : f32 to vector<8x128xf32>
    %976 = arith.mulf %912, %975 : vector<8x128xf32>
    %c7_578 = arith.constant 7 : index
    %c5_579 = arith.constant 5 : index
    %977 = memref.load %arg5[%c7_578, %c5_579] : memref<10x10xf32, #tpu.memory_space<smem>>
    %978 = vector.broadcast %977 : f32 to vector<8x128xf32>
    %979 = arith.addf %976, %978 : vector<8x128xf32>
    %cst_580 = arith.constant 0.000000e+00 : f32
    %980 = vector.broadcast %cst_580 : f32 to vector<8x128xf32>
    %981 = arith.maximumf %979, %980 : vector<8x128xf32>
    %c7_581 = arith.constant 7 : index
    %c5_582 = arith.constant 5 : index
    %982 = memref.load %arg6[%c7_581, %c5_582] : memref<10x10xf32, #tpu.memory_space<smem>>
    %983 = vector.broadcast %982 : f32 to vector<8x128xf32>
    %984 = arith.mulf %981, %983 : vector<8x128xf32>
    %985 = arith.addf %973, %984 : vector<8x128xf32>
    %c7_583 = arith.constant 7 : index
    %c6_584 = arith.constant 6 : index
    %986 = memref.load %arg4[%c7_583, %c6_584] : memref<10x10xf32, #tpu.memory_space<smem>>
    %987 = vector.broadcast %986 : f32 to vector<8x128xf32>
    %988 = arith.mulf %912, %987 : vector<8x128xf32>
    %c7_585 = arith.constant 7 : index
    %c6_586 = arith.constant 6 : index
    %989 = memref.load %arg5[%c7_585, %c6_586] : memref<10x10xf32, #tpu.memory_space<smem>>
    %990 = vector.broadcast %989 : f32 to vector<8x128xf32>
    %991 = arith.addf %988, %990 : vector<8x128xf32>
    %cst_587 = arith.constant 0.000000e+00 : f32
    %992 = vector.broadcast %cst_587 : f32 to vector<8x128xf32>
    %993 = arith.maximumf %991, %992 : vector<8x128xf32>
    %c7_588 = arith.constant 7 : index
    %c6_589 = arith.constant 6 : index
    %994 = memref.load %arg6[%c7_588, %c6_589] : memref<10x10xf32, #tpu.memory_space<smem>>
    %995 = vector.broadcast %994 : f32 to vector<8x128xf32>
    %996 = arith.mulf %993, %995 : vector<8x128xf32>
    %997 = arith.addf %985, %996 : vector<8x128xf32>
    %c7_590 = arith.constant 7 : index
    %c7_591 = arith.constant 7 : index
    %998 = memref.load %arg4[%c7_590, %c7_591] : memref<10x10xf32, #tpu.memory_space<smem>>
    %999 = vector.broadcast %998 : f32 to vector<8x128xf32>
    %1000 = arith.mulf %912, %999 : vector<8x128xf32>
    %c7_592 = arith.constant 7 : index
    %c7_593 = arith.constant 7 : index
    %1001 = memref.load %arg5[%c7_592, %c7_593] : memref<10x10xf32, #tpu.memory_space<smem>>
    %1002 = vector.broadcast %1001 : f32 to vector<8x128xf32>
    %1003 = arith.addf %1000, %1002 : vector<8x128xf32>
    %cst_594 = arith.constant 0.000000e+00 : f32
    %1004 = vector.broadcast %cst_594 : f32 to vector<8x128xf32>
    %1005 = arith.maximumf %1003, %1004 : vector<8x128xf32>
    %c7_595 = arith.constant 7 : index
    %c7_596 = arith.constant 7 : index
    %1006 = memref.load %arg6[%c7_595, %c7_596] : memref<10x10xf32, #tpu.memory_space<smem>>
    %1007 = vector.broadcast %1006 : f32 to vector<8x128xf32>
    %1008 = arith.mulf %1005, %1007 : vector<8x128xf32>
    %1009 = arith.addf %997, %1008 : vector<8x128xf32>
    %c7_597 = arith.constant 7 : index
    %c8_598 = arith.constant 8 : index
    %1010 = memref.load %arg4[%c7_597, %c8_598] : memref<10x10xf32, #tpu.memory_space<smem>>
    %1011 = vector.broadcast %1010 : f32 to vector<8x128xf32>
    %1012 = arith.mulf %912, %1011 : vector<8x128xf32>
    %c7_599 = arith.constant 7 : index
    %c8_600 = arith.constant 8 : index
    %1013 = memref.load %arg5[%c7_599, %c8_600] : memref<10x10xf32, #tpu.memory_space<smem>>
    %1014 = vector.broadcast %1013 : f32 to vector<8x128xf32>
    %1015 = arith.addf %1012, %1014 : vector<8x128xf32>
    %cst_601 = arith.constant 0.000000e+00 : f32
    %1016 = vector.broadcast %cst_601 : f32 to vector<8x128xf32>
    %1017 = arith.maximumf %1015, %1016 : vector<8x128xf32>
    %c7_602 = arith.constant 7 : index
    %c8_603 = arith.constant 8 : index
    %1018 = memref.load %arg6[%c7_602, %c8_603] : memref<10x10xf32, #tpu.memory_space<smem>>
    %1019 = vector.broadcast %1018 : f32 to vector<8x128xf32>
    %1020 = arith.mulf %1017, %1019 : vector<8x128xf32>
    %1021 = arith.addf %1009, %1020 : vector<8x128xf32>
    %c7_604 = arith.constant 7 : index
    %c9_605 = arith.constant 9 : index
    %1022 = memref.load %arg4[%c7_604, %c9_605] : memref<10x10xf32, #tpu.memory_space<smem>>
    %1023 = vector.broadcast %1022 : f32 to vector<8x128xf32>
    %1024 = arith.mulf %912, %1023 : vector<8x128xf32>
    %c7_606 = arith.constant 7 : index
    %c9_607 = arith.constant 9 : index
    %1025 = memref.load %arg5[%c7_606, %c9_607] : memref<10x10xf32, #tpu.memory_space<smem>>
    %1026 = vector.broadcast %1025 : f32 to vector<8x128xf32>
    %1027 = arith.addf %1024, %1026 : vector<8x128xf32>
    %cst_608 = arith.constant 0.000000e+00 : f32
    %1028 = vector.broadcast %cst_608 : f32 to vector<8x128xf32>
    %1029 = arith.maximumf %1027, %1028 : vector<8x128xf32>
    %c7_609 = arith.constant 7 : index
    %c9_610 = arith.constant 9 : index
    %1030 = memref.load %arg6[%c7_609, %c9_610] : memref<10x10xf32, #tpu.memory_space<smem>>
    %1031 = vector.broadcast %1030 : f32 to vector<8x128xf32>
    %1032 = arith.mulf %1029, %1031 : vector<8x128xf32>
    %1033 = arith.addf %1021, %1032 : vector<8x128xf32>
    %c7_611 = arith.constant 7 : index
    %1034 = memref.load %arg7[%c7_611] : memref<10xf32, #tpu.memory_space<smem>>
    %1035 = vector.broadcast %1034 : f32 to vector<8x128xf32>
    %1036 = arith.addf %1033, %1035 : vector<8x128xf32>
    %c7_612 = arith.constant 7 : index
    %c0_613 = arith.constant 0 : index
    %c0_614 = arith.constant 0 : index
    %1037 = vector.load %arg2[%c7_612, %c0_613, %c0_614] : memref<10x8x128xf32, #tpu.memory_space<vmem>>, vector<1x8x128xf32>
    %1038 = vector.shape_cast %1037 : vector<1x8x128xf32> to vector<8x128xf32>
    %1039 = arith.mulf %1036, %1038 : vector<8x128xf32>
    %1040 = arith.addf %910, %1039 : vector<8x128xf32>
    %c8_615 = arith.constant 8 : index
    %c0_616 = arith.constant 0 : index
    %c0_617 = arith.constant 0 : index
    %1041 = vector.load %arg1[%c8_615, %c0_616, %c0_617] : memref<10x8x128xf32, #tpu.memory_space<vmem>>, vector<1x8x128xf32>
    %1042 = vector.shape_cast %1041 : vector<1x8x128xf32> to vector<8x128xf32>
    %cst_618 = arith.constant 0.000000e+00 : f32
    %1043 = vector.broadcast %cst_618 : f32 to vector<8x128xf32>
    %c8_619 = arith.constant 8 : index
    %c0_620 = arith.constant 0 : index
    %1044 = memref.load %arg4[%c8_619, %c0_620] : memref<10x10xf32, #tpu.memory_space<smem>>
    %1045 = vector.broadcast %1044 : f32 to vector<8x128xf32>
    %1046 = arith.mulf %1042, %1045 : vector<8x128xf32>
    %c8_621 = arith.constant 8 : index
    %c0_622 = arith.constant 0 : index
    %1047 = memref.load %arg5[%c8_621, %c0_622] : memref<10x10xf32, #tpu.memory_space<smem>>
    %1048 = vector.broadcast %1047 : f32 to vector<8x128xf32>
    %1049 = arith.addf %1046, %1048 : vector<8x128xf32>
    %cst_623 = arith.constant 0.000000e+00 : f32
    %1050 = vector.broadcast %cst_623 : f32 to vector<8x128xf32>
    %1051 = arith.maximumf %1049, %1050 : vector<8x128xf32>
    %c8_624 = arith.constant 8 : index
    %c0_625 = arith.constant 0 : index
    %1052 = memref.load %arg6[%c8_624, %c0_625] : memref<10x10xf32, #tpu.memory_space<smem>>
    %1053 = vector.broadcast %1052 : f32 to vector<8x128xf32>
    %1054 = arith.mulf %1051, %1053 : vector<8x128xf32>
    %1055 = arith.addf %1043, %1054 : vector<8x128xf32>
    %c8_626 = arith.constant 8 : index
    %c1_627 = arith.constant 1 : index
    %1056 = memref.load %arg4[%c8_626, %c1_627] : memref<10x10xf32, #tpu.memory_space<smem>>
    %1057 = vector.broadcast %1056 : f32 to vector<8x128xf32>
    %1058 = arith.mulf %1042, %1057 : vector<8x128xf32>
    %c8_628 = arith.constant 8 : index
    %c1_629 = arith.constant 1 : index
    %1059 = memref.load %arg5[%c8_628, %c1_629] : memref<10x10xf32, #tpu.memory_space<smem>>
    %1060 = vector.broadcast %1059 : f32 to vector<8x128xf32>
    %1061 = arith.addf %1058, %1060 : vector<8x128xf32>
    %cst_630 = arith.constant 0.000000e+00 : f32
    %1062 = vector.broadcast %cst_630 : f32 to vector<8x128xf32>
    %1063 = arith.maximumf %1061, %1062 : vector<8x128xf32>
    %c8_631 = arith.constant 8 : index
    %c1_632 = arith.constant 1 : index
    %1064 = memref.load %arg6[%c8_631, %c1_632] : memref<10x10xf32, #tpu.memory_space<smem>>
    %1065 = vector.broadcast %1064 : f32 to vector<8x128xf32>
    %1066 = arith.mulf %1063, %1065 : vector<8x128xf32>
    %1067 = arith.addf %1055, %1066 : vector<8x128xf32>
    %c8_633 = arith.constant 8 : index
    %c2_634 = arith.constant 2 : index
    %1068 = memref.load %arg4[%c8_633, %c2_634] : memref<10x10xf32, #tpu.memory_space<smem>>
    %1069 = vector.broadcast %1068 : f32 to vector<8x128xf32>
    %1070 = arith.mulf %1042, %1069 : vector<8x128xf32>
    %c8_635 = arith.constant 8 : index
    %c2_636 = arith.constant 2 : index
    %1071 = memref.load %arg5[%c8_635, %c2_636] : memref<10x10xf32, #tpu.memory_space<smem>>
    %1072 = vector.broadcast %1071 : f32 to vector<8x128xf32>
    %1073 = arith.addf %1070, %1072 : vector<8x128xf32>
    %cst_637 = arith.constant 0.000000e+00 : f32
    %1074 = vector.broadcast %cst_637 : f32 to vector<8x128xf32>
    %1075 = arith.maximumf %1073, %1074 : vector<8x128xf32>
    %c8_638 = arith.constant 8 : index
    %c2_639 = arith.constant 2 : index
    %1076 = memref.load %arg6[%c8_638, %c2_639] : memref<10x10xf32, #tpu.memory_space<smem>>
    %1077 = vector.broadcast %1076 : f32 to vector<8x128xf32>
    %1078 = arith.mulf %1075, %1077 : vector<8x128xf32>
    %1079 = arith.addf %1067, %1078 : vector<8x128xf32>
    %c8_640 = arith.constant 8 : index
    %c3_641 = arith.constant 3 : index
    %1080 = memref.load %arg4[%c8_640, %c3_641] : memref<10x10xf32, #tpu.memory_space<smem>>
    %1081 = vector.broadcast %1080 : f32 to vector<8x128xf32>
    %1082 = arith.mulf %1042, %1081 : vector<8x128xf32>
    %c8_642 = arith.constant 8 : index
    %c3_643 = arith.constant 3 : index
    %1083 = memref.load %arg5[%c8_642, %c3_643] : memref<10x10xf32, #tpu.memory_space<smem>>
    %1084 = vector.broadcast %1083 : f32 to vector<8x128xf32>
    %1085 = arith.addf %1082, %1084 : vector<8x128xf32>
    %cst_644 = arith.constant 0.000000e+00 : f32
    %1086 = vector.broadcast %cst_644 : f32 to vector<8x128xf32>
    %1087 = arith.maximumf %1085, %1086 : vector<8x128xf32>
    %c8_645 = arith.constant 8 : index
    %c3_646 = arith.constant 3 : index
    %1088 = memref.load %arg6[%c8_645, %c3_646] : memref<10x10xf32, #tpu.memory_space<smem>>
    %1089 = vector.broadcast %1088 : f32 to vector<8x128xf32>
    %1090 = arith.mulf %1087, %1089 : vector<8x128xf32>
    %1091 = arith.addf %1079, %1090 : vector<8x128xf32>
    %c8_647 = arith.constant 8 : index
    %c4_648 = arith.constant 4 : index
    %1092 = memref.load %arg4[%c8_647, %c4_648] : memref<10x10xf32, #tpu.memory_space<smem>>
    %1093 = vector.broadcast %1092 : f32 to vector<8x128xf32>
    %1094 = arith.mulf %1042, %1093 : vector<8x128xf32>
    %c8_649 = arith.constant 8 : index
    %c4_650 = arith.constant 4 : index
    %1095 = memref.load %arg5[%c8_649, %c4_650] : memref<10x10xf32, #tpu.memory_space<smem>>
    %1096 = vector.broadcast %1095 : f32 to vector<8x128xf32>
    %1097 = arith.addf %1094, %1096 : vector<8x128xf32>
    %cst_651 = arith.constant 0.000000e+00 : f32
    %1098 = vector.broadcast %cst_651 : f32 to vector<8x128xf32>
    %1099 = arith.maximumf %1097, %1098 : vector<8x128xf32>
    %c8_652 = arith.constant 8 : index
    %c4_653 = arith.constant 4 : index
    %1100 = memref.load %arg6[%c8_652, %c4_653] : memref<10x10xf32, #tpu.memory_space<smem>>
    %1101 = vector.broadcast %1100 : f32 to vector<8x128xf32>
    %1102 = arith.mulf %1099, %1101 : vector<8x128xf32>
    %1103 = arith.addf %1091, %1102 : vector<8x128xf32>
    %c8_654 = arith.constant 8 : index
    %c5_655 = arith.constant 5 : index
    %1104 = memref.load %arg4[%c8_654, %c5_655] : memref<10x10xf32, #tpu.memory_space<smem>>
    %1105 = vector.broadcast %1104 : f32 to vector<8x128xf32>
    %1106 = arith.mulf %1042, %1105 : vector<8x128xf32>
    %c8_656 = arith.constant 8 : index
    %c5_657 = arith.constant 5 : index
    %1107 = memref.load %arg5[%c8_656, %c5_657] : memref<10x10xf32, #tpu.memory_space<smem>>
    %1108 = vector.broadcast %1107 : f32 to vector<8x128xf32>
    %1109 = arith.addf %1106, %1108 : vector<8x128xf32>
    %cst_658 = arith.constant 0.000000e+00 : f32
    %1110 = vector.broadcast %cst_658 : f32 to vector<8x128xf32>
    %1111 = arith.maximumf %1109, %1110 : vector<8x128xf32>
    %c8_659 = arith.constant 8 : index
    %c5_660 = arith.constant 5 : index
    %1112 = memref.load %arg6[%c8_659, %c5_660] : memref<10x10xf32, #tpu.memory_space<smem>>
    %1113 = vector.broadcast %1112 : f32 to vector<8x128xf32>
    %1114 = arith.mulf %1111, %1113 : vector<8x128xf32>
    %1115 = arith.addf %1103, %1114 : vector<8x128xf32>
    %c8_661 = arith.constant 8 : index
    %c6_662 = arith.constant 6 : index
    %1116 = memref.load %arg4[%c8_661, %c6_662] : memref<10x10xf32, #tpu.memory_space<smem>>
    %1117 = vector.broadcast %1116 : f32 to vector<8x128xf32>
    %1118 = arith.mulf %1042, %1117 : vector<8x128xf32>
    %c8_663 = arith.constant 8 : index
    %c6_664 = arith.constant 6 : index
    %1119 = memref.load %arg5[%c8_663, %c6_664] : memref<10x10xf32, #tpu.memory_space<smem>>
    %1120 = vector.broadcast %1119 : f32 to vector<8x128xf32>
    %1121 = arith.addf %1118, %1120 : vector<8x128xf32>
    %cst_665 = arith.constant 0.000000e+00 : f32
    %1122 = vector.broadcast %cst_665 : f32 to vector<8x128xf32>
    %1123 = arith.maximumf %1121, %1122 : vector<8x128xf32>
    %c8_666 = arith.constant 8 : index
    %c6_667 = arith.constant 6 : index
    %1124 = memref.load %arg6[%c8_666, %c6_667] : memref<10x10xf32, #tpu.memory_space<smem>>
    %1125 = vector.broadcast %1124 : f32 to vector<8x128xf32>
    %1126 = arith.mulf %1123, %1125 : vector<8x128xf32>
    %1127 = arith.addf %1115, %1126 : vector<8x128xf32>
    %c8_668 = arith.constant 8 : index
    %c7_669 = arith.constant 7 : index
    %1128 = memref.load %arg4[%c8_668, %c7_669] : memref<10x10xf32, #tpu.memory_space<smem>>
    %1129 = vector.broadcast %1128 : f32 to vector<8x128xf32>
    %1130 = arith.mulf %1042, %1129 : vector<8x128xf32>
    %c8_670 = arith.constant 8 : index
    %c7_671 = arith.constant 7 : index
    %1131 = memref.load %arg5[%c8_670, %c7_671] : memref<10x10xf32, #tpu.memory_space<smem>>
    %1132 = vector.broadcast %1131 : f32 to vector<8x128xf32>
    %1133 = arith.addf %1130, %1132 : vector<8x128xf32>
    %cst_672 = arith.constant 0.000000e+00 : f32
    %1134 = vector.broadcast %cst_672 : f32 to vector<8x128xf32>
    %1135 = arith.maximumf %1133, %1134 : vector<8x128xf32>
    %c8_673 = arith.constant 8 : index
    %c7_674 = arith.constant 7 : index
    %1136 = memref.load %arg6[%c8_673, %c7_674] : memref<10x10xf32, #tpu.memory_space<smem>>
    %1137 = vector.broadcast %1136 : f32 to vector<8x128xf32>
    %1138 = arith.mulf %1135, %1137 : vector<8x128xf32>
    %1139 = arith.addf %1127, %1138 : vector<8x128xf32>
    %c8_675 = arith.constant 8 : index
    %c8_676 = arith.constant 8 : index
    %1140 = memref.load %arg4[%c8_675, %c8_676] : memref<10x10xf32, #tpu.memory_space<smem>>
    %1141 = vector.broadcast %1140 : f32 to vector<8x128xf32>
    %1142 = arith.mulf %1042, %1141 : vector<8x128xf32>
    %c8_677 = arith.constant 8 : index
    %c8_678 = arith.constant 8 : index
    %1143 = memref.load %arg5[%c8_677, %c8_678] : memref<10x10xf32, #tpu.memory_space<smem>>
    %1144 = vector.broadcast %1143 : f32 to vector<8x128xf32>
    %1145 = arith.addf %1142, %1144 : vector<8x128xf32>
    %cst_679 = arith.constant 0.000000e+00 : f32
    %1146 = vector.broadcast %cst_679 : f32 to vector<8x128xf32>
    %1147 = arith.maximumf %1145, %1146 : vector<8x128xf32>
    %c8_680 = arith.constant 8 : index
    %c8_681 = arith.constant 8 : index
    %1148 = memref.load %arg6[%c8_680, %c8_681] : memref<10x10xf32, #tpu.memory_space<smem>>
    %1149 = vector.broadcast %1148 : f32 to vector<8x128xf32>
    %1150 = arith.mulf %1147, %1149 : vector<8x128xf32>
    %1151 = arith.addf %1139, %1150 : vector<8x128xf32>
    %c8_682 = arith.constant 8 : index
    %c9_683 = arith.constant 9 : index
    %1152 = memref.load %arg4[%c8_682, %c9_683] : memref<10x10xf32, #tpu.memory_space<smem>>
    %1153 = vector.broadcast %1152 : f32 to vector<8x128xf32>
    %1154 = arith.mulf %1042, %1153 : vector<8x128xf32>
    %c8_684 = arith.constant 8 : index
    %c9_685 = arith.constant 9 : index
    %1155 = memref.load %arg5[%c8_684, %c9_685] : memref<10x10xf32, #tpu.memory_space<smem>>
    %1156 = vector.broadcast %1155 : f32 to vector<8x128xf32>
    %1157 = arith.addf %1154, %1156 : vector<8x128xf32>
    %cst_686 = arith.constant 0.000000e+00 : f32
    %1158 = vector.broadcast %cst_686 : f32 to vector<8x128xf32>
    %1159 = arith.maximumf %1157, %1158 : vector<8x128xf32>
    %c8_687 = arith.constant 8 : index
    %c9_688 = arith.constant 9 : index
    %1160 = memref.load %arg6[%c8_687, %c9_688] : memref<10x10xf32, #tpu.memory_space<smem>>
    %1161 = vector.broadcast %1160 : f32 to vector<8x128xf32>
    %1162 = arith.mulf %1159, %1161 : vector<8x128xf32>
    %1163 = arith.addf %1151, %1162 : vector<8x128xf32>
    %c8_689 = arith.constant 8 : index
    %1164 = memref.load %arg7[%c8_689] : memref<10xf32, #tpu.memory_space<smem>>
    %1165 = vector.broadcast %1164 : f32 to vector<8x128xf32>
    %1166 = arith.addf %1163, %1165 : vector<8x128xf32>
    %c8_690 = arith.constant 8 : index
    %c0_691 = arith.constant 0 : index
    %c0_692 = arith.constant 0 : index
    %1167 = vector.load %arg2[%c8_690, %c0_691, %c0_692] : memref<10x8x128xf32, #tpu.memory_space<vmem>>, vector<1x8x128xf32>
    %1168 = vector.shape_cast %1167 : vector<1x8x128xf32> to vector<8x128xf32>
    %1169 = arith.mulf %1166, %1168 : vector<8x128xf32>
    %1170 = arith.addf %1040, %1169 : vector<8x128xf32>
    %c9_693 = arith.constant 9 : index
    %c0_694 = arith.constant 0 : index
    %c0_695 = arith.constant 0 : index
    %1171 = vector.load %arg1[%c9_693, %c0_694, %c0_695] : memref<10x8x128xf32, #tpu.memory_space<vmem>>, vector<1x8x128xf32>
    %1172 = vector.shape_cast %1171 : vector<1x8x128xf32> to vector<8x128xf32>
    %cst_696 = arith.constant 0.000000e+00 : f32
    %1173 = vector.broadcast %cst_696 : f32 to vector<8x128xf32>
    %c9_697 = arith.constant 9 : index
    %c0_698 = arith.constant 0 : index
    %1174 = memref.load %arg4[%c9_697, %c0_698] : memref<10x10xf32, #tpu.memory_space<smem>>
    %1175 = vector.broadcast %1174 : f32 to vector<8x128xf32>
    %1176 = arith.mulf %1172, %1175 : vector<8x128xf32>
    %c9_699 = arith.constant 9 : index
    %c0_700 = arith.constant 0 : index
    %1177 = memref.load %arg5[%c9_699, %c0_700] : memref<10x10xf32, #tpu.memory_space<smem>>
    %1178 = vector.broadcast %1177 : f32 to vector<8x128xf32>
    %1179 = arith.addf %1176, %1178 : vector<8x128xf32>
    %cst_701 = arith.constant 0.000000e+00 : f32
    %1180 = vector.broadcast %cst_701 : f32 to vector<8x128xf32>
    %1181 = arith.maximumf %1179, %1180 : vector<8x128xf32>
    %c9_702 = arith.constant 9 : index
    %c0_703 = arith.constant 0 : index
    %1182 = memref.load %arg6[%c9_702, %c0_703] : memref<10x10xf32, #tpu.memory_space<smem>>
    %1183 = vector.broadcast %1182 : f32 to vector<8x128xf32>
    %1184 = arith.mulf %1181, %1183 : vector<8x128xf32>
    %1185 = arith.addf %1173, %1184 : vector<8x128xf32>
    %c9_704 = arith.constant 9 : index
    %c1_705 = arith.constant 1 : index
    %1186 = memref.load %arg4[%c9_704, %c1_705] : memref<10x10xf32, #tpu.memory_space<smem>>
    %1187 = vector.broadcast %1186 : f32 to vector<8x128xf32>
    %1188 = arith.mulf %1172, %1187 : vector<8x128xf32>
    %c9_706 = arith.constant 9 : index
    %c1_707 = arith.constant 1 : index
    %1189 = memref.load %arg5[%c9_706, %c1_707] : memref<10x10xf32, #tpu.memory_space<smem>>
    %1190 = vector.broadcast %1189 : f32 to vector<8x128xf32>
    %1191 = arith.addf %1188, %1190 : vector<8x128xf32>
    %cst_708 = arith.constant 0.000000e+00 : f32
    %1192 = vector.broadcast %cst_708 : f32 to vector<8x128xf32>
    %1193 = arith.maximumf %1191, %1192 : vector<8x128xf32>
    %c9_709 = arith.constant 9 : index
    %c1_710 = arith.constant 1 : index
    %1194 = memref.load %arg6[%c9_709, %c1_710] : memref<10x10xf32, #tpu.memory_space<smem>>
    %1195 = vector.broadcast %1194 : f32 to vector<8x128xf32>
    %1196 = arith.mulf %1193, %1195 : vector<8x128xf32>
    %1197 = arith.addf %1185, %1196 : vector<8x128xf32>
    %c9_711 = arith.constant 9 : index
    %c2_712 = arith.constant 2 : index
    %1198 = memref.load %arg4[%c9_711, %c2_712] : memref<10x10xf32, #tpu.memory_space<smem>>
    %1199 = vector.broadcast %1198 : f32 to vector<8x128xf32>
    %1200 = arith.mulf %1172, %1199 : vector<8x128xf32>
    %c9_713 = arith.constant 9 : index
    %c2_714 = arith.constant 2 : index
    %1201 = memref.load %arg5[%c9_713, %c2_714] : memref<10x10xf32, #tpu.memory_space<smem>>
    %1202 = vector.broadcast %1201 : f32 to vector<8x128xf32>
    %1203 = arith.addf %1200, %1202 : vector<8x128xf32>
    %cst_715 = arith.constant 0.000000e+00 : f32
    %1204 = vector.broadcast %cst_715 : f32 to vector<8x128xf32>
    %1205 = arith.maximumf %1203, %1204 : vector<8x128xf32>
    %c9_716 = arith.constant 9 : index
    %c2_717 = arith.constant 2 : index
    %1206 = memref.load %arg6[%c9_716, %c2_717] : memref<10x10xf32, #tpu.memory_space<smem>>
    %1207 = vector.broadcast %1206 : f32 to vector<8x128xf32>
    %1208 = arith.mulf %1205, %1207 : vector<8x128xf32>
    %1209 = arith.addf %1197, %1208 : vector<8x128xf32>
    %c9_718 = arith.constant 9 : index
    %c3_719 = arith.constant 3 : index
    %1210 = memref.load %arg4[%c9_718, %c3_719] : memref<10x10xf32, #tpu.memory_space<smem>>
    %1211 = vector.broadcast %1210 : f32 to vector<8x128xf32>
    %1212 = arith.mulf %1172, %1211 : vector<8x128xf32>
    %c9_720 = arith.constant 9 : index
    %c3_721 = arith.constant 3 : index
    %1213 = memref.load %arg5[%c9_720, %c3_721] : memref<10x10xf32, #tpu.memory_space<smem>>
    %1214 = vector.broadcast %1213 : f32 to vector<8x128xf32>
    %1215 = arith.addf %1212, %1214 : vector<8x128xf32>
    %cst_722 = arith.constant 0.000000e+00 : f32
    %1216 = vector.broadcast %cst_722 : f32 to vector<8x128xf32>
    %1217 = arith.maximumf %1215, %1216 : vector<8x128xf32>
    %c9_723 = arith.constant 9 : index
    %c3_724 = arith.constant 3 : index
    %1218 = memref.load %arg6[%c9_723, %c3_724] : memref<10x10xf32, #tpu.memory_space<smem>>
    %1219 = vector.broadcast %1218 : f32 to vector<8x128xf32>
    %1220 = arith.mulf %1217, %1219 : vector<8x128xf32>
    %1221 = arith.addf %1209, %1220 : vector<8x128xf32>
    %c9_725 = arith.constant 9 : index
    %c4_726 = arith.constant 4 : index
    %1222 = memref.load %arg4[%c9_725, %c4_726] : memref<10x10xf32, #tpu.memory_space<smem>>
    %1223 = vector.broadcast %1222 : f32 to vector<8x128xf32>
    %1224 = arith.mulf %1172, %1223 : vector<8x128xf32>
    %c9_727 = arith.constant 9 : index
    %c4_728 = arith.constant 4 : index
    %1225 = memref.load %arg5[%c9_727, %c4_728] : memref<10x10xf32, #tpu.memory_space<smem>>
    %1226 = vector.broadcast %1225 : f32 to vector<8x128xf32>
    %1227 = arith.addf %1224, %1226 : vector<8x128xf32>
    %cst_729 = arith.constant 0.000000e+00 : f32
    %1228 = vector.broadcast %cst_729 : f32 to vector<8x128xf32>
    %1229 = arith.maximumf %1227, %1228 : vector<8x128xf32>
    %c9_730 = arith.constant 9 : index
    %c4_731 = arith.constant 4 : index
    %1230 = memref.load %arg6[%c9_730, %c4_731] : memref<10x10xf32, #tpu.memory_space<smem>>
    %1231 = vector.broadcast %1230 : f32 to vector<8x128xf32>
    %1232 = arith.mulf %1229, %1231 : vector<8x128xf32>
    %1233 = arith.addf %1221, %1232 : vector<8x128xf32>
    %c9_732 = arith.constant 9 : index
    %c5_733 = arith.constant 5 : index
    %1234 = memref.load %arg4[%c9_732, %c5_733] : memref<10x10xf32, #tpu.memory_space<smem>>
    %1235 = vector.broadcast %1234 : f32 to vector<8x128xf32>
    %1236 = arith.mulf %1172, %1235 : vector<8x128xf32>
    %c9_734 = arith.constant 9 : index
    %c5_735 = arith.constant 5 : index
    %1237 = memref.load %arg5[%c9_734, %c5_735] : memref<10x10xf32, #tpu.memory_space<smem>>
    %1238 = vector.broadcast %1237 : f32 to vector<8x128xf32>
    %1239 = arith.addf %1236, %1238 : vector<8x128xf32>
    %cst_736 = arith.constant 0.000000e+00 : f32
    %1240 = vector.broadcast %cst_736 : f32 to vector<8x128xf32>
    %1241 = arith.maximumf %1239, %1240 : vector<8x128xf32>
    %c9_737 = arith.constant 9 : index
    %c5_738 = arith.constant 5 : index
    %1242 = memref.load %arg6[%c9_737, %c5_738] : memref<10x10xf32, #tpu.memory_space<smem>>
    %1243 = vector.broadcast %1242 : f32 to vector<8x128xf32>
    %1244 = arith.mulf %1241, %1243 : vector<8x128xf32>
    %1245 = arith.addf %1233, %1244 : vector<8x128xf32>
    %c9_739 = arith.constant 9 : index
    %c6_740 = arith.constant 6 : index
    %1246 = memref.load %arg4[%c9_739, %c6_740] : memref<10x10xf32, #tpu.memory_space<smem>>
    %1247 = vector.broadcast %1246 : f32 to vector<8x128xf32>
    %1248 = arith.mulf %1172, %1247 : vector<8x128xf32>
    %c9_741 = arith.constant 9 : index
    %c6_742 = arith.constant 6 : index
    %1249 = memref.load %arg5[%c9_741, %c6_742] : memref<10x10xf32, #tpu.memory_space<smem>>
    %1250 = vector.broadcast %1249 : f32 to vector<8x128xf32>
    %1251 = arith.addf %1248, %1250 : vector<8x128xf32>
    %cst_743 = arith.constant 0.000000e+00 : f32
    %1252 = vector.broadcast %cst_743 : f32 to vector<8x128xf32>
    %1253 = arith.maximumf %1251, %1252 : vector<8x128xf32>
    %c9_744 = arith.constant 9 : index
    %c6_745 = arith.constant 6 : index
    %1254 = memref.load %arg6[%c9_744, %c6_745] : memref<10x10xf32, #tpu.memory_space<smem>>
    %1255 = vector.broadcast %1254 : f32 to vector<8x128xf32>
    %1256 = arith.mulf %1253, %1255 : vector<8x128xf32>
    %1257 = arith.addf %1245, %1256 : vector<8x128xf32>
    %c9_746 = arith.constant 9 : index
    %c7_747 = arith.constant 7 : index
    %1258 = memref.load %arg4[%c9_746, %c7_747] : memref<10x10xf32, #tpu.memory_space<smem>>
    %1259 = vector.broadcast %1258 : f32 to vector<8x128xf32>
    %1260 = arith.mulf %1172, %1259 : vector<8x128xf32>
    %c9_748 = arith.constant 9 : index
    %c7_749 = arith.constant 7 : index
    %1261 = memref.load %arg5[%c9_748, %c7_749] : memref<10x10xf32, #tpu.memory_space<smem>>
    %1262 = vector.broadcast %1261 : f32 to vector<8x128xf32>
    %1263 = arith.addf %1260, %1262 : vector<8x128xf32>
    %cst_750 = arith.constant 0.000000e+00 : f32
    %1264 = vector.broadcast %cst_750 : f32 to vector<8x128xf32>
    %1265 = arith.maximumf %1263, %1264 : vector<8x128xf32>
    %c9_751 = arith.constant 9 : index
    %c7_752 = arith.constant 7 : index
    %1266 = memref.load %arg6[%c9_751, %c7_752] : memref<10x10xf32, #tpu.memory_space<smem>>
    %1267 = vector.broadcast %1266 : f32 to vector<8x128xf32>
    %1268 = arith.mulf %1265, %1267 : vector<8x128xf32>
    %1269 = arith.addf %1257, %1268 : vector<8x128xf32>
    %c9_753 = arith.constant 9 : index
    %c8_754 = arith.constant 8 : index
    %1270 = memref.load %arg4[%c9_753, %c8_754] : memref<10x10xf32, #tpu.memory_space<smem>>
    %1271 = vector.broadcast %1270 : f32 to vector<8x128xf32>
    %1272 = arith.mulf %1172, %1271 : vector<8x128xf32>
    %c9_755 = arith.constant 9 : index
    %c8_756 = arith.constant 8 : index
    %1273 = memref.load %arg5[%c9_755, %c8_756] : memref<10x10xf32, #tpu.memory_space<smem>>
    %1274 = vector.broadcast %1273 : f32 to vector<8x128xf32>
    %1275 = arith.addf %1272, %1274 : vector<8x128xf32>
    %cst_757 = arith.constant 0.000000e+00 : f32
    %1276 = vector.broadcast %cst_757 : f32 to vector<8x128xf32>
    %1277 = arith.maximumf %1275, %1276 : vector<8x128xf32>
    %c9_758 = arith.constant 9 : index
    %c8_759 = arith.constant 8 : index
    %1278 = memref.load %arg6[%c9_758, %c8_759] : memref<10x10xf32, #tpu.memory_space<smem>>
    %1279 = vector.broadcast %1278 : f32 to vector<8x128xf32>
    %1280 = arith.mulf %1277, %1279 : vector<8x128xf32>
    %1281 = arith.addf %1269, %1280 : vector<8x128xf32>
    %c9_760 = arith.constant 9 : index
    %c9_761 = arith.constant 9 : index
    %1282 = memref.load %arg4[%c9_760, %c9_761] : memref<10x10xf32, #tpu.memory_space<smem>>
    %1283 = vector.broadcast %1282 : f32 to vector<8x128xf32>
    %1284 = arith.mulf %1172, %1283 : vector<8x128xf32>
    %c9_762 = arith.constant 9 : index
    %c9_763 = arith.constant 9 : index
    %1285 = memref.load %arg5[%c9_762, %c9_763] : memref<10x10xf32, #tpu.memory_space<smem>>
    %1286 = vector.broadcast %1285 : f32 to vector<8x128xf32>
    %1287 = arith.addf %1284, %1286 : vector<8x128xf32>
    %cst_764 = arith.constant 0.000000e+00 : f32
    %1288 = vector.broadcast %cst_764 : f32 to vector<8x128xf32>
    %1289 = arith.maximumf %1287, %1288 : vector<8x128xf32>
    %c9_765 = arith.constant 9 : index
    %c9_766 = arith.constant 9 : index
    %1290 = memref.load %arg6[%c9_765, %c9_766] : memref<10x10xf32, #tpu.memory_space<smem>>
    %1291 = vector.broadcast %1290 : f32 to vector<8x128xf32>
    %1292 = arith.mulf %1289, %1291 : vector<8x128xf32>
    %1293 = arith.addf %1281, %1292 : vector<8x128xf32>
    %c9_767 = arith.constant 9 : index
    %1294 = memref.load %arg7[%c9_767] : memref<10xf32, #tpu.memory_space<smem>>
    %1295 = vector.broadcast %1294 : f32 to vector<8x128xf32>
    %1296 = arith.addf %1293, %1295 : vector<8x128xf32>
    %c9_768 = arith.constant 9 : index
    %c0_769 = arith.constant 0 : index
    %c0_770 = arith.constant 0 : index
    %1297 = vector.load %arg2[%c9_768, %c0_769, %c0_770] : memref<10x8x128xf32, #tpu.memory_space<vmem>>, vector<1x8x128xf32>
    %1298 = vector.shape_cast %1297 : vector<1x8x128xf32> to vector<8x128xf32>
    %1299 = arith.mulf %1296, %1298 : vector<8x128xf32>
    %1300 = arith.addf %1170, %1299 : vector<8x128xf32>
    %c0_771 = arith.constant 0 : index
    %c0_772 = arith.constant 0 : index
    %1301 = vector.load %arg8[%c0_771, %c0_772] : memref<8x128xf32, #tpu.memory_space<vmem>>, vector<8x128xf32>
    tpu.vector_store %arg8[%c0_771, %c0_772], %1300 {strides = array<i32>} : memref<8x128xf32, #tpu.memory_space<vmem>>, vector<8x128xf32>,
    return
  }
  func.func @transform_0(%arg0: i32) -> (i32, i32, i32) {
    %c0_i32 = arith.constant 0 : i32
    %c0_i32_0 = arith.constant 0 : i32
    %c0_i32_1 = arith.constant 0 : i32
    return %c0_i32, %arg0, %c0_i32_0 : i32, i32, i32
  }
  func.func @transform_1(%arg0: i32) -> (i32, i32, i32) {
    %c0_i32 = arith.constant 0 : i32
    %c0_i32_0 = arith.constant 0 : i32
    %c0_i32_1 = arith.constant 0 : i32
    return %c0_i32, %arg0, %c0_i32_0 : i32, i32, i32
  }
  func.func @transform_2(%arg0: i32) -> (i32, i32) {
    %c0_i32 = arith.constant 0 : i32
    %c0_i32_0 = arith.constant 0 : i32
    return %arg0, %c0_i32 : i32, i32
  }
  func.func @transform_3(%arg0: i32) -> (i32, i32) {
    %c0_i32 = arith.constant 0 : i32
    %c0_i32_0 = arith.constant 0 : i32
    %c0_i32_1 = arith.constant 0 : i32
    return %c0_i32, %c0_i32_0 : i32, i32
  }
  func.func @transform_4(%arg0: i32) -> (i32, i32) {
    %c0_i32 = arith.constant 0 : i32
    %c0_i32_0 = arith.constant 0 : i32
    %c0_i32_1 = arith.constant 0 : i32
    return %c0_i32, %c0_i32_0 : i32, i32
  }
  func.func @transform_5(%arg0: i32) -> (i32, i32) {
    %c0_i32 = arith.constant 0 : i32
    %c0_i32_0 = arith.constant 0 : i32
    %c0_i32_1 = arith.constant 0 : i32
    return %c0_i32, %c0_i32_0 : i32, i32
  }
  func.func @transform_6(%arg0: i32) -> i32 {
    %c0_i32 = arith.constant 0 : i32
    %c0_i32_0 = arith.constant 0 : i32
    return %c0_i32 : i32
  }
  func.func @transform_7(%arg0: i32) -> (i32, i32) {
    %c0_i32 = arith.constant 0 : i32
    %c0_i32_0 = arith.constant 0 : i32
    return %arg0, %c0_i32 : i32, i32
  }
}

</mosaic_0001>

<llo_original>
// kernel: tpu_custom_call.1
$region0: #{tpu_custom_call.1}
  #allocation0 [shape = 'u32[]', space=smem, size = 0x4, offset = 0x4, fixed_abs, tag = 'smem constant byte address 0x4 - core index']
  #allocation1 [shape = 'u32[72,128]{1,0:T(1,128)}', space=vmem, size = 0x9000, scoped, tag = 'internal scratch']
  %s0 = inlined_call_operand.hbm [shape: f32[10,32,128], index: 0, kind: input, shape index: {}]
  %s1 = inlined_call_operand.hbm [shape: f32[10,32,128], index: 1, kind: input, shape index: {}]
  %s2 = inlined_call_operand.hbm [shape: f32[32,128], index: 2, kind: input, shape index: {}]
  %s3 = inlined_call_operand.hbm [shape: f32[10,10], index: 3, kind: input, shape index: {}]
  %s4 = inlined_call_operand.hbm [shape: f32[10,10], index: 4, kind: input, shape index: {}]
  %s5 = inlined_call_operand.hbm [shape: f32[10,10], index: 5, kind: input, shape index: {}]
  %s6 = inlined_call_operand.vmem [shape: f32[10], index: 6, kind: input, shape index: {}]
  %s7 = inlined_call_operand.hbm [shape: f32[32,128], index: 7, kind: output, shape index: {}]
  %s8 = sld [smem:[#allocation0]]
  $region89: #{tpu_custom_call.1} parent=0
    _
  %s10 = ssub.s32 1, %s8
  %s11 = scalar_select 0, %s10, %s8
  $region1: #{tpu_custom_call.1} parent=0
    #allocation2 [shape = 'u8[81920]{0}', space=vmem, size = 0x14000, scoped, tag = 'input window, operand 0']
    #allocation3 [shape = 's32[2]{0}', space=sflag, size = 0x8, scoped, tag = 'scoped memory for tpu_custom_call.1']
    #allocation4 [shape = 's32[2]{0}', space=sflag, size = 0x8, scoped, tag = 'scoped memory for tpu_custom_call.1']
    #allocation5 [shape = 's32[2]{0}', space=sflag, size = 0x8, scoped, tag = 'scoped memory for tpu_custom_call.1']
    #allocation6 [shape = 's32[2]{0}', space=sflag, size = 0x8, scoped, tag = 'scoped memory for tpu_custom_call.1']
    #allocation7 [shape = 'u8[81920]{0}', space=vmem, size = 0x14000, scoped, tag = 'input window, operand 1']
    #allocation8 [shape = 's32[2]{0}', space=sflag, size = 0x8, scoped, tag = 'scoped memory for tpu_custom_call.1']
    #allocation9 [shape = 'u8[8192]{0}', space=vmem, size = 0x2000, scoped, tag = 'input window, operand 2']
    #allocation10 [shape = 'u8[8192]{0}', space=smem, size = 0x2000, scoped, tag = 'input window, operand 3, single buffered']
    #allocation11 [shape = 'u8[8192]{0}', space=smem, size = 0x2000, scoped, tag = 'input window, operand 4, single buffered']
    #allocation12 [shape = 's32[1]{0}', space=sflag, size = 0x4, scoped, tag = 'scoped memory for tpu_custom_call.1']
    #allocation13 [shape = 'u8[8192]{0}', space=smem, size = 0x2000, scoped, tag = 'input window, operand 5, single buffered']
    #allocation14 [shape = 'u8[512]{0}', space=smem, size = 0x200, scoped, tag = 'input window, operand 6, single buffered']
    #allocation15 [shape = 'u8[8192]{0}', space=vmem, size = 0x2000, scoped, tag = 'output window, operand 0']
    %12 = vsyncpa [#allocation3], 0
    %s13 = scalar_lea.sflag [#allocation3], 1
    %14 = vsyncpa %s13, 0
    %15 = vsyncpa [#allocation8], 0
    %s16 = scalar_lea.sflag [#allocation8], 1
    %17 = vsyncpa %s16, 0
    %18 = vsyncpa [#allocation5], 0
    %19 = vsyncpa [#allocation12], 0
    %20 = vsyncpa [#allocation6], 0
    %21 = vsyncpa [#allocation4], 0
    %s22 = scalar_lea.sflag [#allocation4], 1
    %23 = vsyncpa %s22, 0
    loop: start=0, step=1, limit=6
    $region2: #{tpu_custom_call.1} parent=1 // loop_pre_header
      _
    $region3: #{tpu_custom_call.1} parent=1 // loop_header
      %s25 = sphi 0, %s29
      %p26 = scmp.ge.s32.totalorder %s25, 6
      %s35 = sphi 0, %s37
      %s38 = sphi 0, %s35
      %s39 = sphi 0, %s38
      %s55 = sphi 0, %s39
      %s61 = sphi 0, %s63
      %s64 = sphi 0, %s61
      %s65 = sphi 0, %s64
      %s81 = sphi 0, %s65
      %s87 = sphi 0, %s89
      %s90 = sphi 0, %s87
      %s91 = sphi 0, %s90
      %s107 = sphi 0, %s91
      %s111 = sphi 0, %s111
      %s113 = sphi 0, %s111
      %s114 = sphi 0, %s113
      %s128 = sphi 0, %s114
      %s132 = sphi 0, %s132
      %s134 = sphi 0, %s132
      %s135 = sphi 0, %s134
      %s149 = sphi 0, %s135
      %s153 = sphi 0, %s153
      %s155 = sphi 0, %s153
      %s156 = sphi 0, %s155
      %s170 = sphi 0, %s156
      %s174 = sphi 0, %s174
      %s176 = sphi 0, %s174
      %s177 = sphi 0, %s176
      %s191 = sphi 0, %s177
      %s197 = sphi 0, %s199
      %s200 = sphi 0, %s197
      %s201 = sphi 0, %s200
      %s217 = sphi 0, %s201
    $region4: #{tpu_custom_call.1} parent=1 // loop_header_branch
      %28 = sbr.rel (%p26) target = $region8
    $region5: #{tpu_custom_call.1} parent=1 // loop_body
      %s30 = ssub.s32 %s25, 1
      %s31 = ssub.s32 %s25, 2
      %s32 = sadd.s32 %s25, 1
      %s33 = ssub.s32 %s25, %s32
      %p34 = scmp.eq.s32.totalorder %s33, 0
      %s36 = sadd.s32 %s35, 1
      %s37 = scalar_select %p34, %s35, %s36
      %p40 = pneg %p34
      %p41 = scmp.eq.s32.totalorder %s25, 3
      %p42 = por %p40, %p41
      %p43 = scmp.ne.s32.totalorder %s35, %s38
      %p44 = scmp.eq.s32.totalorder %s25, 0
      %p45 = por %p43, %p44
      %p46 = scmp.ne.s32.totalorder %s35, %s38
      %p47 = scmp.eq.s32.totalorder %s30, 3
      %p48 = por %p46, %p47
      %p49 = scmp.ne.s32.totalorder %s38, %s39
      %p50 = scmp.eq.s32.totalorder %s30, 0
      %p51 = por %p49, %p50
      %p52 = scmp.ne.s32.totalorder %s38, %s39
      %p53 = scmp.eq.s32.totalorder %s31, 3
      %p54 = por %p52, %p53
      %p56 = scmp.ne.s32.totalorder %s39, %s55
      %p57 = scmp.eq.s32.totalorder %s31, 0
      %p58 = por %p56, %p57
      %s59 = ssub.s32 %s25, %s32
      %p60 = scmp.eq.s32.totalorder %s59, 0
      %s62 = sadd.s32 %s61, 1
      %s63 = scalar_select %p60, %s61, %s62
      %p66 = pneg %p60
      %p67 = scmp.eq.s32.totalorder %s25, 3
      %p68 = por %p66, %p67
      %p69 = scmp.ne.s32.totalorder %s61, %s64
      %p70 = scmp.eq.s32.totalorder %s25, 0
      %p71 = por %p69, %p70
      %p72 = scmp.ne.s32.totalorder %s61, %s64
      %p73 = scmp.eq.s32.totalorder %s30, 3
      %p74 = por %p72, %p73
      %p75 = scmp.ne.s32.totalorder %s64, %s65
      %p76 = scmp.eq.s32.totalorder %s30, 0
      %p77 = por %p75, %p76
      %p78 = scmp.ne.s32.totalorder %s64, %s65
      %p79 = scmp.eq.s32.totalorder %s31, 3
      %p80 = por %p78, %p79
      %p82 = scmp.ne.s32.totalorder %s65, %s81
      %p83 = scmp.eq.s32.totalorder %s31, 0
      %p84 = por %p82, %p83
      %s85 = ssub.s32 %s25, %s32
      %p86 = scmp.eq.s32.totalorder %s85, 0
      %s88 = sadd.s32 %s87, 1
      %s89 = scalar_select %p86, %s87, %s88
      %p92 = pneg %p86
      %p93 = scmp.eq.s32.totalorder %s25, 3
      %p94 = por %p92, %p93
      %p95 = scmp.ne.s32.totalorder %s87, %s90
      %p96 = scmp.eq.s32.totalorder %s25, 0
      %p97 = por %p95, %p96
      %p98 = scmp.ne.s32.totalorder %s87, %s90
      %p99 = scmp.eq.s32.totalorder %s30, 3
      %p100 = por %p98, %p99
      %p101 = scmp.ne.s32.totalorder %s90, %s91
      %p102 = scmp.eq.s32.totalorder %s30, 0
      %p103 = por %p101, %p102
      %p104 = scmp.ne.s32.totalorder %s90, %s91
      %p105 = scmp.eq.s32.totalorder %s31, 3
      %p106 = por %p104, %p105
      %p108 = scmp.ne.s32.totalorder %s91, %s107
      %p109 = scmp.eq.s32.totalorder %s31, 0
      %p110 = por %p108, %p109
      %s112 = sadd.s32 %s111, 1
      %p115 = scmp.eq.s32.totalorder %s25, 3
      %p116 = scmp.ne.s32.totalorder %s111, %s113
      %p117 = scmp.eq.s32.totalorder %s25, 0
      %p118 = por %p116, %p117
      %p119 = scmp.ne.s32.totalorder %s111, %s113
      %p120 = scmp.eq.s32.totalorder %s30, 3
      %p121 = por %p119, %p120
      %p122 = scmp.ne.s32.totalorder %s113, %s114
      %p123 = scmp.eq.s32.totalorder %s30, 0
      %p124 = por %p122, %p123
      %p125 = scmp.ne.s32.totalorder %s113, %s114
      %p126 = scmp.eq.s32.totalorder %s31, 3
      %p127 = por %p125, %p126
      %p129 = scmp.ne.s32.totalorder %s114, %s128
      %p130 = scmp.eq.s32.totalorder %s31, 0
      %p131 = por %p129, %p130
      %s133 = sadd.s32 %s132, 1
      %p136 = scmp.eq.s32.totalorder %s25, 3
      %p137 = scmp.ne.s32.totalorder %s132, %s134
      %p138 = scmp.eq.s32.totalorder %s25, 0
      %p139 = por %p137, %p138
      %p140 = scmp.ne.s32.totalorder %s132, %s134
      %p141 = scmp.eq.s32.totalorder %s30, 3
      %p142 = por %p140, %p141
      %p143 = scmp.ne.s32.totalorder %s134, %s135
      %p144 = scmp.eq.s32.totalorder %s30, 0
      %p145 = por %p143, %p144
      %p146 = scmp.ne.s32.totalorder %s134, %s135
      %p147 = scmp.eq.s32.totalorder %s31, 3
      %p148 = por %p146, %p147
      %p150 = scmp.ne.s32.totalorder %s135, %s149
      %p151 = scmp.eq.s32.totalorder %s31, 0
      %p152 = por %p150, %p151
      %s154 = sadd.s32 %s153, 1
      %p157 = scmp.eq.s32.totalorder %s25, 3
      %p158 = scmp.ne.s32.totalorder %s153, %s155
      %p159 = scmp.eq.s32.totalorder %s25, 0
      %p160 = por %p158, %p159
      %p161 = scmp.ne.s32.totalorder %s153, %s155
      %p162 = scmp.eq.s32.totalorder %s30, 3
      %p163 = por %p161, %p162
      %p164 = scmp.ne.s32.totalorder %s155, %s156
      %p165 = scmp.eq.s32.totalorder %s30, 0
      %p166 = por %p164, %p165
      %p167 = scmp.ne.s32.totalorder %s155, %s156
      %p168 = scmp.eq.s32.totalorder %s31, 3
      %p169 = por %p167, %p168
      %p171 = scmp.ne.s32.totalorder %s156, %s170
      %p172 = scmp.eq.s32.totalorder %s31, 0
      %p173 = por %p171, %p172
      %s175 = sadd.s32 %s174, 1
      %p178 = scmp.eq.s32.totalorder %s25, 3
      %p179 = scmp.ne.s32.totalorder %s174, %s176
      %p180 = scmp.eq.s32.totalorder %s25, 0
      %p181 = por %p179, %p180
      %p182 = scmp.ne.s32.totalorder %s174, %s176
      %p183 = scmp.eq.s32.totalorder %s30, 3
      %p184 = por %p182, %p183
      %p185 = scmp.ne.s32.totalorder %s176, %s177
      %p186 = scmp.eq.s32.totalorder %s30, 0
      %p187 = por %p185, %p186
      %p188 = scmp.ne.s32.totalorder %s176, %s177
      %p189 = scmp.eq.s32.totalorder %s31, 3
      %p190 = por %p188, %p189
      %p192 = scmp.ne.s32.totalorder %s177, %s191
      %p193 = scmp.eq.s32.totalorder %s31, 0
      %p194 = por %p192, %p193
      %s195 = ssub.s32 %s25, %s32
      %p196 = scmp.eq.s32.totalorder %s195, 0
      %s198 = sadd.s32 %s197, 1
      %s199 = scalar_select %p196, %s197, %s198
      %p202 = pneg %p196
      %p203 = scmp.eq.s32.totalorder %s25, 3
      %p204 = por %p202, %p203
      %p205 = scmp.ne.s32.totalorder %s197, %s200
      %p206 = scmp.eq.s32.totalorder %s25, 0
      %p207 = por %p205, %p206
      %p208 = scmp.ne.s32.totalorder %s197, %s200
      %p209 = scmp.eq.s32.totalorder %s30, 3
      %p210 = por %p208, %p209
      %p211 = scmp.ne.s32.totalorder %s200, %s201
      %p212 = scmp.eq.s32.totalorder %s30, 0
      %p213 = por %p211, %p212
      %p214 = scmp.ne.s32.totalorder %s200, %s201
      %p215 = scmp.eq.s32.totalorder %s31, 3
      %p216 = por %p214, %p215
      %p218 = scmp.ne.s32.totalorder %s201, %s217
      %p219 = scmp.eq.s32.totalorder %s31, 0
      %p220 = por %p218, %p219
      %p221 = scmp.le.s32.totalorder 1, %s25
      %p222 = scmp.lt.s32.totalorder %s25, 5
      %p223 = pnand %p221, %p222
      %p224 = pneg %p223
      // Predicated region
      $region9: #{tpu_custom_call.1} parent=5 // pred_check
        _
      $region10: #{tpu_custom_call.1} parent=5 // pred_check_branch
        %226 = sbr.rel (%p223) target = $region12
      $region11: #{tpu_custom_call.1} parent=5 // pred_region
        %s227 = ssub.s32 %s25, 1
        // Predicated region
        $region13: #{tpu_custom_call.1} parent=11 // pred_check
          %p228 = pneg %p124
        $region14: #{tpu_custom_call.1} parent=11 // pred_check_branch
          %230 = sbr.rel (%p228) target = $region16
        $region15: #{tpu_custom_call.1} parent=11 // pred_region
          %232 = vsyncadd [#allocation5], 0
          %s233 = sshll.u32 %s3, 4
          %s234 = int_to_ptr.hbm [resolvable:$true] %s233
          %239 = dma.hbm_to_smem %s234, 256, [#allocation10], [#allocation5], 128, 128, 8
        $region16: #{tpu_custom_call.1} parent=11 // pred_fallthru
          _
        // Predicated region
        $region17: #{tpu_custom_call.1} parent=11 // pred_check
          %p240 = pneg %p145
        $region18: #{tpu_custom_call.1} parent=11 // pred_check_branch
          %242 = sbr.rel (%p240) target = $region20
        $region19: #{tpu_custom_call.1} parent=11 // pred_region
          %244 = vsyncadd [#allocation12], 0
          %s245 = sshll.u32 %s4, 4
          %s246 = int_to_ptr.hbm [resolvable:$true] %s245
          %251 = dma.hbm_to_smem %s246, 256, [#allocation11], [#allocation12], 128, 128, 8
        $region20: #{tpu_custom_call.1} parent=11 // pred_fallthru
          _
        // Predicated region
        $region21: #{tpu_custom_call.1} parent=11 // pred_check
          %p252 = pneg %p166
        $region22: #{tpu_custom_call.1} parent=11 // pred_check_branch
          %254 = sbr.rel (%p252) target = $region24
        $region23: #{tpu_custom_call.1} parent=11 // pred_region
          %256 = vsyncadd [#allocation12], 0
          %s257 = sshll.u32 %s5, 4
          %s258 = int_to_ptr.hbm [resolvable:$true] %s257
          %263 = dma.hbm_to_smem %s258, 256, [#allocation13], [#allocation12], 128, 128, 8
        $region24: #{tpu_custom_call.1} parent=11 // pred_fallthru
          _
        // Predicated region
        $region25: #{tpu_custom_call.1} parent=11 // pred_check
          %p264 = pneg %p187
        $region26: #{tpu_custom_call.1} parent=11 // pred_check_branch
          %266 = sbr.rel (%p264) target = $region28
        $region27: #{tpu_custom_call.1} parent=11 // pred_region
          %268 = vsyncadd [#allocation6], 0
          %s270 = sshll.u32 %s6, 4
          %s271 = int_to_ptr.vmem [resolvable:$true] %s270
          %273 = dma.vmem_to_smem %s271, 16, [#allocation14], [#allocation6]
        $region28: #{tpu_custom_call.1} parent=11 // pred_fallthru
          _
      $region12: #{tpu_custom_call.1} parent=5 // pred_fallthru
        _
      %p274 = scmp.lt.s32.totalorder %s25, 4
      // Predicated region
      $region29: #{tpu_custom_call.1} parent=5 // pred_check
        %p275 = pneg %p274
      $region30: #{tpu_custom_call.1} parent=5 // pred_check_branch
        %277 = sbr.rel (%p275) target = $region32
      $region31: #{tpu_custom_call.1} parent=5 // pred_region
        // Predicated region
        $region33: #{tpu_custom_call.1} parent=31 // pred_check
          %p278 = pneg %p45
        $region34: #{tpu_custom_call.1} parent=31 // pred_check_branch
          %280 = sbr.rel (%p278) target = $region36
        $region35: #{tpu_custom_call.1} parent=31 // pred_region
          %s281 = sand.u32 %s35, 1
          %s282 = scalar_lea.sflag [#allocation3], %s281
          %s283 = sand.u32 %s35, 1
          %s284 = smul.addr %s283, 80
          %s285 = scalar_lea.vmem [#allocation2], %s284
          %287 = vsyncadd %s282, 0
          %s288 = smul.addr %s25, 8
          %s289 = scalar_lea.hbm %s0, %s288
          %s290 = sshll.u32 %s289, 4
          %s291 = int_to_ptr.hbm [resolvable:$true] %s290
          %s292 = sshll.u32 %s285, 4
          %s293 = int_to_ptr.vmem [resolvable:$true] %s292
          %298 = dma.hbm_to_vmem [thread:$0]  %s291, 1280, %s293, %s282, 512, 128, 8
        $region36: #{tpu_custom_call.1} parent=31 // pred_fallthru
          _
        // Predicated region
        $region37: #{tpu_custom_call.1} parent=31 // pred_check
          %p299 = pneg %p71
        $region38: #{tpu_custom_call.1} parent=31 // pred_check_branch
          %301 = sbr.rel (%p299) target = $region40
        $region39: #{tpu_custom_call.1} parent=31 // pred_region
          %s302 = sand.u32 %s25, 1
          %s303 = scalar_lea.sflag [#allocation8], %s302
          %s304 = sand.u32 %s61, 1
          %s305 = smul.addr %s304, 80
          %s306 = scalar_lea.vmem [#allocation7], %s305
          %308 = vsyncadd %s303, 0
          %s309 = smul.addr %s25, 8
          %s310 = scalar_lea.hbm %s1, %s309
          %s311 = sshll.u32 %s310, 4
          %s312 = int_to_ptr.hbm [resolvable:$true] %s311
          %s313 = sshll.u32 %s306, 4
          %s314 = int_to_ptr.vmem [resolvable:$true] %s313
          %319 = dma.hbm_to_vmem [thread:$0]  %s312, 1280, %s314, %s303, 512, 128, 8
        $region40: #{tpu_custom_call.1} parent=31 // pred_fallthru
          _
        // Predicated region
        $region41: #{tpu_custom_call.1} parent=31 // pred_check
          %p320 = pneg %p97
        $region42: #{tpu_custom_call.1} parent=31 // pred_check_branch
          %322 = sbr.rel (%p320) target = $region44
        $region43: #{tpu_custom_call.1} parent=31 // pred_region
          %s323 = sand.u32 %s25, 1
          %s324 = scalar_lea.sflag [#allocation8], %s323
          %s325 = sand.u32 %s87, 1
          %s326 = smul.addr %s325, 8
          %s327 = scalar_lea.vmem [#allocation9], %s326
          %329 = vsyncadd %s324, 0
          %s330 = smul.addr %s25, 8
          %s331 = scalar_lea.hbm %s2, %s330
          %s333 = sshll.u32 %s331, 4
          %s334 = int_to_ptr.hbm [resolvable:$true] %s333
          %s335 = sshll.u32 %s327, 4
          %s336 = int_to_ptr.vmem [resolvable:$true] %s335
          %338 = dma.hbm_to_vmem [thread:$0]  %s334, 128, %s336, %s324
        $region44: #{tpu_custom_call.1} parent=31 // pred_fallthru
          _
      $region32: #{tpu_custom_call.1} parent=5 // pred_fallthru
        _
      %p339 = scmp.le.s32.totalorder 1, %s25
      %p340 = scmp.lt.s32.totalorder %s25, 5
      %p341 = pnand %p339, %p340
      %p342 = pneg %p341
      // Predicated region
      $region45: #{tpu_custom_call.1} parent=5 // pred_check
        _
      $region46: #{tpu_custom_call.1} parent=5 // pred_check_branch
        %344 = sbr.rel (%p341) target = $region48
      $region47: #{tpu_custom_call.1} parent=5 // pred_region
        %s345 = ssub.s32 %s25, 1
        %s346 = sand.u32 %s38, 1
        %s347 = scalar_lea.sflag [#allocation3], %s346
        %s348 = sand.u32 %s38, 1
        %s349 = smul.addr %s348, 80
        %s350 = scalar_lea.vmem [#allocation2], %s349
        // Predicated region
        $region49: #{tpu_custom_call.1} parent=47 // pred_check
          %p351 = pneg %p51
        $region50: #{tpu_custom_call.1} parent=47 // pred_check_branch
          %353 = sbr.rel (%p351) target = $region52
        $region51: #{tpu_custom_call.1} parent=47 // pred_region
          %355 = dma.done %s347, 1280
        $region52: #{tpu_custom_call.1} parent=47 // pred_fallthru
          _
        %s356 = sand.u32 %s30, 1
        %s357 = scalar_lea.sflag [#allocation8], %s356
        %s358 = sand.u32 %s64, 1
        %s359 = smul.addr %s358, 80
        %s360 = scalar_lea.vmem [#allocation7], %s359
        // Predicated region
        $region53: #{tpu_custom_call.1} parent=47 // pred_check
          %p361 = pneg %p77
        $region54: #{tpu_custom_call.1} parent=47 // pred_check_branch
          %363 = sbr.rel (%p361) target = $region56
        $region55: #{tpu_custom_call.1} parent=47 // pred_region
          %365 = dma.done %s357, 1280
        $region56: #{tpu_custom_call.1} parent=47 // pred_fallthru
          _
        %s366 = sand.u32 %s30, 1
        %s367 = scalar_lea.sflag [#allocation8], %s366
        %s368 = sand.u32 %s90, 1
        %s369 = smul.addr %s368, 8
        %s370 = scalar_lea.vmem [#allocation9], %s369
        // Predicated region
        $region57: #{tpu_custom_call.1} parent=47 // pred_check
          %p371 = pneg %p103
        $region58: #{tpu_custom_call.1} parent=47 // pred_check_branch
          %373 = sbr.rel (%p371) target = $region60
        $region59: #{tpu_custom_call.1} parent=47 // pred_region
          %375 = dma.done %s367, 128
        $region60: #{tpu_custom_call.1} parent=47 // pred_fallthru
          _
        // Predicated region
        $region61: #{tpu_custom_call.1} parent=47 // pred_check
          %p376 = pneg %p124
        $region62: #{tpu_custom_call.1} parent=47 // pred_check_branch
          %378 = sbr.rel (%p376) target = $region64
        $region63: #{tpu_custom_call.1} parent=47 // pred_region
          %380 = dma.done [#allocation5], 256
        $region64: #{tpu_custom_call.1} parent=47 // pred_fallthru
          _
        // Predicated region
        $region65: #{tpu_custom_call.1} parent=47 // pred_check
          %p381 = pneg %p145
        $region66: #{tpu_custom_call.1} parent=47 // pred_check_branch
          %383 = sbr.rel (%p381) target = $region68
        $region67: #{tpu_custom_call.1} parent=47 // pred_region
          %385 = dma.done [#allocation12], 256
        $region68: #{tpu_custom_call.1} parent=47 // pred_fallthru
          _
        // Predicated region
        $region69: #{tpu_custom_call.1} parent=47 // pred_check
          %p386 = pneg %p166
        $region70: #{tpu_custom_call.1} parent=47 // pred_check_branch
          %388 = sbr.rel (%p386) target = $region72
        $region71: #{tpu_custom_call.1} parent=47 // pred_region
          %390 = dma.done [#allocation12], 256
        $region72: #{tpu_custom_call.1} parent=47 // pred_fallthru
          _
        // Predicated region
        $region73: #{tpu_custom_call.1} parent=47 // pred_check
          %p391 = pneg %p187
        $region74: #{tpu_custom_call.1} parent=47 // pred_check_branch
          %393 = sbr.rel (%p391) target = $region76
        $region75: #{tpu_custom_call.1} parent=47 // pred_region
          %395 = dma.done [#allocation6], 16
        $region76: #{tpu_custom_call.1} parent=47 // pred_fallthru
          _
        %396 = sfence
        %s397 = sand.u32 %s38, 1
        %s398 = scalar_lea.sflag [#allocation3], %s397
        %s399 = sand.u32 %s38, 1
        %s400 = smul.addr %s399, 80
        %s401 = scalar_lea.vmem [#allocation2], %s400
        %p402 = pneg %p51
        %p403 = pneg %p48
        %s404 = sand.u32 %s30, 1
        %s405 = scalar_lea.sflag [#allocation8], %s404
        %s406 = sand.u32 %s64, 1
        %s407 = smul.addr %s406, 80
        %s408 = scalar_lea.vmem [#allocation7], %s407
        %p409 = pneg %p77
        %p410 = pneg %p74
        %s411 = sand.u32 %s30, 1
        %s412 = scalar_lea.sflag [#allocation8], %s411
        %s413 = sand.u32 %s90, 1
        %s414 = smul.addr %s413, 8
        %s415 = scalar_lea.vmem [#allocation9], %s414
        %p416 = pneg %p103
        %p417 = pneg %p100
        %p418 = pneg %p124
        %p419 = pneg %p121
        %p420 = pneg %p145
        %p421 = pneg %p142
        %p422 = pneg %p166
        %p423 = pneg %p163
        %p424 = pneg %p187
        %p425 = pneg %p184
        %p426 = pneg %p213
        %p427 = pneg %p210
        %s428 = sand.u32 %s200, 1
        %s429 = scalar_lea.sflag [#allocation4], %s428
        %s430 = sand.u32 %s200, 1
        %s431 = smul.addr %s430, 8
        %s432 = scalar_lea.vmem [#allocation15], %s431
        %v433 = vld [vmem:[%s370] sm:$0xff]
        %v434 = vld [vmem:[%s350] sm:$0xff]
        %s435 = sld [smem:[#allocation10]]
        %v436 = vstv %s435
        %v437 = vmul.f32 %v434, %v436
        %s438 = sld [smem:[#allocation11]]
        %v439 = vstv %s438
        %v440 = vadd.f32 %v437, %v439
        %v441 = vmax.f32 %v440, 0.0
        %s442 = sld [smem:[#allocation13]]
        %v443 = vstv %s442
        %v444 = vmul.f32 %v441, %v443
        %v445 = vadd.f32 %v444, 0.0
        %s446 = sld [smem:[#allocation10 + $0x1]]
        %v447 = vstv %s446
        %v448 = vmul.f32 %v434, %v447
        %s449 = sld [smem:[#allocation11 + $0x1]]
        %v450 = vstv %s449
        %v451 = vadd.f32 %v448, %v450
        %v452 = vmax.f32 %v451, 0.0
        %s453 = sld [smem:[#allocation13 + $0x1]]
        %v454 = vstv %s453
        %v455 = vmul.f32 %v452, %v454
        %v456 = vadd.f32 %v445, %v455
        %s457 = sld [smem:[#allocation10 + $0x2]]
        %v458 = vstv %s457
        %v459 = vmul.f32 %v434, %v458
        %s460 = sld [smem:[#allocation11 + $0x2]]
        %v461 = vstv %s460
        %v462 = vadd.f32 %v459, %v461
        %v463 = vmax.f32 %v462, 0.0
        %s464 = sld [smem:[#allocation13 + $0x2]]
        %v465 = vstv %s464
        %v466 = vmul.f32 %v463, %v465
        %v467 = vadd.f32 %v456, %v466
        %s468 = sld [smem:[#allocation10 + $0x3]]
        %v469 = vstv %s468
        %v470 = vmul.f32 %v434, %v469
        %s471 = sld [smem:[#allocation11 + $0x3]]
        %v472 = vstv %s471
        %v473 = vadd.f32 %v470, %v472
        %v474 = vmax.f32 %v473, 0.0
        %s475 = sld [smem:[#allocation13 + $0x3]]
        %v476 = vstv %s475
        %v477 = vmul.f32 %v474, %v476
        %v478 = vadd.f32 %v467, %v477
        %s479 = sld [smem:[#allocation10 + $0x4]]
        %v480 = vstv %s479
        %v481 = vmul.f32 %v434, %v480
        %s482 = sld [smem:[#allocation11 + $0x4]]
        %v483 = vstv %s482
        %v484 = vadd.f32 %v481, %v483
        %v485 = vmax.f32 %v484, 0.0
        %s486 = sld [smem:[#allocation13 + $0x4]]
        %v487 = vstv %s486
        %v488 = vmul.f32 %v485, %v487
        %v489 = vadd.f32 %v478, %v488
        %s490 = sld [smem:[#allocation10 + $0x5]]
        %v491 = vstv %s490
        %v492 = vmul.f32 %v434, %v491
        %s493 = sld [smem:[#allocation11 + $0x5]]
        %v494 = vstv %s493
        %v495 = vadd.f32 %v492, %v494
        %v496 = vmax.f32 %v495, 0.0
        %s497 = sld [smem:[#allocation13 + $0x5]]
        %v498 = vstv %s497
        %v499 = vmul.f32 %v496, %v498
        %v500 = vadd.f32 %v489, %v499
        %s501 = sld [smem:[#allocation10 + $0x6]]
        %v502 = vstv %s501
        %v503 = vmul.f32 %v434, %v502
        %s504 = sld [smem:[#allocation11 + $0x6]]
        %v505 = vstv %s504
        %v506 = vadd.f32 %v503, %v505
        %v507 = vmax.f32 %v506, 0.0
        %s508 = sld [smem:[#allocation13 + $0x6]]
        %v509 = vstv %s508
        %v510 = vmul.f32 %v507, %v509
        %v511 = vadd.f32 %v500, %v510
        %s512 = sld [smem:[#allocation10 + $0x7]]
        %v513 = vstv %s512
        %v514 = vmul.f32 %v434, %v513
        %s515 = sld [smem:[#allocation11 + $0x7]]
        %v516 = vstv %s515
        %v517 = vadd.f32 %v514, %v516
        %v518 = vmax.f32 %v517, 0.0
        %s519 = sld [smem:[#allocation13 + $0x7]]
        %v520 = vstv %s519
        %v521 = vmul.f32 %v518, %v520
        %v522 = vadd.f32 %v511, %v521
        %s523 = sld [smem:[#allocation10 + $0x8]]
        %v524 = vstv %s523
        %v525 = vmul.f32 %v434, %v524
        %s526 = sld [smem:[#allocation11 + $0x8]]
        %v527 = vstv %s526
        %v528 = vadd.f32 %v525, %v527
        %v529 = vmax.f32 %v528, 0.0
        %s530 = sld [smem:[#allocation13 + $0x8]]
        %v531 = vstv %s530
        %v532 = vmul.f32 %v529, %v531
        %v533 = vadd.f32 %v522, %v532
        %s534 = sld [smem:[#allocation10 + $0x9]]
        %v535 = vstv %s534
        %v536 = vmul.f32 %v434, %v535
        %s537 = sld [smem:[#allocation11 + $0x9]]
        %v538 = vstv %s537
        %v539 = vadd.f32 %v536, %v538
        %v540 = vmax.f32 %v539, 0.0
        %s541 = sld [smem:[#allocation13 + $0x9]]
        %v542 = vstv %s541
        %v543 = vmul.f32 %v540, %v542
        %v544 = vadd.f32 %v533, %v543
        %s545 = sld [smem:[#allocation14]]
        %v546 = vstv %s545
        %v547 = vadd.f32 %v544, %v546
        %v548 = vld [vmem:[%s360] sm:$0xff]
        %v549 = vmul.f32 %v547, %v548
        %v550 = vadd.f32 %v433, %v549
        %s551 = scalar_lea.vmem %s350, 8 [#allocation2]
        %v552 = vld [vmem:[%s551] sm:$0xff]
        %s553 = sld [smem:[#allocation10 + $0x80]]
        %v554 = vstv %s553
        %v555 = vmul.f32 %v552, %v554
        %s556 = sld [smem:[#allocation11 + $0x80]]
        %v557 = vstv %s556
        %v558 = vadd.f32 %v555, %v557
        %v559 = vmax.f32 %v558, 0.0
        %s560 = sld [smem:[#allocation13 + $0x80]]
        %v561 = vstv %s560
        %v562 = vmul.f32 %v559, %v561
        %v563 = vadd.f32 %v562, 0.0
        %s564 = sld [smem:[#allocation10 + $0x81]]
        %v565 = vstv %s564
        %v566 = vmul.f32 %v552, %v565
        %s567 = sld [smem:[#allocation11 + $0x81]]
        %v568 = vstv %s567
        %v569 = vadd.f32 %v566, %v568
        %v570 = vmax.f32 %v569, 0.0
        %s571 = sld [smem:[#allocation13 + $0x81]]
        %v572 = vstv %s571
        %v573 = vmul.f32 %v570, %v572
        %v574 = vadd.f32 %v563, %v573
        %s575 = sld [smem:[#allocation10 + $0x82]]
        %v576 = vstv %s575
        %v577 = vmul.f32 %v552, %v576
        %s578 = sld [smem:[#allocation11 + $0x82]]
        %v579 = vstv %s578
        %v580 = vadd.f32 %v577, %v579
        %v581 = vmax.f32 %v580, 0.0
        %s582 = sld [smem:[#allocation13 + $0x82]]
        %v583 = vstv %s582
        %v584 = vmul.f32 %v581, %v583
        %v585 = vadd.f32 %v574, %v584
        %s586 = sld [smem:[#allocation10 + $0x83]]
        %v587 = vstv %s586
        %v588 = vmul.f32 %v552, %v587
        %s589 = sld [smem:[#allocation11 + $0x83]]
        %v590 = vstv %s589
        %v591 = vadd.f32 %v588, %v590
        %v592 = vmax.f32 %v591, 0.0
        %s593 = sld [smem:[#allocation13 + $0x83]]
        %v594 = vstv %s593
        %v595 = vmul.f32 %v592, %v594
        %v596 = vadd.f32 %v585, %v595
        %s597 = sld [smem:[#allocation10 + $0x84]]
        %v598 = vstv %s597
        %v599 = vmul.f32 %v552, %v598
        %s600 = sld [smem:[#allocation11 + $0x84]]
        %v601 = vstv %s600
        %v602 = vadd.f32 %v599, %v601
        %v603 = vmax.f32 %v602, 0.0
        %s604 = sld [smem:[#allocation13 + $0x84]]
        %v605 = vstv %s604
        %v606 = vmul.f32 %v603, %v605
        %v607 = vadd.f32 %v596, %v606
        %s608 = sld [smem:[#allocation10 + $0x85]]
        %v609 = vstv %s608
        %v610 = vmul.f32 %v552, %v609
        %s611 = sld [smem:[#allocation11 + $0x85]]
        %v612 = vstv %s611
        %v613 = vadd.f32 %v610, %v612
        %v614 = vmax.f32 %v613, 0.0
        %s615 = sld [smem:[#allocation13 + $0x85]]
        %v616 = vstv %s615
        %v617 = vmul.f32 %v614, %v616
        %v618 = vadd.f32 %v607, %v617
        %s619 = sld [smem:[#allocation10 + $0x86]]
        %v620 = vstv %s619
        %v621 = vmul.f32 %v552, %v620
        %s622 = sld [smem:[#allocation11 + $0x86]]
        %v623 = vstv %s622
        %v624 = vadd.f32 %v621, %v623
        %v625 = vmax.f32 %v624, 0.0
        %s626 = sld [smem:[#allocation13 + $0x86]]
        %v627 = vstv %s626
        %v628 = vmul.f32 %v625, %v627
        %v629 = vadd.f32 %v618, %v628
        %s630 = sld [smem:[#allocation10 + $0x87]]
        %v631 = vstv %s630
        %v632 = vmul.f32 %v552, %v631
        %s633 = sld [smem:[#allocation11 + $0x87]]
        %v634 = vstv %s633
        %v635 = vadd.f32 %v632, %v634
        %v636 = vmax.f32 %v635, 0.0
        %s637 = sld [smem:[#allocation13 + $0x87]]
        %v638 = vstv %s637
        %v639 = vmul.f32 %v636, %v638
        %v640 = vadd.f32 %v629, %v639
        %s641 = sld [smem:[#allocation10 + $0x88]]
        %v642 = vstv %s641
        %v643 = vmul.f32 %v552, %v642
        %s644 = sld [smem:[#allocation11 + $0x88]]
        %v645 = vstv %s644
        %v646 = vadd.f32 %v643, %v645
        %v647 = vmax.f32 %v646, 0.0
        %s648 = sld [smem:[#allocation13 + $0x88]]
        %v649 = vstv %s648
        %v650 = vmul.f32 %v647, %v649
        %v651 = vadd.f32 %v640, %v650
        %s652 = sld [smem:[#allocation10 + $0x89]]
        %v653 = vstv %s652
        %v654 = vmul.f32 %v552, %v653
        %s655 = sld [smem:[#allocation11 + $0x89]]
        %v656 = vstv %s655
        %v657 = vadd.f32 %v654, %v656
        %v658 = vmax.f32 %v657, 0.0
        %s659 = sld [smem:[#allocation13 + $0x89]]
        %v660 = vstv %s659
        %v661 = vmul.f32 %v658, %v660
        %v662 = vadd.f32 %v651, %v661
        %s663 = sld [smem:[#allocation14 + $0x1]]
        %v664 = vstv %s663
        %v665 = vadd.f32 %v662, %v664
        %s666 = scalar_lea.vmem %s360, 8 [#allocation7]
        %v667 = vld [vmem:[%s666] sm:$0xff]
        %v668 = vmul.f32 %v665, %v667
        %v669 = vadd.f32 %v550, %v668
        %s670 = scalar_lea.vmem %s350, 16 [#allocation2]
        %v671 = vld [vmem:[%s670] sm:$0xff]
        %s672 = sld [smem:[#allocation10 + $0x100]]
        %v673 = vstv %s672
        %v674 = vmul.f32 %v671, %v673
        %s675 = sld [smem:[#allocation11 + $0x100]]
        %v676 = vstv %s675
        %v677 = vadd.f32 %v674, %v676
        %v678 = vmax.f32 %v677, 0.0
        %s679 = sld [smem:[#allocation13 + $0x100]]
        %v680 = vstv %s679
        %v681 = vmul.f32 %v678, %v680
        %v682 = vadd.f32 %v681, 0.0
        %s683 = sld [smem:[#allocation10 + $0x101]]
        %v684 = vstv %s683
        %v685 = vmul.f32 %v671, %v684
        %s686 = sld [smem:[#allocation11 + $0x101]]
        %v687 = vstv %s686
        %v688 = vadd.f32 %v685, %v687
        %v689 = vmax.f32 %v688, 0.0
        %s690 = sld [smem:[#allocation13 + $0x101]]
        %v691 = vstv %s690
        %v692 = vmul.f32 %v689, %v691
        %v693 = vadd.f32 %v682, %v692
        %s694 = sld [smem:[#allocation10 + $0x102]]
        %v695 = vstv %s694
        %v696 = vmul.f32 %v671, %v695
        %s697 = sld [smem:[#allocation11 + $0x102]]
        %v698 = vstv %s697
        %v699 = vadd.f32 %v696, %v698
        %v700 = vmax.f32 %v699, 0.0
        %s701 = sld [smem:[#allocation13 + $0x102]]
        %v702 = vstv %s701
        %v703 = vmul.f32 %v700, %v702
        %v704 = vadd.f32 %v693, %v703
        %s705 = sld [smem:[#allocation10 + $0x103]]
        %v706 = vstv %s705
        %v707 = vmul.f32 %v671, %v706
        %s708 = sld [smem:[#allocation11 + $0x103]]
        %v709 = vstv %s708
        %v710 = vadd.f32 %v707, %v709
        %v711 = vmax.f32 %v710, 0.0
        %s712 = sld [smem:[#allocation13 + $0x103]]
        %v713 = vstv %s712
        %v714 = vmul.f32 %v711, %v713
        %v715 = vadd.f32 %v704, %v714
        %s716 = sld [smem:[#allocation10 + $0x104]]
        %v717 = vstv %s716
        %v718 = vmul.f32 %v671, %v717
        %s719 = sld [smem:[#allocation11 + $0x104]]
        %v720 = vstv %s719
        %v721 = vadd.f32 %v718, %v720
        %v722 = vmax.f32 %v721, 0.0
        %s723 = sld [smem:[#allocation13 + $0x104]]
        %v724 = vstv %s723
        %v725 = vmul.f32 %v722, %v724
        %v726 = vadd.f32 %v715, %v725
        %s727 = sld [smem:[#allocation10 + $0x105]]
        %v728 = vstv %s727
        %v729 = vmul.f32 %v671, %v728
        %s730 = sld [smem:[#allocation11 + $0x105]]
        %v731 = vstv %s730
        %v732 = vadd.f32 %v729, %v731
        %v733 = vmax.f32 %v732, 0.0
        %s734 = sld [smem:[#allocation13 + $0x105]]
        %v735 = vstv %s734
        %v736 = vmul.f32 %v733, %v735
        %v737 = vadd.f32 %v726, %v736
        %s738 = sld [smem:[#allocation10 + $0x106]]
        %v739 = vstv %s738
        %v740 = vmul.f32 %v671, %v739
        %s741 = sld [smem:[#allocation11 + $0x106]]
        %v742 = vstv %s741
        %v743 = vadd.f32 %v740, %v742
        %v744 = vmax.f32 %v743, 0.0
        %s745 = sld [smem:[#allocation13 + $0x106]]
        %v746 = vstv %s745
        %v747 = vmul.f32 %v744, %v746
        %v748 = vadd.f32 %v737, %v747
        %s749 = sld [smem:[#allocation10 + $0x107]]
        %v750 = vstv %s749
        %v751 = vmul.f32 %v671, %v750
        %s752 = sld [smem:[#allocation11 + $0x107]]
        %v753 = vstv %s752
        %v754 = vadd.f32 %v751, %v753
        %v755 = vmax.f32 %v754, 0.0
        %s756 = sld [smem:[#allocation13 + $0x107]]
        %v757 = vstv %s756
        %v758 = vmul.f32 %v755, %v757
        %v759 = vadd.f32 %v748, %v758
        %s760 = sld [smem:[#allocation10 + $0x108]]
        %v761 = vstv %s760
        %v762 = vmul.f32 %v671, %v761
        %s763 = sld [smem:[#allocation11 + $0x108]]
        %v764 = vstv %s763
        %v765 = vadd.f32 %v762, %v764
        %v766 = vmax.f32 %v765, 0.0
        %s767 = sld [smem:[#allocation13 + $0x108]]
        %v768 = vstv %s767
        %v769 = vmul.f32 %v766, %v768
        %v770 = vadd.f32 %v759, %v769
        %s771 = sld [smem:[#allocation10 + $0x109]]
        %v772 = vstv %s771
        %v773 = vmul.f32 %v671, %v772
        %s774 = sld [smem:[#allocation11 + $0x109]]
        %v775 = vstv %s774
        %v776 = vadd.f32 %v773, %v775
        %v777 = vmax.f32 %v776, 0.0
        %s778 = sld [smem:[#allocation13 + $0x109]]
        %v779 = vstv %s778
        %v780 = vmul.f32 %v777, %v779
        %v781 = vadd.f32 %v770, %v780
        %s782 = sld [smem:[#allocation14 + $0x2]]
        %v783 = vstv %s782
        %v784 = vadd.f32 %v781, %v783
        %s785 = scalar_lea.vmem %s360, 16 [#allocation7]
        %v786 = vld [vmem:[%s785] sm:$0xff]
        %v787 = vmul.f32 %v784, %v786
        %v788 = vadd.f32 %v669, %v787
        %s789 = scalar_lea.vmem %s350, 24 [#allocation2]
        %v790 = vld [vmem:[%s789] sm:$0xff]
        %s791 = sld [smem:[#allocation10 + $0x180]]
        %v792 = vstv %s791
        %v793 = vmul.f32 %v790, %v792
        %s794 = sld [smem:[#allocation11 + $0x180]]
        %v795 = vstv %s794
        %v796 = vadd.f32 %v793, %v795
        %v797 = vmax.f32 %v796, 0.0
        %s798 = sld [smem:[#allocation13 + $0x180]]
        %v799 = vstv %s798
        %v800 = vmul.f32 %v797, %v799
        %v801 = vadd.f32 %v800, 0.0
        %s802 = sld [smem:[#allocation10 + $0x181]]
        %v803 = vstv %s802
        %v804 = vmul.f32 %v790, %v803
        %s805 = sld [smem:[#allocation11 + $0x181]]
        %v806 = vstv %s805
        %v807 = vadd.f32 %v804, %v806
        %v808 = vmax.f32 %v807, 0.0
        %s809 = sld [smem:[#allocation13 + $0x181]]
        %v810 = vstv %s809
        %v811 = vmul.f32 %v808, %v810
        %v812 = vadd.f32 %v801, %v811
        %s813 = sld [smem:[#allocation10 + $0x182]]
        %v814 = vstv %s813
        %v815 = vmul.f32 %v790, %v814
        %s816 = sld [smem:[#allocation11 + $0x182]]
        %v817 = vstv %s816
        %v818 = vadd.f32 %v815, %v817
        %v819 = vmax.f32 %v818, 0.0
        %s820 = sld [smem:[#allocation13 + $0x182]]
        %v821 = vstv %s820
        %v822 = vmul.f32 %v819, %v821
        %v823 = vadd.f32 %v812, %v822
        %s824 = sld [smem:[#allocation10 + $0x183]]
        %v825 = vstv %s824
        %v826 = vmul.f32 %v790, %v825
        %s827 = sld [smem:[#allocation11 + $0x183]]
        %v828 = vstv %s827
        %v829 = vadd.f32 %v826, %v828
        %v830 = vmax.f32 %v829, 0.0
        %s831 = sld [smem:[#allocation13 + $0x183]]
        %v832 = vstv %s831
        %v833 = vmul.f32 %v830, %v832
        %v834 = vadd.f32 %v823, %v833
        %s835 = sld [smem:[#allocation10 + $0x184]]
        %v836 = vstv %s835
        %v837 = vmul.f32 %v790, %v836
        %s838 = sld [smem:[#allocation11 + $0x184]]
        %v839 = vstv %s838
        %v840 = vadd.f32 %v837, %v839
        %v841 = vmax.f32 %v840, 0.0
        %s842 = sld [smem:[#allocation13 + $0x184]]
        %v843 = vstv %s842
        %v844 = vmul.f32 %v841, %v843
        %v845 = vadd.f32 %v834, %v844
        %s846 = sld [smem:[#allocation10 + $0x185]]
        %v847 = vstv %s846
        %v848 = vmul.f32 %v790, %v847
        %s849 = sld [smem:[#allocation11 + $0x185]]
        %v850 = vstv %s849
        %v851 = vadd.f32 %v848, %v850
        %v852 = vmax.f32 %v851, 0.0
        %s853 = sld [smem:[#allocation13 + $0x185]]
        %v854 = vstv %s853
        %v855 = vmul.f32 %v852, %v854
        %v856 = vadd.f32 %v845, %v855
        %s857 = sld [smem:[#allocation10 + $0x186]]
        %v858 = vstv %s857
        %v859 = vmul.f32 %v790, %v858
        %s860 = sld [smem:[#allocation11 + $0x186]]
        %v861 = vstv %s860
        %v862 = vadd.f32 %v859, %v861
        %v863 = vmax.f32 %v862, 0.0
        %s864 = sld [smem:[#allocation13 + $0x186]]
        %v865 = vstv %s864
        %v866 = vmul.f32 %v863, %v865
        %v867 = vadd.f32 %v856, %v866
        %s868 = sld [smem:[#allocation10 + $0x187]]
        %v869 = vstv %s868
        %v870 = vmul.f32 %v790, %v869
        %s871 = sld [smem:[#allocation11 + $0x187]]
        %v872 = vstv %s871
        %v873 = vadd.f32 %v870, %v872
        %v874 = vmax.f32 %v873, 0.0
        %s875 = sld [smem:[#allocation13 + $0x187]]
        %v876 = vstv %s875
        %v877 = vmul.f32 %v874, %v876
        %v878 = vadd.f32 %v867, %v877
        %s879 = sld [smem:[#allocation10 + $0x188]]
        %v880 = vstv %s879
        %v881 = vmul.f32 %v790, %v880
        %s882 = sld [smem:[#allocation11 + $0x188]]
        %v883 = vstv %s882
        %v884 = vadd.f32 %v881, %v883
        %v885 = vmax.f32 %v884, 0.0
        %s886 = sld [smem:[#allocation13 + $0x188]]
        %v887 = vstv %s886
        %v888 = vmul.f32 %v885, %v887
        %v889 = vadd.f32 %v878, %v888
        %s890 = sld [smem:[#allocation10 + $0x189]]
        %v891 = vstv %s890
        %v892 = vmul.f32 %v790, %v891
        %s893 = sld [smem:[#allocation11 + $0x189]]
        %v894 = vstv %s893
        %v895 = vadd.f32 %v892, %v894
        %v896 = vmax.f32 %v895, 0.0
        %s897 = sld [smem:[#allocation13 + $0x189]]
        %v898 = vstv %s897
        %v899 = vmul.f32 %v896, %v898
        %v900 = vadd.f32 %v889, %v899
        %s901 = sld [smem:[#allocation14 + $0x3]]
        %v902 = vstv %s901
        %v903 = vadd.f32 %v900, %v902
        %s904 = scalar_lea.vmem %s360, 24 [#allocation7]
        %v905 = vld [vmem:[%s904] sm:$0xff]
        %v906 = vmul.f32 %v903, %v905
        %v907 = vadd.f32 %v788, %v906
        %s908 = scalar_lea.vmem %s350, 32 [#allocation2]
        %v909 = vld [vmem:[%s908] sm:$0xff]
        %s910 = sld [smem:[#allocation10 + $0x200]]
        %v911 = vstv %s910
        %v912 = vmul.f32 %v909, %v911
        %s913 = sld [smem:[#allocation11 + $0x200]]
        %v914 = vstv %s913
        %v915 = vadd.f32 %v912, %v914
        %v916 = vmax.f32 %v915, 0.0
        %s917 = sld [smem:[#allocation13 + $0x200]]
        %v918 = vstv %s917
        %v919 = vmul.f32 %v916, %v918
        %v920 = vadd.f32 %v919, 0.0
        %s921 = sld [smem:[#allocation10 + $0x201]]
        %v922 = vstv %s921
        %v923 = vmul.f32 %v909, %v922
        %s924 = sld [smem:[#allocation11 + $0x201]]
        %v925 = vstv %s924
        %v926 = vadd.f32 %v923, %v925
        %v927 = vmax.f32 %v926, 0.0
        %s928 = sld [smem:[#allocation13 + $0x201]]
        %v929 = vstv %s928
        %v930 = vmul.f32 %v927, %v929
        %v931 = vadd.f32 %v920, %v930
        %s932 = sld [smem:[#allocation10 + $0x202]]
        %v933 = vstv %s932
        %v934 = vmul.f32 %v909, %v933
        %s935 = sld [smem:[#allocation11 + $0x202]]
        %v936 = vstv %s935
        %v937 = vadd.f32 %v934, %v936
        %v938 = vmax.f32 %v937, 0.0
        %s939 = sld [smem:[#allocation13 + $0x202]]
        %v940 = vstv %s939
        %v941 = vmul.f32 %v938, %v940
        %v942 = vadd.f32 %v931, %v941
        %s943 = sld [smem:[#allocation10 + $0x203]]
        %v944 = vstv %s943
        %v945 = vmul.f32 %v909, %v944
        %s946 = sld [smem:[#allocation11 + $0x203]]
        %v947 = vstv %s946
        %v948 = vadd.f32 %v945, %v947
        %v949 = vmax.f32 %v948, 0.0
        %s950 = sld [smem:[#allocation13 + $0x203]]
        %v951 = vstv %s950
        %v952 = vmul.f32 %v949, %v951
        %v953 = vadd.f32 %v942, %v952
        %s954 = sld [smem:[#allocation10 + $0x204]]
        %v955 = vstv %s954
        %v956 = vmul.f32 %v909, %v955
        %s957 = sld [smem:[#allocation11 + $0x204]]
        %v958 = vstv %s957
        %v959 = vadd.f32 %v956, %v958
        %v960 = vmax.f32 %v959, 0.0
        %s961 = sld [smem:[#allocation13 + $0x204]]
        %v962 = vstv %s961
        %v963 = vmul.f32 %v960, %v962
        %v964 = vadd.f32 %v953, %v963
        %s965 = sld [smem:[#allocation10 + $0x205]]
        %v966 = vstv %s965
        %v967 = vmul.f32 %v909, %v966
        %s968 = sld [smem:[#allocation11 + $0x205]]
        %v969 = vstv %s968
        %v970 = vadd.f32 %v967, %v969
        %v971 = vmax.f32 %v970, 0.0
        %s972 = sld [smem:[#allocation13 + $0x205]]
        %v973 = vstv %s972
        %v974 = vmul.f32 %v971, %v973
        %v975 = vadd.f32 %v964, %v974
        %s976 = sld [smem:[#allocation10 + $0x206]]
        %v977 = vstv %s976
        %v978 = vmul.f32 %v909, %v977
        %s979 = sld [smem:[#allocation11 + $0x206]]
        %v980 = vstv %s979
        %v981 = vadd.f32 %v978, %v980
        %v982 = vmax.f32 %v981, 0.0
        %s983 = sld [smem:[#allocation13 + $0x206]]
        %v984 = vstv %s983
        %v985 = vmul.f32 %v982, %v984
        %v986 = vadd.f32 %v975, %v985
        %s987 = sld [smem:[#allocation10 + $0x207]]
        %v988 = vstv %s987
        %v989 = vmul.f32 %v909, %v988
        %s990 = sld [smem:[#allocation11 + $0x207]]
        %v991 = vstv %s990
        %v992 = vadd.f32 %v989, %v991
        %v993 = vmax.f32 %v992, 0.0
        %s994 = sld [smem:[#allocation13 + $0x207]]
        %v995 = vstv %s994
        %v996 = vmul.f32 %v993, %v995
        %v997 = vadd.f32 %v986, %v996
        %s998 = sld [smem:[#allocation10 + $0x208]]
        %v999 = vstv %s998
        %v1000 = vmul.f32 %v909, %v999
        %s1001 = sld [smem:[#allocation11 + $0x208]]
        %v1002 = vstv %s1001
        %v1003 = vadd.f32 %v1000, %v1002
        %v1004 = vmax.f32 %v1003, 0.0
        %s1005 = sld [smem:[#allocation13 + $0x208]]
        %v1006 = vstv %s1005
        %v1007 = vmul.f32 %v1004, %v1006
        %v1008 = vadd.f32 %v997, %v1007
        %s1009 = sld [smem:[#allocation10 + $0x209]]
        %v1010 = vstv %s1009
        %v1011 = vmul.f32 %v909, %v1010
        %s1012 = sld [smem:[#allocation11 + $0x209]]
        %v1013 = vstv %s1012
        %v1014 = vadd.f32 %v1011, %v1013
        %v1015 = vmax.f32 %v1014, 0.0
        %s1016 = sld [smem:[#allocation13 + $0x209]]
        %v1017 = vstv %s1016
        %v1018 = vmul.f32 %v1015, %v1017
        %v1019 = vadd.f32 %v1008, %v1018
        %s1020 = sld [smem:[#allocation14 + $0x4]]
        %v1021 = vstv %s1020
        %v1022 = vadd.f32 %v1019, %v1021
        %s1023 = scalar_lea.vmem %s360, 32 [#allocation7]
        %v1024 = vld [vmem:[%s1023] sm:$0xff]
        %v1025 = vmul.f32 %v1022, %v1024
        %v1026 = vadd.f32 %v907, %v1025
        %s1027 = scalar_lea.vmem %s350, 40 [#allocation2]
        %v1028 = vld [vmem:[%s1027] sm:$0xff]
        %s1029 = sld [smem:[#allocation10 + $0x280]]
        %v1030 = vstv %s1029
        %v1031 = vmul.f32 %v1028, %v1030
        %s1032 = sld [smem:[#allocation11 + $0x280]]
        %v1033 = vstv %s1032
        %v1034 = vadd.f32 %v1031, %v1033
        %v1035 = vmax.f32 %v1034, 0.0
        %s1036 = sld [smem:[#allocation13 + $0x280]]
        %v1037 = vstv %s1036
        %v1038 = vmul.f32 %v1035, %v1037
        %v1039 = vadd.f32 %v1038, 0.0
        %s1040 = sld [smem:[#allocation10 + $0x281]]
        %v1041 = vstv %s1040
        %v1042 = vmul.f32 %v1028, %v1041
        %s1043 = sld [smem:[#allocation11 + $0x281]]
        %v1044 = vstv %s1043
        %v1045 = vadd.f32 %v1042, %v1044
        %v1046 = vmax.f32 %v1045, 0.0
        %s1047 = sld [smem:[#allocation13 + $0x281]]
        %v1048 = vstv %s1047
        %v1049 = vmul.f32 %v1046, %v1048
        %v1050 = vadd.f32 %v1039, %v1049
        %s1051 = sld [smem:[#allocation10 + $0x282]]
        %v1052 = vstv %s1051
        %v1053 = vmul.f32 %v1028, %v1052
        %s1054 = sld [smem:[#allocation11 + $0x282]]
        %v1055 = vstv %s1054
        %v1056 = vadd.f32 %v1053, %v1055
        %v1057 = vmax.f32 %v1056, 0.0
        %s1058 = sld [smem:[#allocation13 + $0x282]]
        %v1059 = vstv %s1058
        %v1060 = vmul.f32 %v1057, %v1059
        %v1061 = vadd.f32 %v1050, %v1060
        %s1062 = sld [smem:[#allocation10 + $0x283]]
        %v1063 = vstv %s1062
        %v1064 = vmul.f32 %v1028, %v1063
        %s1065 = sld [smem:[#allocation11 + $0x283]]
        %v1066 = vstv %s1065
        %v1067 = vadd.f32 %v1064, %v1066
        %v1068 = vmax.f32 %v1067, 0.0
        %s1069 = sld [smem:[#allocation13 + $0x283]]
        %v1070 = vstv %s1069
        %v1071 = vmul.f32 %v1068, %v1070
        %v1072 = vadd.f32 %v1061, %v1071
        %s1073 = sld [smem:[#allocation10 + $0x284]]
        %v1074 = vstv %s1073
        %v1075 = vmul.f32 %v1028, %v1074
        %s1076 = sld [smem:[#allocation11 + $0x284]]
        %v1077 = vstv %s1076
        %v1078 = vadd.f32 %v1075, %v1077
        %v1079 = vmax.f32 %v1078, 0.0
        %s1080 = sld [smem:[#allocation13 + $0x284]]
        %v1081 = vstv %s1080
        %v1082 = vmul.f32 %v1079, %v1081
        %v1083 = vadd.f32 %v1072, %v1082
        %s1084 = sld [smem:[#allocation10 + $0x285]]
        %v1085 = vstv %s1084
        %v1086 = vmul.f32 %v1028, %v1085
        %s1087 = sld [smem:[#allocation11 + $0x285]]
        %v1088 = vstv %s1087
        %v1089 = vadd.f32 %v1086, %v1088
        %v1090 = vmax.f32 %v1089, 0.0
        %s1091 = sld [smem:[#allocation13 + $0x285]]
        %v1092 = vstv %s1091
        %v1093 = vmul.f32 %v1090, %v1092
        %v1094 = vadd.f32 %v1083, %v1093
        %s1095 = sld [smem:[#allocation10 + $0x286]]
        %v1096 = vstv %s1095
        %v1097 = vmul.f32 %v1028, %v1096
        %s1098 = sld [smem:[#allocation11 + $0x286]]
        %v1099 = vstv %s1098
        %v1100 = vadd.f32 %v1097, %v1099
        %v1101 = vmax.f32 %v1100, 0.0
        %s1102 = sld [smem:[#allocation13 + $0x286]]
        %v1103 = vstv %s1102
        %v1104 = vmul.f32 %v1101, %v1103
        %v1105 = vadd.f32 %v1094, %v1104
        %s1106 = sld [smem:[#allocation10 + $0x287]]
        %v1107 = vstv %s1106
        %v1108 = vmul.f32 %v1028, %v1107
        %s1109 = sld [smem:[#allocation11 + $0x287]]
        %v1110 = vstv %s1109
        %v1111 = vadd.f32 %v1108, %v1110
        %v1112 = vmax.f32 %v1111, 0.0
        %s1113 = sld [smem:[#allocation13 + $0x287]]
        %v1114 = vstv %s1113
        %v1115 = vmul.f32 %v1112, %v1114
        %v1116 = vadd.f32 %v1105, %v1115
        %s1117 = sld [smem:[#allocation10 + $0x288]]
        %v1118 = vstv %s1117
        %v1119 = vmul.f32 %v1028, %v1118
        %s1120 = sld [smem:[#allocation11 + $0x288]]
        %v1121 = vstv %s1120
        %v1122 = vadd.f32 %v1119, %v1121
        %v1123 = vmax.f32 %v1122, 0.0
        %s1124 = sld [smem:[#allocation13 + $0x288]]
        %v1125 = vstv %s1124
        %v1126 = vmul.f32 %v1123, %v1125
        %v1127 = vadd.f32 %v1116, %v1126
        %s1128 = sld [smem:[#allocation10 + $0x289]]
        %v1129 = vstv %s1128
        %v1130 = vmul.f32 %v1028, %v1129
        %s1131 = sld [smem:[#allocation11 + $0x289]]
        %v1132 = vstv %s1131
        %v1133 = vadd.f32 %v1130, %v1132
        %v1134 = vmax.f32 %v1133, 0.0
        %s1135 = sld [smem:[#allocation13 + $0x289]]
        %v1136 = vstv %s1135
        %v1137 = vmul.f32 %v1134, %v1136
        %v1138 = vadd.f32 %v1127, %v1137
        %s1139 = sld [smem:[#allocation14 + $0x5]]
        %v1140 = vstv %s1139
        %v1141 = vadd.f32 %v1138, %v1140
        %s1142 = scalar_lea.vmem %s360, 40 [#allocation7]
        %v1143 = vld [vmem:[%s1142] sm:$0xff]
        %v1144 = vmul.f32 %v1141, %v1143
        %v1145 = vadd.f32 %v1026, %v1144
        %s1146 = scalar_lea.vmem %s350, 48 [#allocation2]
        %v1147 = vld [vmem:[%s1146] sm:$0xff]
        %s1148 = sld [smem:[#allocation10 + $0x300]]
        %v1149 = vstv %s1148
        %v1150 = vmul.f32 %v1147, %v1149
        %s1151 = sld [smem:[#allocation11 + $0x300]]
        %v1152 = vstv %s1151
        %v1153 = vadd.f32 %v1150, %v1152
        %v1154 = vmax.f32 %v1153, 0.0
        %s1155 = sld [smem:[#allocation13 + $0x300]]
        %v1156 = vstv %s1155
        %v1157 = vmul.f32 %v1154, %v1156
        %v1158 = vadd.f32 %v1157, 0.0
        %s1159 = sld [smem:[#allocation10 + $0x301]]
        %v1160 = vstv %s1159
        %v1161 = vmul.f32 %v1147, %v1160
        %s1162 = sld [smem:[#allocation11 + $0x301]]
        %v1163 = vstv %s1162
        %v1164 = vadd.f32 %v1161, %v1163
        %v1165 = vmax.f32 %v1164, 0.0
        %s1166 = sld [smem:[#allocation13 + $0x301]]
        %v1167 = vstv %s1166
        %v1168 = vmul.f32 %v1165, %v1167
        %v1169 = vadd.f32 %v1158, %v1168
        %s1170 = sld [smem:[#allocation10 + $0x302]]
        %v1171 = vstv %s1170
        %v1172 = vmul.f32 %v1147, %v1171
        %s1173 = sld [smem:[#allocation11 + $0x302]]
        %v1174 = vstv %s1173
        %v1175 = vadd.f32 %v1172, %v1174
        %v1176 = vmax.f32 %v1175, 0.0
        %s1177 = sld [smem:[#allocation13 + $0x302]]
        %v1178 = vstv %s1177
        %v1179 = vmul.f32 %v1176, %v1178
        %v1180 = vadd.f32 %v1169, %v1179
        %s1181 = sld [smem:[#allocation10 + $0x303]]
        %v1182 = vstv %s1181
        %v1183 = vmul.f32 %v1147, %v1182
        %s1184 = sld [smem:[#allocation11 + $0x303]]
        %v1185 = vstv %s1184
        %v1186 = vadd.f32 %v1183, %v1185
        %v1187 = vmax.f32 %v1186, 0.0
        %s1188 = sld [smem:[#allocation13 + $0x303]]
        %v1189 = vstv %s1188
        %v1190 = vmul.f32 %v1187, %v1189
        %v1191 = vadd.f32 %v1180, %v1190
        %s1192 = sld [smem:[#allocation10 + $0x304]]
        %v1193 = vstv %s1192
        %v1194 = vmul.f32 %v1147, %v1193
        %s1195 = sld [smem:[#allocation11 + $0x304]]
        %v1196 = vstv %s1195
        %v1197 = vadd.f32 %v1194, %v1196
        %v1198 = vmax.f32 %v1197, 0.0
        %s1199 = sld [smem:[#allocation13 + $0x304]]
        %v1200 = vstv %s1199
        %v1201 = vmul.f32 %v1198, %v1200
        %v1202 = vadd.f32 %v1191, %v1201
        %s1203 = sld [smem:[#allocation10 + $0x305]]
        %v1204 = vstv %s1203
        %v1205 = vmul.f32 %v1147, %v1204
        %s1206 = sld [smem:[#allocation11 + $0x305]]
        %v1207 = vstv %s1206
        %v1208 = vadd.f32 %v1205, %v1207
        %v1209 = vmax.f32 %v1208, 0.0
        %s1210 = sld [smem:[#allocation13 + $0x305]]
        %v1211 = vstv %s1210
        %v1212 = vmul.f32 %v1209, %v1211
        %v1213 = vadd.f32 %v1202, %v1212
        %s1214 = sld [smem:[#allocation10 + $0x306]]
        %v1215 = vstv %s1214
        %v1216 = vmul.f32 %v1147, %v1215
        %s1217 = sld [smem:[#allocation11 + $0x306]]
        %v1218 = vstv %s1217
        %v1219 = vadd.f32 %v1216, %v1218
        %v1220 = vmax.f32 %v1219, 0.0
        %s1221 = sld [smem:[#allocation13 + $0x306]]
        %v1222 = vstv %s1221
        %v1223 = vmul.f32 %v1220, %v1222
        %v1224 = vadd.f32 %v1213, %v1223
        %s1225 = sld [smem:[#allocation10 + $0x307]]
        %v1226 = vstv %s1225
        %v1227 = vmul.f32 %v1147, %v1226
        %s1228 = sld [smem:[#allocation11 + $0x307]]
        %v1229 = vstv %s1228
        %v1230 = vadd.f32 %v1227, %v1229
        %v1231 = vmax.f32 %v1230, 0.0
        %s1232 = sld [smem:[#allocation13 + $0x307]]
        %v1233 = vstv %s1232
        %v1234 = vmul.f32 %v1231, %v1233
        %v1235 = vadd.f32 %v1224, %v1234
        %s1236 = sld [smem:[#allocation10 + $0x308]]
        %v1237 = vstv %s1236
        %v1238 = vmul.f32 %v1147, %v1237
        %s1239 = sld [smem:[#allocation11 + $0x308]]
        %v1240 = vstv %s1239
        %v1241 = vadd.f32 %v1238, %v1240
        %v1242 = vmax.f32 %v1241, 0.0
        %s1243 = sld [smem:[#allocation13 + $0x308]]
        %v1244 = vstv %s1243
        %v1245 = vmul.f32 %v1242, %v1244
        %v1246 = vadd.f32 %v1235, %v1245
        %s1247 = sld [smem:[#allocation10 + $0x309]]
        %v1248 = vstv %s1247
        %v1249 = vmul.f32 %v1147, %v1248
        %s1250 = sld [smem:[#allocation11 + $0x309]]
        %v1251 = vstv %s1250
        %v1252 = vadd.f32 %v1249, %v1251
        %v1253 = vmax.f32 %v1252, 0.0
        %s1254 = sld [smem:[#allocation13 + $0x309]]
        %v1255 = vstv %s1254
        %v1256 = vmul.f32 %v1253, %v1255
        %v1257 = vadd.f32 %v1246, %v1256
        %s1258 = sld [smem:[#allocation14 + $0x6]]
        %v1259 = vstv %s1258
        %v1260 = vadd.f32 %v1257, %v1259
        %s1261 = scalar_lea.vmem %s360, 48 [#allocation7]
        %v1262 = vld [vmem:[%s1261] sm:$0xff]
        %v1263 = vmul.f32 %v1260, %v1262
        %v1264 = vadd.f32 %v1145, %v1263
        %s1265 = scalar_lea.vmem %s350, 56 [#allocation2]
        %v1266 = vld [vmem:[%s1265] sm:$0xff]
        %s1267 = sld [smem:[#allocation10 + $0x380]]
        %v1268 = vstv %s1267
        %v1269 = vmul.f32 %v1266, %v1268
        %s1270 = sld [smem:[#allocation11 + $0x380]]
        %v1271 = vstv %s1270
        %v1272 = vadd.f32 %v1269, %v1271
        %v1273 = vmax.f32 %v1272, 0.0
        %s1274 = sld [smem:[#allocation13 + $0x380]]
        %v1275 = vstv %s1274
        %v1276 = vmul.f32 %v1273, %v1275
        %v1277 = vadd.f32 %v1276, 0.0
        %s1278 = sld [smem:[#allocation10 + $0x381]]
        %v1279 = vstv %s1278
        %v1280 = vmul.f32 %v1266, %v1279
        %s1281 = sld [smem:[#allocation11 + $0x381]]
        %v1282 = vstv %s1281
        %v1283 = vadd.f32 %v1280, %v1282
        %v1284 = vmax.f32 %v1283, 0.0
        %s1285 = sld [smem:[#allocation13 + $0x381]]
        %v1286 = vstv %s1285
        %v1287 = vmul.f32 %v1284, %v1286
        %v1288 = vadd.f32 %v1277, %v1287
        %s1289 = sld [smem:[#allocation10 + $0x382]]
        %v1290 = vstv %s1289
        %v1291 = vmul.f32 %v1266, %v1290
        %s1292 = sld [smem:[#allocation11 + $0x382]]
        %v1293 = vstv %s1292
        %v1294 = vadd.f32 %v1291, %v1293
        %v1295 = vmax.f32 %v1294, 0.0
        %s1296 = sld [smem:[#allocation13 + $0x382]]
        %v1297 = vstv %s1296
        %v1298 = vmul.f32 %v1295, %v1297
        %v1299 = vadd.f32 %v1288, %v1298
        %s1300 = sld [smem:[#allocation10 + $0x383]]
        %v1301 = vstv %s1300
        %v1302 = vmul.f32 %v1266, %v1301
        %s1303 = sld [smem:[#allocation11 + $0x383]]
        %v1304 = vstv %s1303
        %v1305 = vadd.f32 %v1302, %v1304
        %v1306 = vmax.f32 %v1305, 0.0
        %s1307 = sld [smem:[#allocation13 + $0x383]]
        %v1308 = vstv %s1307
        %v1309 = vmul.f32 %v1306, %v1308
        %v1310 = vadd.f32 %v1299, %v1309
        %s1311 = sld [smem:[#allocation10 + $0x384]]
        %v1312 = vstv %s1311
        %v1313 = vmul.f32 %v1266, %v1312
        %s1314 = sld [smem:[#allocation11 + $0x384]]
        %v1315 = vstv %s1314
        %v1316 = vadd.f32 %v1313, %v1315
        %v1317 = vmax.f32 %v1316, 0.0
        %s1318 = sld [smem:[#allocation13 + $0x384]]
        %v1319 = vstv %s1318
        %v1320 = vmul.f32 %v1317, %v1319
        %v1321 = vadd.f32 %v1310, %v1320
        %s1322 = sld [smem:[#allocation10 + $0x385]]
        %v1323 = vstv %s1322
        %v1324 = vmul.f32 %v1266, %v1323
        %s1325 = sld [smem:[#allocation11 + $0x385]]
        %v1326 = vstv %s1325
        %v1327 = vadd.f32 %v1324, %v1326
        %v1328 = vmax.f32 %v1327, 0.0
        %s1329 = sld [smem:[#allocation13 + $0x385]]
        %v1330 = vstv %s1329
        %v1331 = vmul.f32 %v1328, %v1330
        %v1332 = vadd.f32 %v1321, %v1331
        %s1333 = sld [smem:[#allocation10 + $0x386]]
        %v1334 = vstv %s1333
        %v1335 = vmul.f32 %v1266, %v1334
        %s1336 = sld [smem:[#allocation11 + $0x386]]
        %v1337 = vstv %s1336
        %v1338 = vadd.f32 %v1335, %v1337
        %v1339 = vmax.f32 %v1338, 0.0
        %s1340 = sld [smem:[#allocation13 + $0x386]]
        %v1341 = vstv %s1340
        %v1342 = vmul.f32 %v1339, %v1341
        %v1343 = vadd.f32 %v1332, %v1342
        %s1344 = sld [smem:[#allocation10 + $0x387]]
        %v1345 = vstv %s1344
        %v1346 = vmul.f32 %v1266, %v1345
        %s1347 = sld [smem:[#allocation11 + $0x387]]
        %v1348 = vstv %s1347
        %v1349 = vadd.f32 %v1346, %v1348
        %v1350 = vmax.f32 %v1349, 0.0
        %s1351 = sld [smem:[#allocation13 + $0x387]]
        %v1352 = vstv %s1351
        %v1353 = vmul.f32 %v1350, %v1352
        %v1354 = vadd.f32 %v1343, %v1353
        %s1355 = sld [smem:[#allocation10 + $0x388]]
        %v1356 = vstv %s1355
        %v1357 = vmul.f32 %v1266, %v1356
        %s1358 = sld [smem:[#allocation11 + $0x388]]
        %v1359 = vstv %s1358
        %v1360 = vadd.f32 %v1357, %v1359
        %v1361 = vmax.f32 %v1360, 0.0
        %s1362 = sld [smem:[#allocation13 + $0x388]]
        %v1363 = vstv %s1362
        %v1364 = vmul.f32 %v1361, %v1363
        %v1365 = vadd.f32 %v1354, %v1364
        %s1366 = sld [smem:[#allocation10 + $0x389]]
        %v1367 = vstv %s1366
        %v1368 = vmul.f32 %v1266, %v1367
        %s1369 = sld [smem:[#allocation11 + $0x389]]
        %v1370 = vstv %s1369
        %v1371 = vadd.f32 %v1368, %v1370
        %v1372 = vmax.f32 %v1371, 0.0
        %s1373 = sld [smem:[#allocation13 + $0x389]]
        %v1374 = vstv %s1373
        %v1375 = vmul.f32 %v1372, %v1374
        %v1376 = vadd.f32 %v1365, %v1375
        %s1377 = sld [smem:[#allocation14 + $0x7]]
        %v1378 = vstv %s1377
        %v1379 = vadd.f32 %v1376, %v1378
        %s1380 = scalar_lea.vmem %s360, 56 [#allocation7]
        %v1381 = vld [vmem:[%s1380] sm:$0xff]
        %v1382 = vmul.f32 %v1379, %v1381
        %v1383 = vadd.f32 %v1264, %v1382
        %s1384 = scalar_lea.vmem %s350, 64 [#allocation2]
        %v1385 = vld [vmem:[%s1384] sm:$0xff]
        %s1386 = sld [smem:[#allocation10 + $0x400]]
        %v1387 = vstv %s1386
        %v1388 = vmul.f32 %v1385, %v1387
        %s1389 = sld [smem:[#allocation11 + $0x400]]
        %v1390 = vstv %s1389
        %v1391 = vadd.f32 %v1388, %v1390
        %v1392 = vmax.f32 %v1391, 0.0
        %s1393 = sld [smem:[#allocation13 + $0x400]]
        %v1394 = vstv %s1393
        %v1395 = vmul.f32 %v1392, %v1394
        %v1396 = vadd.f32 %v1395, 0.0
        %s1397 = sld [smem:[#allocation10 + $0x401]]
        %v1398 = vstv %s1397
        %v1399 = vmul.f32 %v1385, %v1398
        %s1400 = sld [smem:[#allocation11 + $0x401]]
        %v1401 = vstv %s1400
        %v1402 = vadd.f32 %v1399, %v1401
        %v1403 = vmax.f32 %v1402, 0.0
        %s1404 = sld [smem:[#allocation13 + $0x401]]
        %v1405 = vstv %s1404
        %v1406 = vmul.f32 %v1403, %v1405
        %v1407 = vadd.f32 %v1396, %v1406
        %s1408 = sld [smem:[#allocation10 + $0x402]]
        %v1409 = vstv %s1408
        %v1410 = vmul.f32 %v1385, %v1409
        %s1411 = sld [smem:[#allocation11 + $0x402]]
        %v1412 = vstv %s1411
        %v1413 = vadd.f32 %v1410, %v1412
        %v1414 = vmax.f32 %v1413, 0.0
        %s1415 = sld [smem:[#allocation13 + $0x402]]
        %v1416 = vstv %s1415
        %v1417 = vmul.f32 %v1414, %v1416
        %v1418 = vadd.f32 %v1407, %v1417
        %s1419 = sld [smem:[#allocation10 + $0x403]]
        %v1420 = vstv %s1419
        %v1421 = vmul.f32 %v1385, %v1420
        %s1422 = sld [smem:[#allocation11 + $0x403]]
        %v1423 = vstv %s1422
        %v1424 = vadd.f32 %v1421, %v1423
        %v1425 = vmax.f32 %v1424, 0.0
        %s1426 = sld [smem:[#allocation13 + $0x403]]
        %v1427 = vstv %s1426
        %v1428 = vmul.f32 %v1425, %v1427
        %v1429 = vadd.f32 %v1418, %v1428
        %s1430 = sld [smem:[#allocation10 + $0x404]]
        %v1431 = vstv %s1430
        %v1432 = vmul.f32 %v1385, %v1431
        %s1433 = sld [smem:[#allocation11 + $0x404]]
        %v1434 = vstv %s1433
        %v1435 = vadd.f32 %v1432, %v1434
        %v1436 = vmax.f32 %v1435, 0.0
        %s1437 = sld [smem:[#allocation13 + $0x404]]
        %v1438 = vstv %s1437
        %v1439 = vmul.f32 %v1436, %v1438
        %v1440 = vadd.f32 %v1429, %v1439
        %s1441 = sld [smem:[#allocation10 + $0x405]]
        %v1442 = vstv %s1441
        %v1443 = vmul.f32 %v1385, %v1442
        %s1444 = sld [smem:[#allocation11 + $0x405]]
        %v1445 = vstv %s1444
        %v1446 = vadd.f32 %v1443, %v1445
        %v1447 = vmax.f32 %v1446, 0.0
        %s1448 = sld [smem:[#allocation13 + $0x405]]
        %v1449 = vstv %s1448
        %v1450 = vmul.f32 %v1447, %v1449
        %v1451 = vadd.f32 %v1440, %v1450
        %s1452 = sld [smem:[#allocation10 + $0x406]]
        %v1453 = vstv %s1452
        %v1454 = vmul.f32 %v1385, %v1453
        %s1455 = sld [smem:[#allocation11 + $0x406]]
        %v1456 = vstv %s1455
        %v1457 = vadd.f32 %v1454, %v1456
        %v1458 = vmax.f32 %v1457, 0.0
        %s1459 = sld [smem:[#allocation13 + $0x406]]
        %v1460 = vstv %s1459
        %v1461 = vmul.f32 %v1458, %v1460
        %v1462 = vadd.f32 %v1451, %v1461
        %s1463 = sld [smem:[#allocation10 + $0x407]]
        %v1464 = vstv %s1463
        %v1465 = vmul.f32 %v1385, %v1464
        %s1466 = sld [smem:[#allocation11 + $0x407]]
        %v1467 = vstv %s1466
        %v1468 = vadd.f32 %v1465, %v1467
        %v1469 = vmax.f32 %v1468, 0.0
        %s1470 = sld [smem:[#allocation13 + $0x407]]
        %v1471 = vstv %s1470
        %v1472 = vmul.f32 %v1469, %v1471
        %v1473 = vadd.f32 %v1462, %v1472
        %s1474 = sld [smem:[#allocation10 + $0x408]]
        %v1475 = vstv %s1474
        %v1476 = vmul.f32 %v1385, %v1475
        %s1477 = sld [smem:[#allocation11 + $0x408]]
        %v1478 = vstv %s1477
        %v1479 = vadd.f32 %v1476, %v1478
        %v1480 = vmax.f32 %v1479, 0.0
        %s1481 = sld [smem:[#allocation13 + $0x408]]
        %v1482 = vstv %s1481
        %v1483 = vmul.f32 %v1480, %v1482
        %v1484 = vadd.f32 %v1473, %v1483
        %s1485 = sld [smem:[#allocation10 + $0x409]]
        %v1486 = vstv %s1485
        %v1487 = vmul.f32 %v1385, %v1486
        %s1488 = sld [smem:[#allocation11 + $0x409]]
        %v1489 = vstv %s1488
        %v1490 = vadd.f32 %v1487, %v1489
        %v1491 = vmax.f32 %v1490, 0.0
        %s1492 = sld [smem:[#allocation13 + $0x409]]
        %v1493 = vstv %s1492
        %v1494 = vmul.f32 %v1491, %v1493
        %v1495 = vadd.f32 %v1484, %v1494
        %s1496 = sld [smem:[#allocation14 + $0x8]]
        %v1497 = vstv %s1496
        %v1498 = vadd.f32 %v1495, %v1497
        %s1499 = scalar_lea.vmem %s360, 64 [#allocation7]
        %v1500 = vld [vmem:[%s1499] sm:$0xff]
        %v1501 = vmul.f32 %v1498, %v1500
        %v1502 = vadd.f32 %v1383, %v1501
        %s1503 = scalar_lea.vmem %s350, 72 [#allocation2]
        %v1504 = vld [vmem:[%s1503] sm:$0xff]
        %s1505 = sld [smem:[#allocation10 + $0x480]]
        %v1506 = vstv %s1505
        %v1507 = vmul.f32 %v1504, %v1506
        %s1508 = sld [smem:[#allocation11 + $0x480]]
        %v1509 = vstv %s1508
        %v1510 = vadd.f32 %v1507, %v1509
        %v1511 = vmax.f32 %v1510, 0.0
        %s1512 = sld [smem:[#allocation13 + $0x480]]
        %v1513 = vstv %s1512
        %v1514 = vmul.f32 %v1511, %v1513
        %v1515 = vadd.f32 %v1514, 0.0
        %s1516 = sld [smem:[#allocation10 + $0x481]]
        %v1517 = vstv %s1516
        %v1518 = vmul.f32 %v1504, %v1517
        %s1519 = sld [smem:[#allocation11 + $0x481]]
        %v1520 = vstv %s1519
        %v1521 = vadd.f32 %v1518, %v1520
        %v1522 = vmax.f32 %v1521, 0.0
        %s1523 = sld [smem:[#allocation13 + $0x481]]
        %v1524 = vstv %s1523
        %v1525 = vmul.f32 %v1522, %v1524
        %v1526 = vadd.f32 %v1515, %v1525
        %s1527 = sld [smem:[#allocation10 + $0x482]]
        %v1528 = vstv %s1527
        %v1529 = vmul.f32 %v1504, %v1528
        %s1530 = sld [smem:[#allocation11 + $0x482]]
        %v1531 = vstv %s1530
        %v1532 = vadd.f32 %v1529, %v1531
        %v1533 = vmax.f32 %v1532, 0.0
        %s1534 = sld [smem:[#allocation13 + $0x482]]
        %v1535 = vstv %s1534
        %v1536 = vmul.f32 %v1533, %v1535
        %v1537 = vadd.f32 %v1526, %v1536
        %s1538 = sld [smem:[#allocation10 + $0x483]]
        %v1539 = vstv %s1538
        %v1540 = vmul.f32 %v1504, %v1539
        %s1541 = sld [smem:[#allocation11 + $0x483]]
        %v1542 = vstv %s1541
        %v1543 = vadd.f32 %v1540, %v1542
        %v1544 = vmax.f32 %v1543, 0.0
        %s1545 = sld [smem:[#allocation13 + $0x483]]
        %v1546 = vstv %s1545
        %v1547 = vmul.f32 %v1544, %v1546
        %v1548 = vadd.f32 %v1537, %v1547
        %s1549 = sld [smem:[#allocation10 + $0x484]]
        %v1550 = vstv %s1549
        %v1551 = vmul.f32 %v1504, %v1550
        %s1552 = sld [smem:[#allocation11 + $0x484]]
        %v1553 = vstv %s1552
        %v1554 = vadd.f32 %v1551, %v1553
        %v1555 = vmax.f32 %v1554, 0.0
        %s1556 = sld [smem:[#allocation13 + $0x484]]
        %v1557 = vstv %s1556
        %v1558 = vmul.f32 %v1555, %v1557
        %v1559 = vadd.f32 %v1548, %v1558
        %s1560 = sld [smem:[#allocation10 + $0x485]]
        %v1561 = vstv %s1560
        %v1562 = vmul.f32 %v1504, %v1561
        %s1563 = sld [smem:[#allocation11 + $0x485]]
        %v1564 = vstv %s1563
        %v1565 = vadd.f32 %v1562, %v1564
        %v1566 = vmax.f32 %v1565, 0.0
        %s1567 = sld [smem:[#allocation13 + $0x485]]
        %v1568 = vstv %s1567
        %v1569 = vmul.f32 %v1566, %v1568
        %v1570 = vadd.f32 %v1559, %v1569
        %s1571 = sld [smem:[#allocation10 + $0x486]]
        %v1572 = vstv %s1571
        %v1573 = vmul.f32 %v1504, %v1572
        %s1574 = sld [smem:[#allocation11 + $0x486]]
        %v1575 = vstv %s1574
        %v1576 = vadd.f32 %v1573, %v1575
        %v1577 = vmax.f32 %v1576, 0.0
        %s1578 = sld [smem:[#allocation13 + $0x486]]
        %v1579 = vstv %s1578
        %v1580 = vmul.f32 %v1577, %v1579
        %v1581 = vadd.f32 %v1570, %v1580
        %s1582 = sld [smem:[#allocation10 + $0x487]]
        %v1583 = vstv %s1582
        %v1584 = vmul.f32 %v1504, %v1583
        %s1585 = sld [smem:[#allocation11 + $0x487]]
        %v1586 = vstv %s1585
        %v1587 = vadd.f32 %v1584, %v1586
        %v1588 = vmax.f32 %v1587, 0.0
        %s1589 = sld [smem:[#allocation13 + $0x487]]
        %v1590 = vstv %s1589
        %v1591 = vmul.f32 %v1588, %v1590
        %v1592 = vadd.f32 %v1581, %v1591
        %s1593 = sld [smem:[#allocation10 + $0x488]]
        %v1594 = vstv %s1593
        %v1595 = vmul.f32 %v1504, %v1594
        %s1596 = sld [smem:[#allocation11 + $0x488]]
        %v1597 = vstv %s1596
        %v1598 = vadd.f32 %v1595, %v1597
        %v1599 = vmax.f32 %v1598, 0.0
        %s1600 = sld [smem:[#allocation13 + $0x488]]
        %v1601 = vstv %s1600
        %v1602 = vmul.f32 %v1599, %v1601
        %v1603 = vadd.f32 %v1592, %v1602
        %s1604 = sld [smem:[#allocation10 + $0x489]]
        %v1605 = vstv %s1604
        %v1606 = vmul.f32 %v1504, %v1605
        %s1607 = sld [smem:[#allocation11 + $0x489]]
        %v1608 = vstv %s1607
        %v1609 = vadd.f32 %v1606, %v1608
        %v1610 = vmax.f32 %v1609, 0.0
        %s1611 = sld [smem:[#allocation13 + $0x489]]
        %v1612 = vstv %s1611
        %v1613 = vmul.f32 %v1610, %v1612
        %v1614 = vadd.f32 %v1603, %v1613
        %s1615 = sld [smem:[#allocation14 + $0x9]]
        %v1616 = vstv %s1615
        %v1617 = vadd.f32 %v1614, %v1616
        %s1618 = scalar_lea.vmem %s360, 72 [#allocation7]
        %v1619 = vld [vmem:[%s1618] sm:$0xff]
        %v1620 = vmul.f32 %v1617, %v1619
        %v1621 = vadd.f32 %v1502, %v1620
        %1622 = vst [vmem:[%s432] sm:$0xff] %v1621
        %s1623 = sand.u32 %s200, 1
        %s1624 = scalar_lea.sflag [#allocation4], %s1623
        %s1625 = sand.u32 %s200, 1
        %s1626 = smul.addr %s1625, 8
        %s1627 = scalar_lea.vmem [#allocation15], %s1626
        // Predicated region
        $region77: #{tpu_custom_call.1} parent=47 // pred_check
          %p1628 = pneg %p210
        $region78: #{tpu_custom_call.1} parent=47 // pred_check_branch
          %1630 = sbr.rel (%p1628) target = $region80
        $region79: #{tpu_custom_call.1} parent=47 // pred_region
          %1632 = vsyncadd %s1624, 0
          %s1633 = smul.addr %s30, 8
          %s1634 = scalar_lea.hbm %s7, %s1633
          %s1636 = sshll.u32 %s1627, 4
          %s1637 = int_to_ptr.vmem [resolvable:$true] %s1636
          %s1638 = sshll.u32 %s1634, 4
          %s1639 = int_to_ptr.hbm [resolvable:$true] %s1638
          %1641 = dma.vmem_to_hbm [thread:$0]  %s1637, 128, %s1639, %s1624
        $region80: #{tpu_custom_call.1} parent=47 // pred_fallthru
          _
      $region48: #{tpu_custom_call.1} parent=5 // pred_fallthru
        _
      %p1642 = scmp.le.s32.totalorder 2, %s25
      // Predicated region
      $region81: #{tpu_custom_call.1} parent=5 // pred_check
        %p1643 = pneg %p1642
      $region82: #{tpu_custom_call.1} parent=5 // pred_check_branch
        %1645 = sbr.rel (%p1643) target = $region84
      $region83: #{tpu_custom_call.1} parent=5 // pred_region
        %s1646 = ssub.s32 %s25, 2
        // Predicated region
        $region85: #{tpu_custom_call.1} parent=83 // pred_check
          %p1647 = pneg %p216
        $region86: #{tpu_custom_call.1} parent=83 // pred_check_branch
          %1649 = sbr.rel (%p1647) target = $region88
        $region87: #{tpu_custom_call.1} parent=83 // pred_region
          %s1650 = sand.u32 %s201, 1
          %s1651 = scalar_lea.sflag [#allocation4], %s1650
          %s1652 = sand.u32 %s201, 1
          %s1653 = smul.addr %s1652, 8
          %s1654 = scalar_lea.vmem [#allocation15], %s1653
          %1656 = dma.done %s1651, 128
        $region88: #{tpu_custom_call.1} parent=83 // pred_fallthru
          _
      $region84: #{tpu_custom_call.1} parent=5 // pred_fallthru
        _
    $region6: #{tpu_custom_call.1} parent=1 // loop_footer
      %s29 = sadd.s32 1, %s25
    $region7: #{tpu_custom_call.1} parent=1 // loop_footer_branch
      %24 = sbr.rel target = $region3
    $region8: #{tpu_custom_call.1} parent=1 // loop_exit
      _
    %1657 = vsyncpa [#allocation3], 1
    %s1658 = scalar_lea.sflag [#allocation3], 1
    %1659 = vsyncpa %s1658, 1
    %1660 = vsyncpa [#allocation8], 1
    %s1661 = scalar_lea.sflag [#allocation8], 1
    %1662 = vsyncpa %s1661, 1
    %1663 = vsyncpa [#allocation4], 1
    %s1664 = scalar_lea.sflag [#allocation4], 1
    %1665 = vsyncpa %s1664, 1
    %1666 = vsyncpa [#allocation5], 1
    %s1667 = scalar_lea.sflag [#allocation5], 1
    %1668 = vsyncpa %s1667, 1
    %1669 = vsyncpa [#allocation12], 1
    %1670 = vsyncpa [#allocation6], 1
    %s1671 = scalar_lea.sflag [#allocation6], 1
    %1672 = vsyncpa %s1671, 1

</llo_original>
